<compile_context>
chip_gen: v7x
topology: tpu7x:2x2x1
jax: 0.10.0
libtpu: 0.0.40
codegen_flags: <defaults>
</compile_context>

<pallas_src>
import functools
import math

import jax
import jax.numpy as jnp
from jax.experimental import pallas as pl
from jax.experimental.pallas import tpu as pltpu

NEG_SLOPE = 0.01   # nn.LeakyReLU default
BN_EPS = 1e-5      # nn.BatchNorm1d default


def _round_up(n, m):
    return ((n + m - 1) // m) * m


# ----------------------------- Pallas kernel ------------------------------- #
def _fused_trunk_kernel(*refs, specs):
    """Runs the whole conv trunk for a tile of BT samples.

    refs = (x_ref, w_0..w_{n-1}, s_0..s_{n-1}, o_ref)
      x_ref : (T, BT, d)         time-major, channels tightly packed
      w_l   : (4*Cin_l, Cout_l)  bf16, tap-major rows (k*Cin + ci), BN scale folded in
      s_l   : (1, Cout_l)        f32 per-channel shift (zeros when no BN)
      o_ref : (BT, Cout_last)
    """
    n = len(specs)
    x_ref = refs[0]
    w_refs = refs[1:1 + n]
    s_refs = refs[1 + n:1 + 2 * n]
    o_ref = refs[1 + 2 * n]

    a = x_ref[...].astype(jnp.float32)                     # (L, BT, Cin)
    bt = a.shape[1]
    for li, (L, cin, cout, act) in enumerate(specs):
        M = L // 2                                         # output length of this layer
        # zero padding (p=1) on the time axis: a_pad[j] == x_pad[j], j = 0..2M+1
        zrow = jnp.zeros((1, bt, cin), jnp.float32)
        a_pad = jnp.concatenate([zrow, a, zrow], axis=0)   # (2M+2, BT, Cin)
        # pair up consecutive (padded) time steps: p[j, r] == x_pad[2j + r]
        p = a_pad.reshape(M + 1, 2, bt, cin)
        # im2col for k=4, s=2: output o reads x_pad[2o + k], k = 0..3 (tap-major lanes)
        g = jnp.concatenate(
            [p[:M, 0], p[:M, 1], p[1:, 0], p[1:, 1]], axis=-1)      # (M, BT, 4*Cin)
        g2 = g.reshape(M * bt, 4 * cin).astype(jnp.bfloat16)
        y = jnp.dot(g2, w_refs[li][...],
                    preferred_element_type=jnp.float32)             # (M*BT, Cout) f32
        y = y + s_refs[li][...]                            # folded-BN shift (f32)
        if act:
            y = jnp.where(y > 0.0, y, NEG_SLOPE * y)       # LeakyReLU (f32, v5e-safe)
        a = y.reshape(M, bt, cout)
    # final a is (1, BT, Cout_last)
    o_ref[...] = a[0]


# ------------------------------- JAX glue ---------------------------------- #
@functools.partial(jax.jit, static_argnames=("specs", "bt"))
def conv1d_baseline_forward(x, w_list, s_list, *, specs, bt=8):
    """x: (B, T, d)  ->  (B, out_channel), matching the PyTorch forward."""
    B, T, d = x.shape
    assert bt % 8 == 0, "batch tile must be a sublane multiple"
    assert specs[0][0] == T and specs[0][1] == d
    c_out = specs[-1][2]

    b_pad = _round_up(B, bt)
    x_tm = jnp.transpose(x, (1, 0, 2)).astype(jnp.float32)          # (T, B, d) — tiny op
    if b_pad != B:
        x_tm = jnp.pad(x_tm, ((0, 0), (0, b_pad - B), (0, 0)))

    kernel = functools.partial(_fused_trunk_kernel, specs=specs)

    in_specs = [pl.BlockSpec((T, bt, d), lambda b: (0, b, 0))]
    in_specs += [pl.BlockSpec(w.shape, lambda b: (0, 0)) for w in w_list]
    in_specs += [pl.BlockSpec(s.shape, lambda b: (0, 0)) for s in s_list]
    out_spec = pl.BlockSpec((bt, c_out), lambda b: (b, 0))

    flops = 0
    for (L, cin, cout, _act) in specs:
        flops += 2 * (L // 2) * (4 * cin) * cout
    flops *= b_pad
    bytes_accessed = (x_tm.size * 4
                      + sum(int(w.size) * 2 for w in w_list)
                      + sum(int(s.size) * 4 for s in s_list)
                      + b_pad * c_out * 4)

    out = pl.pallas_call(
        kernel,
        out_shape=jax.ShapeDtypeStruct((b_pad, c_out), jnp.float32),
        grid=(b_pad // bt,),
        in_specs=in_specs,
        out_specs=out_spec,
        compiler_params=pltpu.CompilerParams(
            dimension_semantics=("parallel",),
            vmem_limit_bytes=32 * 1024 * 1024),
        cost_estimate=pl.CostEstimate(flops=int(flops), transcendentals=0,
                                      bytes_accessed=int(bytes_accessed)),
    )(x_tm, *w_list, *s_list)
    return out[:B]


def prepare_params(raw_params, seq_len):
    """Fold BN scale into the weights; pack to tap-major (4*Cin, Cout) bf16."""
    w_list, s_list, specs = [], [], []
    L = seq_len
    for p in raw_params:
        w = p["w"]                                          # torch layout (C_out, C_in, K)
        cout, cin, K = w.shape
        w_mat = jnp.transpose(w, (2, 1, 0)).reshape(K * cin, cout)   # row = k*Cin + ci
        w_mat = w_mat * p["scale"][None, :]
        w_list.append(w_mat.astype(jnp.bfloat16))
        s_list.append(p["shift"][None, :].astype(jnp.float32))
        specs.append((L, cin, cout, bool(p["act"])))
        L //= 2
    return tuple(w_list), tuple(s_list), tuple(specs)


def build_layers(key, maxlen=32, input_dim=2, out_channel=32):
    """Deterministic synthetic parameters matching Conv1DBaseline.__init__ shapes."""
    layers_num = int(math.log2(maxlen)) - 1
    base = 48
    layer_defs = [(input_dim, base, False, True)]           # conv + LeakyReLU
    for _ in range(layers_num - 1):
        layer_defs.append((base, base * 2, True, True))     # conv + BN + LeakyReLU
        base *= 2
    layer_defs.append((base, out_channel, False, False))    # final conv (no BN / act)

    params = []
    for cin, cout, has_bn, has_act in layer_defs:
        key, kw, kg, kb, km, kv = jax.random.split(key, 6)
        w = 0.1 * jax.random.normal(kw, (cout, cin, 4), jnp.float32)  # (C_out, C_in, K)
        if has_bn:
            gamma = 1.0 + 0.1 * jax.random.normal(kg, (cout,), jnp.float32)
            beta = 0.1 * jax.random.normal(kb, (cout,), jnp.float32)
            rmean = 0.1 * jax.random.normal(km, (cout,), jnp.float32)
            rvar = jax.random.uniform(kv, (cout,), jnp.float32, 0.5, 1.5)
            scale = gamma / jnp.sqrt(rvar + BN_EPS)
            shift = beta - rmean * scale
        else:
            scale = jnp.ones((cout,), jnp.float32)
            shift = jnp.zeros((cout,), jnp.float32)
        params.append(dict(w=w, scale=scale, shift=shift, act=has_act))
    return params


# Pure-JAX f32 reference with identical math (for correctness check only).
def _im2col_1d(x, kernel=4, stride=2, pad=1):
    B, C, L = x.shape
    L_out = (L + 2 * pad - kernel) // stride + 1
    x_pad = jnp.pad(x, ((0, 0), (0, 0), (pad, pad)))
    idx = jnp.arange(L_out)[:, None] * stride + jnp.arange(kernel)[None, :]
    patches = x_pad[:, :, idx]                        # (B, C, L_out, K)
    patches = jnp.transpose(patches, (0, 2, 1, 3))    # (B, L_out, C, K)
    return patches.reshape(B * L_out, C * kernel), B, L_out


def reference_forward(x, params):
    h = jnp.transpose(x, (0, 2, 1))
    for p in params:
        patches, B, L_out = _im2col_1d(h)
        cout = p["w"].shape[0]
        w_mat = p["w"].reshape(cout, -1).T
        y = patches @ w_mat
        y = y * p["scale"][None, :] + p["shift"][None, :]
        if p["act"]:
            y = jnp.where(y > 0.0, y, NEG_SLOPE * y)
        h = jnp.transpose(y.reshape(B, L_out, cout), (0, 2, 1))
    return h[..., 0]


if __name__ == "__main__":
    key = jax.random.PRNGKey(0)
    kx, kp = jax.random.split(key)

    # maxlen=32 -> T must be 32 so the 5 stride-2 convs reduce the length to 1.
    B, T, d = 16, 32, 2
    bt = 8                                  # 2 grid steps -> both v7x TensorCores busy
    x = jax.random.normal(kx, (B, T, d), jnp.float32)
    raw_params = build_layers(kp, maxlen=32, input_dim=2, out_channel=32)
    w_list, s_list, specs = prepare_params(raw_params, seq_len=T)

    out = conv1d_baseline_forward(x, w_list, s_list, specs=specs, bt=bt)
    out = jax.block_until_ready(out)

    ref = reference_forward(x, raw_params)
    assert out.shape == (B, 32), out.shape
    # bf16 matmul inputs (f32 accumulate): compare with a scale-relative tolerance.
    err = float(jnp.max(jnp.abs(out - ref)) / jnp.maximum(jnp.max(jnp.abs(ref)), 1.0))
    assert err < 5e-2, f"mismatch vs reference: rel-err {err:.4f}"

    print("KERNEL_OK")
</pallas_src>

<mosaic_0001>
module attributes {stable_mosaic.version = 11 : i64} {
  func.func @_fused_trunk_kernel(%arg0: i32, %arg1: memref<32x8x2xf32, #tpu.memory_space<vmem>>, %arg2: memref<8x48xbf16, #tpu.memory_space<vmem>>, %arg3: memref<192x96xbf16, #tpu.memory_space<vmem>>, %arg4: memref<384x192xbf16, #tpu.memory_space<vmem>>, %arg5: memref<768x384xbf16, #tpu.memory_space<vmem>>, %arg6: memref<1536x32xbf16, #tpu.memory_space<vmem>>, %arg7: memref<1x48xf32, #tpu.memory_space<vmem>>, %arg8: memref<1x96xf32, #tpu.memory_space<vmem>>, %arg9: memref<1x192xf32, #tpu.memory_space<vmem>>, %arg10: memref<1x384xf32, #tpu.memory_space<vmem>>, %arg11: memref<1x32xf32, #tpu.memory_space<vmem>>, %arg12: memref<8x32xf32, #tpu.memory_space<vmem>>) attributes {dimension_semantics = [#tpu.dimension_semantics<parallel>], iteration_bounds = array<i64: 2>, scalar_prefetch = 0 : i64, scratch_operands = 0 : i64, tpu.core_type = #tpu.core_type<tc>, window_params = [{transform_indices = @transform_0, window_bounds = array<i64: 32, 8, 2>}, {pipeline_mode = #tpu.pipeline_mode<synchronous>, transform_indices = @transform_1, window_bounds = array<i64: 8, 48>}, {pipeline_mode = #tpu.pipeline_mode<synchronous>, transform_indices = @transform_2, window_bounds = array<i64: 192, 96>}, {pipeline_mode = #tpu.pipeline_mode<synchronous>, transform_indices = @transform_3, window_bounds = array<i64: 384, 192>}, {pipeline_mode = #tpu.pipeline_mode<synchronous>, transform_indices = @transform_4, window_bounds = array<i64: 768, 384>}, {pipeline_mode = #tpu.pipeline_mode<synchronous>, transform_indices = @transform_5, window_bounds = array<i64: 1536, 32>}, {pipeline_mode = #tpu.pipeline_mode<synchronous>, transform_indices = @transform_6, window_bounds = array<i64: 1, 48>}, {pipeline_mode = #tpu.pipeline_mode<synchronous>, transform_indices = @transform_7, window_bounds = array<i64: 1, 96>}, {pipeline_mode = #tpu.pipeline_mode<synchronous>, transform_indices = @transform_8, window_bounds = array<i64: 1, 192>}, {pipeline_mode = #tpu.pipeline_mode<synchronous>, transform_indices = @transform_9, window_bounds = array<i64: 1, 384>}, {pipeline_mode = #tpu.pipeline_mode<synchronous>, transform_indices = @transform_10, window_bounds = array<i64: 1, 32>}, {transform_indices = @transform_11, window_bounds = array<i64: 8, 32>}]} {
    %c0 = arith.constant 0 : index
    %c0_0 = arith.constant 0 : index
    %c0_1 = arith.constant 0 : index
    %0 = vector.load %arg1[%c0, %c0_0, %c0_1] : memref<32x8x2xf32, #tpu.memory_space<vmem>>, vector<32x8x2xf32>
    %cst = arith.constant 0.000000e+00 : f32
    %1 = vector.broadcast %cst : f32 to vector<1x8x2xf32>
    %2 = tpu.concatenate %1, %0, %1 in 0 : vector<1x8x2xf32>, vector<32x8x2xf32>, vector<1x8x2xf32> -> vector<34x8x2xf32>
    %3 = vector.shape_cast %2 : vector<34x8x2xf32> to vector<17x2x8x2xf32>
    %4 = vector.extract_strided_slice %3 {offsets = [0, 0, 0, 0], sizes = [16, 1, 8, 2], strides = [1, 1, 1, 1]} : vector<17x2x8x2xf32> to vector<16x1x8x2xf32>
    %5 = vector.shape_cast %4 : vector<16x1x8x2xf32> to vector<16x8x2xf32>
    %6 = vector.extract_strided_slice %3 {offsets = [0, 1, 0, 0], sizes = [16, 1, 8, 2], strides = [1, 1, 1, 1]} : vector<17x2x8x2xf32> to vector<16x1x8x2xf32>
    %7 = vector.shape_cast %6 : vector<16x1x8x2xf32> to vector<16x8x2xf32>
    %8 = vector.extract_strided_slice %3 {offsets = [1, 0, 0, 0], sizes = [16, 1, 8, 2], strides = [1, 1, 1, 1]} : vector<17x2x8x2xf32> to vector<16x1x8x2xf32>
    %9 = vector.shape_cast %8 : vector<16x1x8x2xf32> to vector<16x8x2xf32>
    %10 = vector.extract_strided_slice %3 {offsets = [1, 1, 0, 0], sizes = [16, 1, 8, 2], strides = [1, 1, 1, 1]} : vector<17x2x8x2xf32> to vector<16x1x8x2xf32>
    %11 = vector.shape_cast %10 : vector<16x1x8x2xf32> to vector<16x8x2xf32>
    %12 = tpu.concatenate %5, %7, %9, %11 in 2 : vector<16x8x2xf32>, vector<16x8x2xf32>, vector<16x8x2xf32>, vector<16x8x2xf32> -> vector<16x8x8xf32>
    %13 = vector.shape_cast %12 : vector<16x8x8xf32> to vector<128x8xf32>
    %14 = arith.truncf %13 : vector<128x8xf32> to vector<128x8xbf16>
    %c0_2 = arith.constant 0 : index
    %c0_3 = arith.constant 0 : index
    %15 = vector.load %arg2[%c0_2, %c0_3] : memref<8x48xbf16, #tpu.memory_space<vmem>>, vector<8x48xbf16>
    %cst_4 = arith.constant dense<0.000000e+00> : vector<128x48xf32>
    %16 = tpu.matmul %14, %15, %cst_4 {dimension_numbers = #tpu.dot_dimension_numbers<[1], [0], [0], [1], [0, 0, 1, 1], [], []>} : vector<128x8xbf16>, vector<8x48xbf16>, vector<128x48xf32> -> vector<128x48xf32>
    %c0_5 = arith.constant 0 : index
    %c0_6 = arith.constant 0 : index
    %17 = vector.load %arg7[%c0_5, %c0_6] : memref<1x48xf32, #tpu.memory_space<vmem>>, vector<1x48xf32>
    %18 = vector.broadcast %17 : vector<1x48xf32> to vector<128x48xf32>
    %19 = arith.addf %16, %18 : vector<128x48xf32>
    %cst_7 = arith.constant 0.000000e+00 : f32
    %20 = vector.broadcast %cst_7 : f32 to vector<128x48xf32>
    %21 = arith.cmpf ogt, %19, %20 : vector<128x48xf32>
    %cst_8 = arith.constant 0.00999999977 : f32
    %22 = vector.broadcast %cst_8 : f32 to vector<128x48xf32>
    %23 = arith.mulf %22, %19 : vector<128x48xf32>
    %24 = arith.select %21, %19, %23 : vector<128x48xi1>, vector<128x48xf32>
    %25 = vector.shape_cast %24 : vector<128x48xf32> to vector<16x8x48xf32>
    %cst_9 = arith.constant 0.000000e+00 : f32
    %26 = vector.broadcast %cst_9 : f32 to vector<1x8x48xf32>
    %27 = tpu.concatenate %26, %25, %26 in 0 : vector<1x8x48xf32>, vector<16x8x48xf32>, vector<1x8x48xf32> -> vector<18x8x48xf32>
    %28 = vector.shape_cast %27 : vector<18x8x48xf32> to vector<9x2x8x48xf32>
    %29 = vector.extract_strided_slice %28 {offsets = [0, 0, 0, 0], sizes = [8, 1, 8, 48], strides = [1, 1, 1, 1]} : vector<9x2x8x48xf32> to vector<8x1x8x48xf32>
    %30 = vector.shape_cast %29 : vector<8x1x8x48xf32> to vector<8x8x48xf32>
    %31 = vector.extract_strided_slice %28 {offsets = [0, 1, 0, 0], sizes = [8, 1, 8, 48], strides = [1, 1, 1, 1]} : vector<9x2x8x48xf32> to vector<8x1x8x48xf32>
    %32 = vector.shape_cast %31 : vector<8x1x8x48xf32> to vector<8x8x48xf32>
    %33 = vector.extract_strided_slice %28 {offsets = [1, 0, 0, 0], sizes = [8, 1, 8, 48], strides = [1, 1, 1, 1]} : vector<9x2x8x48xf32> to vector<8x1x8x48xf32>
    %34 = vector.shape_cast %33 : vector<8x1x8x48xf32> to vector<8x8x48xf32>
    %35 = vector.extract_strided_slice %28 {offsets = [1, 1, 0, 0], sizes = [8, 1, 8, 48], strides = [1, 1, 1, 1]} : vector<9x2x8x48xf32> to vector<8x1x8x48xf32>
    %36 = vector.shape_cast %35 : vector<8x1x8x48xf32> to vector<8x8x48xf32>
    %37 = tpu.concatenate %30, %32, %34, %36 in 2 : vector<8x8x48xf32>, vector<8x8x48xf32>, vector<8x8x48xf32>, vector<8x8x48xf32> -> vector<8x8x192xf32>
    %38 = vector.shape_cast %37 : vector<8x8x192xf32> to vector<64x192xf32>
    %39 = arith.truncf %38 : vector<64x192xf32> to vector<64x192xbf16>
    %c0_10 = arith.constant 0 : index
    %c0_11 = arith.constant 0 : index
    %40 = vector.load %arg3[%c0_10, %c0_11] : memref<192x96xbf16, #tpu.memory_space<vmem>>, vector<192x96xbf16>
    %cst_12 = arith.constant dense<0.000000e+00> : vector<64x96xf32>
    %41 = tpu.matmul %39, %40, %cst_12 {dimension_numbers = #tpu.dot_dimension_numbers<[1], [0], [0], [1], [0, 0, 1, 1], [], []>} : vector<64x192xbf16>, vector<192x96xbf16>, vector<64x96xf32> -> vector<64x96xf32>
    %c0_13 = arith.constant 0 : index
    %c0_14 = arith.constant 0 : index
    %42 = vector.load %arg8[%c0_13, %c0_14] : memref<1x96xf32, #tpu.memory_space<vmem>>, vector<1x96xf32>
    %43 = vector.broadcast %42 : vector<1x96xf32> to vector<64x96xf32>
    %44 = arith.addf %41, %43 : vector<64x96xf32>
    %cst_15 = arith.constant 0.000000e+00 : f32
    %45 = vector.broadcast %cst_15 : f32 to vector<64x96xf32>
    %46 = arith.cmpf ogt, %44, %45 : vector<64x96xf32>
    %cst_16 = arith.constant 0.00999999977 : f32
    %47 = vector.broadcast %cst_16 : f32 to vector<64x96xf32>
    %48 = arith.mulf %47, %44 : vector<64x96xf32>
    %49 = arith.select %46, %44, %48 : vector<64x96xi1>, vector<64x96xf32>
    %50 = vector.shape_cast %49 : vector<64x96xf32> to vector<8x8x96xf32>
    %cst_17 = arith.constant 0.000000e+00 : f32
    %51 = vector.broadcast %cst_17 : f32 to vector<1x8x96xf32>
    %52 = tpu.concatenate %51, %50, %51 in 0 : vector<1x8x96xf32>, vector<8x8x96xf32>, vector<1x8x96xf32> -> vector<10x8x96xf32>
    %53 = vector.shape_cast %52 : vector<10x8x96xf32> to vector<5x2x8x96xf32>
    %54 = vector.extract_strided_slice %53 {offsets = [0, 0, 0, 0], sizes = [4, 1, 8, 96], strides = [1, 1, 1, 1]} : vector<5x2x8x96xf32> to vector<4x1x8x96xf32>
    %55 = vector.shape_cast %54 : vector<4x1x8x96xf32> to vector<4x8x96xf32>
    %56 = vector.extract_strided_slice %53 {offsets = [0, 1, 0, 0], sizes = [4, 1, 8, 96], strides = [1, 1, 1, 1]} : vector<5x2x8x96xf32> to vector<4x1x8x96xf32>
    %57 = vector.shape_cast %56 : vector<4x1x8x96xf32> to vector<4x8x96xf32>
    %58 = vector.extract_strided_slice %53 {offsets = [1, 0, 0, 0], sizes = [4, 1, 8, 96], strides = [1, 1, 1, 1]} : vector<5x2x8x96xf32> to vector<4x1x8x96xf32>
    %59 = vector.shape_cast %58 : vector<4x1x8x96xf32> to vector<4x8x96xf32>
    %60 = vector.extract_strided_slice %53 {offsets = [1, 1, 0, 0], sizes = [4, 1, 8, 96], strides = [1, 1, 1, 1]} : vector<5x2x8x96xf32> to vector<4x1x8x96xf32>
    %61 = vector.shape_cast %60 : vector<4x1x8x96xf32> to vector<4x8x96xf32>
    %62 = tpu.concatenate %55, %57, %59, %61 in 2 : vector<4x8x96xf32>, vector<4x8x96xf32>, vector<4x8x96xf32>, vector<4x8x96xf32> -> vector<4x8x384xf32>
    %63 = vector.shape_cast %62 : vector<4x8x384xf32> to vector<32x384xf32>
    %64 = arith.truncf %63 : vector<32x384xf32> to vector<32x384xbf16>
    %c0_18 = arith.constant 0 : index
    %c0_19 = arith.constant 0 : index
    %65 = vector.load %arg4[%c0_18, %c0_19] : memref<384x192xbf16, #tpu.memory_space<vmem>>, vector<384x192xbf16>
    %cst_20 = arith.constant dense<0.000000e+00> : vector<32x192xf32>
    %66 = tpu.matmul %64, %65, %cst_20 {dimension_numbers = #tpu.dot_dimension_numbers<[1], [0], [0], [1], [0, 0, 1, 1], [], []>} : vector<32x384xbf16>, vector<384x192xbf16>, vector<32x192xf32> -> vector<32x192xf32>
    %c0_21 = arith.constant 0 : index
    %c0_22 = arith.constant 0 : index
    %67 = vector.load %arg9[%c0_21, %c0_22] : memref<1x192xf32, #tpu.memory_space<vmem>>, vector<1x192xf32>
    %68 = vector.broadcast %67 : vector<1x192xf32> to vector<32x192xf32>
    %69 = arith.addf %66, %68 : vector<32x192xf32>
    %cst_23 = arith.constant 0.000000e+00 : f32
    %70 = vector.broadcast %cst_23 : f32 to vector<32x192xf32>
    %71 = arith.cmpf ogt, %69, %70 : vector<32x192xf32>
    %cst_24 = arith.constant 0.00999999977 : f32
    %72 = vector.broadcast %cst_24 : f32 to vector<32x192xf32>
    %73 = arith.mulf %72, %69 : vector<32x192xf32>
    %74 = arith.select %71, %69, %73 : vector<32x192xi1>, vector<32x192xf32>
    %75 = vector.shape_cast %74 : vector<32x192xf32> to vector<4x8x192xf32>
    %cst_25 = arith.constant 0.000000e+00 : f32
    %76 = vector.broadcast %cst_25 : f32 to vector<1x8x192xf32>
    %77 = tpu.concatenate %76, %75, %76 in 0 : vector<1x8x192xf32>, vector<4x8x192xf32>, vector<1x8x192xf32> -> vector<6x8x192xf32>
    %78 = vector.shape_cast %77 : vector<6x8x192xf32> to vector<3x2x8x192xf32>
    %79 = vector.extract_strided_slice %78 {offsets = [0, 0, 0, 0], sizes = [2, 1, 8, 192], strides = [1, 1, 1, 1]} : vector<3x2x8x192xf32> to vector<2x1x8x192xf32>
    %80 = vector.shape_cast %79 : vector<2x1x8x192xf32> to vector<2x8x192xf32>
    %81 = vector.extract_strided_slice %78 {offsets = [0, 1, 0, 0], sizes = [2, 1, 8, 192], strides = [1, 1, 1, 1]} : vector<3x2x8x192xf32> to vector<2x1x8x192xf32>
    %82 = vector.shape_cast %81 : vector<2x1x8x192xf32> to vector<2x8x192xf32>
    %83 = vector.extract_strided_slice %78 {offsets = [1, 0, 0, 0], sizes = [2, 1, 8, 192], strides = [1, 1, 1, 1]} : vector<3x2x8x192xf32> to vector<2x1x8x192xf32>
    %84 = vector.shape_cast %83 : vector<2x1x8x192xf32> to vector<2x8x192xf32>
    %85 = vector.extract_strided_slice %78 {offsets = [1, 1, 0, 0], sizes = [2, 1, 8, 192], strides = [1, 1, 1, 1]} : vector<3x2x8x192xf32> to vector<2x1x8x192xf32>
    %86 = vector.shape_cast %85 : vector<2x1x8x192xf32> to vector<2x8x192xf32>
    %87 = tpu.concatenate %80, %82, %84, %86 in 2 : vector<2x8x192xf32>, vector<2x8x192xf32>, vector<2x8x192xf32>, vector<2x8x192xf32> -> vector<2x8x768xf32>
    %88 = vector.shape_cast %87 : vector<2x8x768xf32> to vector<16x768xf32>
    %89 = arith.truncf %88 : vector<16x768xf32> to vector<16x768xbf16>
    %c0_26 = arith.constant 0 : index
    %c0_27 = arith.constant 0 : index
    %90 = vector.load %arg5[%c0_26, %c0_27] : memref<768x384xbf16, #tpu.memory_space<vmem>>, vector<768x384xbf16>
    %cst_28 = arith.constant dense<0.000000e+00> : vector<16x384xf32>
    %91 = tpu.matmul %89, %90, %cst_28 {dimension_numbers = #tpu.dot_dimension_numbers<[1], [0], [0], [1], [0, 0, 1, 1], [], []>} : vector<16x768xbf16>, vector<768x384xbf16>, vector<16x384xf32> -> vector<16x384xf32>
    %c0_29 = arith.constant 0 : index
    %c0_30 = arith.constant 0 : index
    %92 = vector.load %arg10[%c0_29, %c0_30] : memref<1x384xf32, #tpu.memory_space<vmem>>, vector<1x384xf32>
    %93 = vector.broadcast %92 : vector<1x384xf32> to vector<16x384xf32>
    %94 = arith.addf %91, %93 : vector<16x384xf32>
    %cst_31 = arith.constant 0.000000e+00 : f32
    %95 = vector.broadcast %cst_31 : f32 to vector<16x384xf32>
    %96 = arith.cmpf ogt, %94, %95 : vector<16x384xf32>
    %cst_32 = arith.constant 0.00999999977 : f32
    %97 = vector.broadcast %cst_32 : f32 to vector<16x384xf32>
    %98 = arith.mulf %97, %94 : vector<16x384xf32>
    %99 = arith.select %96, %94, %98 : vector<16x384xi1>, vector<16x384xf32>
    %100 = vector.shape_cast %99 : vector<16x384xf32> to vector<2x8x384xf32>
    %cst_33 = arith.constant 0.000000e+00 : f32
    %101 = vector.broadcast %cst_33 : f32 to vector<1x8x384xf32>
    %102 = tpu.concatenate %101, %100, %101 in 0 : vector<1x8x384xf32>, vector<2x8x384xf32>, vector<1x8x384xf32> -> vector<4x8x384xf32>
    %103 = vector.shape_cast %102 : vector<4x8x384xf32> to vector<2x2x8x384xf32>
    %104 = vector.extract_strided_slice %103 {offsets = [0, 0, 0, 0], sizes = [1, 1, 8, 384], strides = [1, 1, 1, 1]} : vector<2x2x8x384xf32> to vector<1x1x8x384xf32>
    %105 = vector.shape_cast %104 : vector<1x1x8x384xf32> to vector<1x8x384xf32>
    %106 = vector.extract_strided_slice %103 {offsets = [0, 1, 0, 0], sizes = [1, 1, 8, 384], strides = [1, 1, 1, 1]} : vector<2x2x8x384xf32> to vector<1x1x8x384xf32>
    %107 = vector.shape_cast %106 : vector<1x1x8x384xf32> to vector<1x8x384xf32>
    %108 = vector.extract_strided_slice %103 {offsets = [1, 0, 0, 0], sizes = [1, 1, 8, 384], strides = [1, 1, 1, 1]} : vector<2x2x8x384xf32> to vector<1x1x8x384xf32>
    %109 = vector.shape_cast %108 : vector<1x1x8x384xf32> to vector<1x8x384xf32>
    %110 = vector.extract_strided_slice %103 {offsets = [1, 1, 0, 0], sizes = [1, 1, 8, 384], strides = [1, 1, 1, 1]} : vector<2x2x8x384xf32> to vector<1x1x8x384xf32>
    %111 = vector.shape_cast %110 : vector<1x1x8x384xf32> to vector<1x8x384xf32>
    %112 = tpu.concatenate %105, %107, %109, %111 in 2 : vector<1x8x384xf32>, vector<1x8x384xf32>, vector<1x8x384xf32>, vector<1x8x384xf32> -> vector<1x8x1536xf32>
    %113 = vector.shape_cast %112 : vector<1x8x1536xf32> to vector<8x1536xf32>
    %114 = arith.truncf %113 : vector<8x1536xf32> to vector<8x1536xbf16>
    %c0_34 = arith.constant 0 : index
    %c0_35 = arith.constant 0 : index
    %115 = vector.load %arg6[%c0_34, %c0_35] : memref<1536x32xbf16, #tpu.memory_space<vmem>>, vector<1536x32xbf16>
    %cst_36 = arith.constant dense<0.000000e+00> : vector<8x32xf32>
    %116 = tpu.matmul %114, %115, %cst_36 {dimension_numbers = #tpu.dot_dimension_numbers<[1], [0], [0], [1], [0, 0, 1, 1], [], []>} : vector<8x1536xbf16>, vector<1536x32xbf16>, vector<8x32xf32> -> vector<8x32xf32>
    %c0_37 = arith.constant 0 : index
    %c0_38 = arith.constant 0 : index
    %117 = vector.load %arg11[%c0_37, %c0_38] : memref<1x32xf32, #tpu.memory_space<vmem>>, vector<1x32xf32>
    %118 = vector.broadcast %117 : vector<1x32xf32> to vector<8x32xf32>
    %119 = arith.addf %116, %118 : vector<8x32xf32>
    %120 = vector.shape_cast %119 : vector<8x32xf32> to vector<1x8x32xf32>
    %121 = vector.shape_cast %120 : vector<1x8x32xf32> to vector<8x32xf32>
    %c0_39 = arith.constant 0 : index
    %c0_40 = arith.constant 0 : index
    %122 = vector.load %arg12[%c0_39, %c0_40] : memref<8x32xf32, #tpu.memory_space<vmem>>, vector<8x32xf32>
    tpu.vector_store %arg12[%c0_39, %c0_40], %121 {strides = array<i32>} : memref<8x32xf32, #tpu.memory_space<vmem>>, vector<8x32xf32>,
    return
  }
  func.func @transform_0(%arg0: i32) -> (i32, i32, i32) {
    %c0_i32 = arith.constant 0 : i32
    %c0_i32_0 = arith.constant 0 : i32
    %c0_i32_1 = arith.constant 0 : i32
    return %c0_i32, %arg0, %c0_i32_0 : i32, i32, i32
  }
  func.func @transform_1(%arg0: i32) -> (i32, i32) {
    %c0_i32 = arith.constant 0 : i32
    %c0_i32_0 = arith.constant 0 : i32
    %c0_i32_1 = arith.constant 0 : i32
    return %c0_i32, %c0_i32_0 : i32, i32
  }
  func.func @transform_2(%arg0: i32) -> (i32, i32) {
    %c0_i32 = arith.constant 0 : i32
    %c0_i32_0 = arith.constant 0 : i32
    %c0_i32_1 = arith.constant 0 : i32
    return %c0_i32, %c0_i32_0 : i32, i32
  }
  func.func @transform_3(%arg0: i32) -> (i32, i32) {
    %c0_i32 = arith.constant 0 : i32
    %c0_i32_0 = arith.constant 0 : i32
    %c0_i32_1 = arith.constant 0 : i32
    return %c0_i32, %c0_i32_0 : i32, i32
  }
  func.func @transform_4(%arg0: i32) -> (i32, i32) {
    %c0_i32 = arith.constant 0 : i32
    %c0_i32_0 = arith.constant 0 : i32
    %c0_i32_1 = arith.constant 0 : i32
    return %c0_i32, %c0_i32_0 : i32, i32
  }
  func.func @transform_5(%arg0: i32) -> (i32, i32) {
    %c0_i32 = arith.constant 0 : i32
    %c0_i32_0 = arith.constant 0 : i32
    %c0_i32_1 = arith.constant 0 : i32
    return %c0_i32, %c0_i32_0 : i32, i32
  }
  func.func @transform_6(%arg0: i32) -> (i32, i32) {
    %c0_i32 = arith.constant 0 : i32
    %c0_i32_0 = arith.constant 0 : i32
    %c0_i32_1 = arith.constant 0 : i32
    return %c0_i32, %c0_i32_0 : i32, i32
  }
  func.func @transform_7(%arg0: i32) -> (i32, i32) {
    %c0_i32 = arith.constant 0 : i32
    %c0_i32_0 = arith.constant 0 : i32
    %c0_i32_1 = arith.constant 0 : i32
    return %c0_i32, %c0_i32_0 : i32, i32
  }
  func.func @transform_8(%arg0: i32) -> (i32, i32) {
    %c0_i32 = arith.constant 0 : i32
    %c0_i32_0 = arith.constant 0 : i32
    %c0_i32_1 = arith.constant 0 : i32
    return %c0_i32, %c0_i32_0 : i32, i32
  }
  func.func @transform_9(%arg0: i32) -> (i32, i32) {
    %c0_i32 = arith.constant 0 : i32
    %c0_i32_0 = arith.constant 0 : i32
    %c0_i32_1 = arith.constant 0 : i32
    return %c0_i32, %c0_i32_0 : i32, i32
  }
  func.func @transform_10(%arg0: i32) -> (i32, i32) {
    %c0_i32 = arith.constant 0 : i32
    %c0_i32_0 = arith.constant 0 : i32
    %c0_i32_1 = arith.constant 0 : i32
    return %c0_i32, %c0_i32_0 : i32, i32
  }
  func.func @transform_11(%arg0: i32) -> (i32, i32) {
    %c0_i32 = arith.constant 0 : i32
    %c0_i32_0 = arith.constant 0 : i32
    return %arg0, %c0_i32 : i32, i32
  }
}

</mosaic_0001>

<llo_original>
// kernel: conv1d_baseline_forward.1
$region0: #{conv1d_baseline_forward.1}
  #allocation0 [shape = 'u32[]', space=smem, size = 0x4, offset = 0x4, fixed_abs, tag = 'smem constant byte address 0x4 - core index']
  #allocation1 [shape = 'u32[144,128]{1,0:T(1,128)}', space=vmem, size = 0x12000, scoped, tag = 'internal scratch']
  %s0 = inlined_call_operand.vmem [shape: f32[32,16,2], index: 0, kind: input, shape index: {}]
  %s1 = inlined_call_operand.vmem [shape: bf16[8,48], index: 1, kind: input, shape index: {}]
  %s2 = inlined_call_operand.vmem [shape: bf16[192,96], index: 2, kind: input, shape index: {}]
  %s3 = inlined_call_operand.vmem [shape: bf16[384,192], index: 3, kind: input, shape index: {}]
  %s4 = inlined_call_operand.vmem [shape: bf16[768,384], index: 4, kind: input, shape index: {}]
  %s5 = inlined_call_operand.vmem [shape: bf16[1536,32], index: 5, kind: input, shape index: {}]
  %s6 = inlined_call_operand.vmem [shape: f32[1,48], index: 6, kind: input, shape index: {}]
  %s7 = inlined_call_operand.vmem [shape: f32[1,96], index: 7, kind: input, shape index: {}]
  %s8 = inlined_call_operand.vmem [shape: f32[1,192], index: 8, kind: input, shape index: {}]
  %s9 = inlined_call_operand.vmem [shape: f32[1,384], index: 9, kind: input, shape index: {}]
  %s10 = inlined_call_operand.vmem [shape: f32[1,32], index: 10, kind: input, shape index: {}]
  %s11 = inlined_call_operand.hbm [shape: f32[16,32], index: 11, kind: output, shape index: {}]
  %s12 = sld [smem:[#allocation0]]
  $region115: #{conv1d_baseline_forward.1} parent=0
    _
  %s14 = ssub.s32 1, %s12
  %s15 = scalar_select 0, %s14, %s12
  $region1: #{conv1d_baseline_forward.1} parent=0
    #allocation2 [shape = 'u8[262144]{0}', space=vmem, size = 0x40000, scoped, tag = 'input window, operand 0']
    #allocation3 [shape = 'u8[8192]{0}', space=vmem, size = 0x2000, scoped, tag = 'output window, operand 0']
    #allocation4 [shape = 's32[2]{0}', space=sflag, size = 0x8, scoped, tag = 'scoped memory for conv1d_baseline_forward.1']
    %16 = vsyncpa [#allocation4], 0
    %s17 = scalar_lea.sflag [#allocation4], 1
    %18 = vsyncpa %s17, 0
    loop: start=0, step=1, limit=4
    $region2: #{conv1d_baseline_forward.1} parent=1 // loop_pre_header
      _
    $region3: #{conv1d_baseline_forward.1} parent=1 // loop_header
      %s20 = sphi 0, %s24
      %p21 = scmp.ge.s32.totalorder %s20, 4
      %s30 = sphi 0, %s32
      %s33 = sphi 0, %s30
      %s34 = sphi 0, %s33
      %s50 = sphi 0, %s34
      %s54 = sphi 0, %s54
      %s56 = sphi 0, %s54
      %s57 = sphi 0, %s56
      %s71 = sphi 0, %s57
      %s75 = sphi 0, %s75
      %s77 = sphi 0, %s75
      %s78 = sphi 0, %s77
      %s92 = sphi 0, %s78
      %s96 = sphi 0, %s96
      %s98 = sphi 0, %s96
      %s99 = sphi 0, %s98
      %s113 = sphi 0, %s99
      %s117 = sphi 0, %s117
      %s119 = sphi 0, %s117
      %s120 = sphi 0, %s119
      %s134 = sphi 0, %s120
      %s138 = sphi 0, %s138
      %s140 = sphi 0, %s138
      %s141 = sphi 0, %s140
      %s155 = sphi 0, %s141
      %s159 = sphi 0, %s159
      %s161 = sphi 0, %s159
      %s162 = sphi 0, %s161
      %s176 = sphi 0, %s162
      %s180 = sphi 0, %s180
      %s182 = sphi 0, %s180
      %s183 = sphi 0, %s182
      %s197 = sphi 0, %s183
      %s201 = sphi 0, %s201
      %s203 = sphi 0, %s201
      %s204 = sphi 0, %s203
      %s218 = sphi 0, %s204
      %s222 = sphi 0, %s222
      %s224 = sphi 0, %s222
      %s225 = sphi 0, %s224
      %s239 = sphi 0, %s225
      %s243 = sphi 0, %s243
      %s245 = sphi 0, %s243
      %s246 = sphi 0, %s245
      %s260 = sphi 0, %s246
      %s266 = sphi 0, %s268
      %s269 = sphi 0, %s266
      %s270 = sphi 0, %s269
      %s286 = sphi 0, %s270
    $region4: #{conv1d_baseline_forward.1} parent=1 // loop_header_branch
      %23 = sbr.rel (%p21) target = $region8
    $region5: #{conv1d_baseline_forward.1} parent=1 // loop_body
      %s25 = ssub.s32 %s20, 1
      %s26 = ssub.s32 %s20, 2
      %s27 = sadd.s32 %s20, 1
      %s28 = ssub.s32 %s20, %s27
      %p29 = scmp.eq.s32.totalorder %s28, 0
      %s31 = sadd.s32 %s30, 1
      %s32 = scalar_select %p29, %s30, %s31
      %p35 = pneg %p29
      %p36 = scmp.eq.s32.totalorder %s20, 1
      %p37 = por %p35, %p36
      %p38 = scmp.ne.s32.totalorder %s30, %s33
      %p39 = scmp.eq.s32.totalorder %s20, 0
      %p40 = por %p38, %p39
      %p41 = scmp.ne.s32.totalorder %s30, %s33
      %p42 = scmp.eq.s32.totalorder %s25, 1
      %p43 = por %p41, %p42
      %p44 = scmp.ne.s32.totalorder %s33, %s34
      %p45 = scmp.eq.s32.totalorder %s25, 0
      %p46 = por %p44, %p45
      %p47 = scmp.ne.s32.totalorder %s33, %s34
      %p48 = scmp.eq.s32.totalorder %s26, 1
      %p49 = por %p47, %p48
      %p51 = scmp.ne.s32.totalorder %s34, %s50
      %p52 = scmp.eq.s32.totalorder %s26, 0
      %p53 = por %p51, %p52
      %s55 = sadd.s32 %s54, 1
      %p58 = scmp.eq.s32.totalorder %s20, 1
      %p59 = scmp.ne.s32.totalorder %s54, %s56
      %p60 = scmp.eq.s32.totalorder %s20, 0
      %p61 = por %p59, %p60
      %p62 = scmp.ne.s32.totalorder %s54, %s56
      %p63 = scmp.eq.s32.totalorder %s25, 1
      %p64 = por %p62, %p63
      %p65 = scmp.ne.s32.totalorder %s56, %s57
      %p66 = scmp.eq.s32.totalorder %s25, 0
      %p67 = por %p65, %p66
      %p68 = scmp.ne.s32.totalorder %s56, %s57
      %p69 = scmp.eq.s32.totalorder %s26, 1
      %p70 = por %p68, %p69
      %p72 = scmp.ne.s32.totalorder %s57, %s71
      %p73 = scmp.eq.s32.totalorder %s26, 0
      %p74 = por %p72, %p73
      %s76 = sadd.s32 %s75, 1
      %p79 = scmp.eq.s32.totalorder %s20, 1
      %p80 = scmp.ne.s32.totalorder %s75, %s77
      %p81 = scmp.eq.s32.totalorder %s20, 0
      %p82 = por %p80, %p81
      %p83 = scmp.ne.s32.totalorder %s75, %s77
      %p84 = scmp.eq.s32.totalorder %s25, 1
      %p85 = por %p83, %p84
      %p86 = scmp.ne.s32.totalorder %s77, %s78
      %p87 = scmp.eq.s32.totalorder %s25, 0
      %p88 = por %p86, %p87
      %p89 = scmp.ne.s32.totalorder %s77, %s78
      %p90 = scmp.eq.s32.totalorder %s26, 1
      %p91 = por %p89, %p90
      %p93 = scmp.ne.s32.totalorder %s78, %s92
      %p94 = scmp.eq.s32.totalorder %s26, 0
      %p95 = por %p93, %p94
      %s97 = sadd.s32 %s96, 1
      %p100 = scmp.eq.s32.totalorder %s20, 1
      %p101 = scmp.ne.s32.totalorder %s96, %s98
      %p102 = scmp.eq.s32.totalorder %s20, 0
      %p103 = por %p101, %p102
      %p104 = scmp.ne.s32.totalorder %s96, %s98
      %p105 = scmp.eq.s32.totalorder %s25, 1
      %p106 = por %p104, %p105
      %p107 = scmp.ne.s32.totalorder %s98, %s99
      %p108 = scmp.eq.s32.totalorder %s25, 0
      %p109 = por %p107, %p108
      %p110 = scmp.ne.s32.totalorder %s98, %s99
      %p111 = scmp.eq.s32.totalorder %s26, 1
      %p112 = por %p110, %p111
      %p114 = scmp.ne.s32.totalorder %s99, %s113
      %p115 = scmp.eq.s32.totalorder %s26, 0
      %p116 = por %p114, %p115
      %s118 = sadd.s32 %s117, 1
      %p121 = scmp.eq.s32.totalorder %s20, 1
      %p122 = scmp.ne.s32.totalorder %s117, %s119
      %p123 = scmp.eq.s32.totalorder %s20, 0
      %p124 = por %p122, %p123
      %p125 = scmp.ne.s32.totalorder %s117, %s119
      %p126 = scmp.eq.s32.totalorder %s25, 1
      %p127 = por %p125, %p126
      %p128 = scmp.ne.s32.totalorder %s119, %s120
      %p129 = scmp.eq.s32.totalorder %s25, 0
      %p130 = por %p128, %p129
      %p131 = scmp.ne.s32.totalorder %s119, %s120
      %p132 = scmp.eq.s32.totalorder %s26, 1
      %p133 = por %p131, %p132
      %p135 = scmp.ne.s32.totalorder %s120, %s134
      %p136 = scmp.eq.s32.totalorder %s26, 0
      %p137 = por %p135, %p136
      %s139 = sadd.s32 %s138, 1
      %p142 = scmp.eq.s32.totalorder %s20, 1
      %p143 = scmp.ne.s32.totalorder %s138, %s140
      %p144 = scmp.eq.s32.totalorder %s20, 0
      %p145 = por %p143, %p144
      %p146 = scmp.ne.s32.totalorder %s138, %s140
      %p147 = scmp.eq.s32.totalorder %s25, 1
      %p148 = por %p146, %p147
      %p149 = scmp.ne.s32.totalorder %s140, %s141
      %p150 = scmp.eq.s32.totalorder %s25, 0
      %p151 = por %p149, %p150
      %p152 = scmp.ne.s32.totalorder %s140, %s141
      %p153 = scmp.eq.s32.totalorder %s26, 1
      %p154 = por %p152, %p153
      %p156 = scmp.ne.s32.totalorder %s141, %s155
      %p157 = scmp.eq.s32.totalorder %s26, 0
      %p158 = por %p156, %p157
      %s160 = sadd.s32 %s159, 1
      %p163 = scmp.eq.s32.totalorder %s20, 1
      %p164 = scmp.ne.s32.totalorder %s159, %s161
      %p165 = scmp.eq.s32.totalorder %s20, 0
      %p166 = por %p164, %p165
      %p167 = scmp.ne.s32.totalorder %s159, %s161
      %p168 = scmp.eq.s32.totalorder %s25, 1
      %p169 = por %p167, %p168
      %p170 = scmp.ne.s32.totalorder %s161, %s162
      %p171 = scmp.eq.s32.totalorder %s25, 0
      %p172 = por %p170, %p171
      %p173 = scmp.ne.s32.totalorder %s161, %s162
      %p174 = scmp.eq.s32.totalorder %s26, 1
      %p175 = por %p173, %p174
      %p177 = scmp.ne.s32.totalorder %s162, %s176
      %p178 = scmp.eq.s32.totalorder %s26, 0
      %p179 = por %p177, %p178
      %s181 = sadd.s32 %s180, 1
      %p184 = scmp.eq.s32.totalorder %s20, 1
      %p185 = scmp.ne.s32.totalorder %s180, %s182
      %p186 = scmp.eq.s32.totalorder %s20, 0
      %p187 = por %p185, %p186
      %p188 = scmp.ne.s32.totalorder %s180, %s182
      %p189 = scmp.eq.s32.totalorder %s25, 1
      %p190 = por %p188, %p189
      %p191 = scmp.ne.s32.totalorder %s182, %s183
      %p192 = scmp.eq.s32.totalorder %s25, 0
      %p193 = por %p191, %p192
      %p194 = scmp.ne.s32.totalorder %s182, %s183
      %p195 = scmp.eq.s32.totalorder %s26, 1
      %p196 = por %p194, %p195
      %p198 = scmp.ne.s32.totalorder %s183, %s197
      %p199 = scmp.eq.s32.totalorder %s26, 0
      %p200 = por %p198, %p199
      %s202 = sadd.s32 %s201, 1
      %p205 = scmp.eq.s32.totalorder %s20, 1
      %p206 = scmp.ne.s32.totalorder %s201, %s203
      %p207 = scmp.eq.s32.totalorder %s20, 0
      %p208 = por %p206, %p207
      %p209 = scmp.ne.s32.totalorder %s201, %s203
      %p210 = scmp.eq.s32.totalorder %s25, 1
      %p211 = por %p209, %p210
      %p212 = scmp.ne.s32.totalorder %s203, %s204
      %p213 = scmp.eq.s32.totalorder %s25, 0
      %p214 = por %p212, %p213
      %p215 = scmp.ne.s32.totalorder %s203, %s204
      %p216 = scmp.eq.s32.totalorder %s26, 1
      %p217 = por %p215, %p216
      %p219 = scmp.ne.s32.totalorder %s204, %s218
      %p220 = scmp.eq.s32.totalorder %s26, 0
      %p221 = por %p219, %p220
      %s223 = sadd.s32 %s222, 1
      %p226 = scmp.eq.s32.totalorder %s20, 1
      %p227 = scmp.ne.s32.totalorder %s222, %s224
      %p228 = scmp.eq.s32.totalorder %s20, 0
      %p229 = por %p227, %p228
      %p230 = scmp.ne.s32.totalorder %s222, %s224
      %p231 = scmp.eq.s32.totalorder %s25, 1
      %p232 = por %p230, %p231
      %p233 = scmp.ne.s32.totalorder %s224, %s225
      %p234 = scmp.eq.s32.totalorder %s25, 0
      %p235 = por %p233, %p234
      %p236 = scmp.ne.s32.totalorder %s224, %s225
      %p237 = scmp.eq.s32.totalorder %s26, 1
      %p238 = por %p236, %p237
      %p240 = scmp.ne.s32.totalorder %s225, %s239
      %p241 = scmp.eq.s32.totalorder %s26, 0
      %p242 = por %p240, %p241
      %s244 = sadd.s32 %s243, 1
      %p247 = scmp.eq.s32.totalorder %s20, 1
      %p248 = scmp.ne.s32.totalorder %s243, %s245
      %p249 = scmp.eq.s32.totalorder %s20, 0
      %p250 = por %p248, %p249
      %p251 = scmp.ne.s32.totalorder %s243, %s245
      %p252 = scmp.eq.s32.totalorder %s25, 1
      %p253 = por %p251, %p252
      %p254 = scmp.ne.s32.totalorder %s245, %s246
      %p255 = scmp.eq.s32.totalorder %s25, 0
      %p256 = por %p254, %p255
      %p257 = scmp.ne.s32.totalorder %s245, %s246
      %p258 = scmp.eq.s32.totalorder %s26, 1
      %p259 = por %p257, %p258
      %p261 = scmp.ne.s32.totalorder %s246, %s260
      %p262 = scmp.eq.s32.totalorder %s26, 0
      %p263 = por %p261, %p262
      %s264 = ssub.s32 %s20, %s27
      %p265 = scmp.eq.s32.totalorder %s264, 0
      %s267 = sadd.s32 %s266, 1
      %s268 = scalar_select %p265, %s266, %s267
      %p271 = pneg %p265
      %p272 = scmp.eq.s32.totalorder %s20, 1
      %p273 = por %p271, %p272
      %p274 = scmp.ne.s32.totalorder %s266, %s269
      %p275 = scmp.eq.s32.totalorder %s20, 0
      %p276 = por %p274, %p275
      %p277 = scmp.ne.s32.totalorder %s266, %s269
      %p278 = scmp.eq.s32.totalorder %s25, 1
      %p279 = por %p277, %p278
      %p280 = scmp.ne.s32.totalorder %s269, %s270
      %p281 = scmp.eq.s32.totalorder %s25, 0
      %p282 = por %p280, %p281
      %p283 = scmp.ne.s32.totalorder %s269, %s270
      %p284 = scmp.eq.s32.totalorder %s26, 1
      %p285 = por %p283, %p284
      %p287 = scmp.ne.s32.totalorder %s270, %s286
      %p288 = scmp.eq.s32.totalorder %s26, 0
      %p289 = por %p287, %p288
      %p290 = scmp.le.s32.totalorder 1, %s20
      %p291 = scmp.lt.s32.totalorder %s20, 3
      %p292 = pnand %p290, %p291
      %p293 = pneg %p292
      // Predicated region
      $region9: #{conv1d_baseline_forward.1} parent=5 // pred_check
        _
      $region10: #{conv1d_baseline_forward.1} parent=5 // pred_check_branch
        %295 = sbr.rel (%p292) target = $region12
      $region11: #{conv1d_baseline_forward.1} parent=5 // pred_region
        %s296 = ssub.s32 %s20, 1
        // Predicated region
        $region13: #{conv1d_baseline_forward.1} parent=11 // pred_check
          %p297 = pneg %p67
        $region14: #{conv1d_baseline_forward.1} parent=11 // pred_check_branch
          %299 = sbr.rel (%p297) target = $region16
        $region15: #{conv1d_baseline_forward.1} parent=11 // pred_region
          _
        $region16: #{conv1d_baseline_forward.1} parent=11 // pred_fallthru
          _
        // Predicated region
        $region17: #{conv1d_baseline_forward.1} parent=11 // pred_check
          %p300 = pneg %p88
        $region18: #{conv1d_baseline_forward.1} parent=11 // pred_check_branch
          %302 = sbr.rel (%p300) target = $region20
        $region19: #{conv1d_baseline_forward.1} parent=11 // pred_region
          _
        $region20: #{conv1d_baseline_forward.1} parent=11 // pred_fallthru
          _
        // Predicated region
        $region21: #{conv1d_baseline_forward.1} parent=11 // pred_check
          %p303 = pneg %p109
        $region22: #{conv1d_baseline_forward.1} parent=11 // pred_check_branch
          %305 = sbr.rel (%p303) target = $region24
        $region23: #{conv1d_baseline_forward.1} parent=11 // pred_region
          _
        $region24: #{conv1d_baseline_forward.1} parent=11 // pred_fallthru
          _
        // Predicated region
        $region25: #{conv1d_baseline_forward.1} parent=11 // pred_check
          %p306 = pneg %p130
        $region26: #{conv1d_baseline_forward.1} parent=11 // pred_check_branch
          %308 = sbr.rel (%p306) target = $region28
        $region27: #{conv1d_baseline_forward.1} parent=11 // pred_region
          _
        $region28: #{conv1d_baseline_forward.1} parent=11 // pred_fallthru
          _
        // Predicated region
        $region29: #{conv1d_baseline_forward.1} parent=11 // pred_check
          %p309 = pneg %p151
        $region30: #{conv1d_baseline_forward.1} parent=11 // pred_check_branch
          %311 = sbr.rel (%p309) target = $region32
        $region31: #{conv1d_baseline_forward.1} parent=11 // pred_region
          _
        $region32: #{conv1d_baseline_forward.1} parent=11 // pred_fallthru
          _
        // Predicated region
        $region33: #{conv1d_baseline_forward.1} parent=11 // pred_check
          %p312 = pneg %p172
        $region34: #{conv1d_baseline_forward.1} parent=11 // pred_check_branch
          %314 = sbr.rel (%p312) target = $region36
        $region35: #{conv1d_baseline_forward.1} parent=11 // pred_region
          _
        $region36: #{conv1d_baseline_forward.1} parent=11 // pred_fallthru
          _
        // Predicated region
        $region37: #{conv1d_baseline_forward.1} parent=11 // pred_check
          %p315 = pneg %p193
        $region38: #{conv1d_baseline_forward.1} parent=11 // pred_check_branch
          %317 = sbr.rel (%p315) target = $region40
        $region39: #{conv1d_baseline_forward.1} parent=11 // pred_region
          _
        $region40: #{conv1d_baseline_forward.1} parent=11 // pred_fallthru
          _
        // Predicated region
        $region41: #{conv1d_baseline_forward.1} parent=11 // pred_check
          %p318 = pneg %p214
        $region42: #{conv1d_baseline_forward.1} parent=11 // pred_check_branch
          %320 = sbr.rel (%p318) target = $region44
        $region43: #{conv1d_baseline_forward.1} parent=11 // pred_region
          _
        $region44: #{conv1d_baseline_forward.1} parent=11 // pred_fallthru
          _
        // Predicated region
        $region45: #{conv1d_baseline_forward.1} parent=11 // pred_check
          %p321 = pneg %p235
        $region46: #{conv1d_baseline_forward.1} parent=11 // pred_check_branch
          %323 = sbr.rel (%p321) target = $region48
        $region47: #{conv1d_baseline_forward.1} parent=11 // pred_region
          _
        $region48: #{conv1d_baseline_forward.1} parent=11 // pred_fallthru
          _
        // Predicated region
        $region49: #{conv1d_baseline_forward.1} parent=11 // pred_check
          %p324 = pneg %p256
        $region50: #{conv1d_baseline_forward.1} parent=11 // pred_check_branch
          %326 = sbr.rel (%p324) target = $region52
        $region51: #{conv1d_baseline_forward.1} parent=11 // pred_region
          _
        $region52: #{conv1d_baseline_forward.1} parent=11 // pred_fallthru
          _
      $region12: #{conv1d_baseline_forward.1} parent=5 // pred_fallthru
        _
      %p327 = scmp.lt.s32.totalorder %s20, 2
      // Predicated region
      $region53: #{conv1d_baseline_forward.1} parent=5 // pred_check
        %p328 = pneg %p327
      $region54: #{conv1d_baseline_forward.1} parent=5 // pred_check_branch
        %330 = sbr.rel (%p328) target = $region56
      $region55: #{conv1d_baseline_forward.1} parent=5 // pred_region
        // Predicated region
        $region57: #{conv1d_baseline_forward.1} parent=55 // pred_check
          %p331 = pneg %p40
        $region58: #{conv1d_baseline_forward.1} parent=55 // pred_check_branch
          %333 = sbr.rel (%p331) target = $region60
        $region59: #{conv1d_baseline_forward.1} parent=55 // pred_region
          %s334 = sand.u32 %s30, 1
          %s335 = sand.u32 %s30, 1
          %s336 = smul.addr %s335, 256
          %s337 = scalar_lea.vmem [#allocation2], %s336
          %s338 = smul.addr %s20, 8
          %s339 = scalar_lea.vmem %s0, %s338
          // Predicated region
          $region61: #{conv1d_baseline_forward.1} parent=59 // pred_check
            _
          $region62: #{conv1d_baseline_forward.1} parent=59 // pred_check_branch
            %341 = sbr.rel (0) target = $region64
          $region63: #{conv1d_baseline_forward.1} parent=59 // pred_region
            // Predicated region
            $region65: #{conv1d_baseline_forward.1} parent=63 // pred_check
              _
            $region66: #{conv1d_baseline_forward.1} parent=63 // pred_check_branch
              %343 = sbr.rel (0) target = $region68
            $region67: #{conv1d_baseline_forward.1} parent=63 // pred_region
              // Predicated region
              $region80: #{conv1d_baseline_forward.1} parent=67 // pred_check
                _
              $region81: #{conv1d_baseline_forward.1} parent=67 // pred_check_branch
                %420 = sbr.rel (0) target = $region83
              $region82: #{conv1d_baseline_forward.1} parent=67 // pred_region
                loop: start=0, step=1, limit=1
                $region84: #{conv1d_baseline_forward.1} parent=82 // loop_pre_header
                  _
                $region85: #{conv1d_baseline_forward.1} parent=82 // loop_header
                  %s422 = sphi 0, %s426
                  %p423 = scmp.ge.s32.totalorder %s422, 1
                  %s427 = sphi %s339, %s339
                  %s428 = sphi %s337, %s337
                $region86: #{conv1d_baseline_forward.1} parent=82 // loop_header_branch
                  %425 = sbr.rel (%p423) target = $region90
                $region87: #{conv1d_baseline_forward.1} parent=82 // loop_body
                  %v429 = vld [vmem:[%s427] sm:$0xff]
                  %430 = vst [vmem:[%s428] sm:$0xff] %v429
                  %v431 = vld [vmem:[%s427 + $0x10] sm:$0xff]
                  %432 = vst [vmem:[%s428 + $0x8] sm:$0xff] %v431
                  %v433 = vld [vmem:[%s427 + $0x20] sm:$0xff]
                  %434 = vst [vmem:[%s428 + $0x10] sm:$0xff] %v433
                  %v435 = vld [vmem:[%s427 + $0x30] sm:$0xff]
                  %436 = vst [vmem:[%s428 + $0x18] sm:$0xff] %v435
                  %v437 = vld [vmem:[%s427 + $0x40] sm:$0xff]
                  %438 = vst [vmem:[%s428 + $0x20] sm:$0xff] %v437
                  %v439 = vld [vmem:[%s427 + $0x50] sm:$0xff]
                  %440 = vst [vmem:[%s428 + $0x28] sm:$0xff] %v439
                  %v441 = vld [vmem:[%s427 + $0x60] sm:$0xff]
                  %442 = vst [vmem:[%s428 + $0x30] sm:$0xff] %v441
                  %v443 = vld [vmem:[%s427 + $0x70] sm:$0xff]
                  %444 = vst [vmem:[%s428 + $0x38] sm:$0xff] %v443
                  %v445 = vld [vmem:[%s427 + $0x80] sm:$0xff]
                  %446 = vst [vmem:[%s428 + $0x40] sm:$0xff] %v445
                  %v447 = vld [vmem:[%s427 + $0x90] sm:$0xff]
                  %448 = vst [vmem:[%s428 + $0x48] sm:$0xff] %v447
                  %v449 = vld [vmem:[%s427 + $0xa0] sm:$0xff]
                  %450 = vst [vmem:[%s428 + $0x50] sm:$0xff] %v449
                  %v451 = vld [vmem:[%s427 + $0xb0] sm:$0xff]
                  %452 = vst [vmem:[%s428 + $0x58] sm:$0xff] %v451
                  %v453 = vld [vmem:[%s427 + $0xc0] sm:$0xff]
                  %454 = vst [vmem:[%s428 + $0x60] sm:$0xff] %v453
                  %v455 = vld [vmem:[%s427 + $0xd0] sm:$0xff]
                  %456 = vst [vmem:[%s428 + $0x68] sm:$0xff] %v455
                  %v457 = vld [vmem:[%s427 + $0xe0] sm:$0xff]
                  %458 = vst [vmem:[%s428 + $0x70] sm:$0xff] %v457
                  %v459 = vld [vmem:[%s427 + $0xf0] sm:$0xff]
                  %460 = vst [vmem:[%s428 + $0x78] sm:$0xff] %v459
                  %v461 = vld [vmem:[%s427 + $0x100] sm:$0xff]
                  %462 = vst [vmem:[%s428 + $0x80] sm:$0xff] %v461
                  %v463 = vld [vmem:[%s427 + $0x110] sm:$0xff]
                  %464 = vst [vmem:[%s428 + $0x88] sm:$0xff] %v463
                  %v465 = vld [vmem:[%s427 + $0x120] sm:$0xff]
                  %466 = vst [vmem:[%s428 + $0x90] sm:$0xff] %v465
                  %v467 = vld [vmem:[%s427 + $0x130] sm:$0xff]
                  %468 = vst [vmem:[%s428 + $0x98] sm:$0xff] %v467
                  %v469 = vld [vmem:[%s427 + $0x140] sm:$0xff]
                  %470 = vst [vmem:[%s428 + $0xa0] sm:$0xff] %v469
                  %v471 = vld [vmem:[%s427 + $0x150] sm:$0xff]
                  %472 = vst [vmem:[%s428 + $0xa8] sm:$0xff] %v471
                  %v473 = vld [vmem:[%s427 + $0x160] sm:$0xff]
                  %474 = vst [vmem:[%s428 + $0xb0] sm:$0xff] %v473
                  %v475 = vld [vmem:[%s427 + $0x170] sm:$0xff]
                  %476 = vst [vmem:[%s428 + $0xb8] sm:$0xff] %v475
                  %v477 = vld [vmem:[%s427 + $0x180] sm:$0xff]
                  %478 = vst [vmem:[%s428 + $0xc0] sm:$0xff] %v477
                  %v479 = vld [vmem:[%s427 + $0x190] sm:$0xff]
                  %480 = vst [vmem:[%s428 + $0xc8] sm:$0xff] %v479
                  %v481 = vld [vmem:[%s427 + $0x1a0] sm:$0xff]
                  %482 = vst [vmem:[%s428 + $0xd0] sm:$0xff] %v481
                  %v483 = vld [vmem:[%s427 + $0x1b0] sm:$0xff]
                  %484 = vst [vmem:[%s428 + $0xd8] sm:$0xff] %v483
                  %v485 = vld [vmem:[%s427 + $0x1c0] sm:$0xff]
                  %486 = vst [vmem:[%s428 + $0xe0] sm:$0xff] %v485
                  %v487 = vld [vmem:[%s427 + $0x1d0] sm:$0xff]
                  %488 = vst [vmem:[%s428 + $0xe8] sm:$0xff] %v487
                  %v489 = vld [vmem:[%s427 + $0x1e0] sm:$0xff]
                  %490 = vst [vmem:[%s428 + $0xf0] sm:$0xff] %v489
                  %v491 = vld [vmem:[%s427 + $0x1f0] sm:$0xff]
                  %492 = vst [vmem:[%s428 + $0xf8] sm:$0xff] %v491
                $region88: #{conv1d_baseline_forward.1} parent=82 // loop_footer
                  %s426 = sadd.s32 1, %s422
                $region89: #{conv1d_baseline_forward.1} parent=82 // loop_footer_branch
                  %421 = sbr.rel target = $region85
                $region90: #{conv1d_baseline_forward.1} parent=82 // loop_exit
                  _
              $region83: #{conv1d_baseline_forward.1} parent=67 // pred_fallthru
                _
              // Predicated region
              $region91: #{conv1d_baseline_forward.1} parent=67 // pred_check
                _
              $region92: #{conv1d_baseline_forward.1} parent=67 // pred_check_branch
                %494 = sbr.rel target = $region94
              $region93: #{conv1d_baseline_forward.1} parent=67 // pred_region
                _
              $region94: #{conv1d_baseline_forward.1} parent=67 // pred_fallthru
                _
            $region68: #{conv1d_baseline_forward.1} parent=63 // pred_fallthru
              _
            // Predicated region
            $region69: #{conv1d_baseline_forward.1} parent=63 // pred_check
              _
            $region70: #{conv1d_baseline_forward.1} parent=63 // pred_check_branch
              %345 = sbr.rel target = $region72
            $region71: #{conv1d_baseline_forward.1} parent=63 // pred_region
              loop: start=0, step=1, limit=1
              $region73: #{conv1d_baseline_forward.1} parent=71 // loop_pre_header
                _
              $region74: #{conv1d_baseline_forward.1} parent=71 // loop_header
                %s348 = sphi 0, %s352
                %p349 = scmp.ge.s32.totalorder %s348, 1
                %s353 = sphi %s339, %s339
                %s354 = sphi %s337, %s337
              $region75: #{conv1d_baseline_forward.1} parent=71 // loop_header_branch
                %351 = sbr.rel (%p349) target = $region79
              $region76: #{conv1d_baseline_forward.1} parent=71 // loop_body
                %v355 = vld [vmem:[%s353] sm:$0xff]
                %356 = vst [vmem:[%s354] sm:$0xff] %v355
                %v357 = vld [vmem:[%s353 + $0x10] sm:$0xff]
                %358 = vst [vmem:[%s354 + $0x8] sm:$0xff] %v357
                %v359 = vld [vmem:[%s353 + $0x20] sm:$0xff]
                %360 = vst [vmem:[%s354 + $0x10] sm:$0xff] %v359
                %v361 = vld [vmem:[%s353 + $0x30] sm:$0xff]
                %362 = vst [vmem:[%s354 + $0x18] sm:$0xff] %v361
                %v363 = vld [vmem:[%s353 + $0x40] sm:$0xff]
                %364 = vst [vmem:[%s354 + $0x20] sm:$0xff] %v363
                %v365 = vld [vmem:[%s353 + $0x50] sm:$0xff]
                %366 = vst [vmem:[%s354 + $0x28] sm:$0xff] %v365
                %v367 = vld [vmem:[%s353 + $0x60] sm:$0xff]
                %368 = vst [vmem:[%s354 + $0x30] sm:$0xff] %v367
                %v369 = vld [vmem:[%s353 + $0x70] sm:$0xff]
                %370 = vst [vmem:[%s354 + $0x38] sm:$0xff] %v369
                %v371 = vld [vmem:[%s353 + $0x80] sm:$0xff]
                %372 = vst [vmem:[%s354 + $0x40] sm:$0xff] %v371
                %v373 = vld [vmem:[%s353 + $0x90] sm:$0xff]
                %374 = vst [vmem:[%s354 + $0x48] sm:$0xff] %v373
                %v375 = vld [vmem:[%s353 + $0xa0] sm:$0xff]
                %376 = vst [vmem:[%s354 + $0x50] sm:$0xff] %v375
                %v377 = vld [vmem:[%s353 + $0xb0] sm:$0xff]
                %378 = vst [vmem:[%s354 + $0x58] sm:$0xff] %v377
                %v379 = vld [vmem:[%s353 + $0xc0] sm:$0xff]
                %380 = vst [vmem:[%s354 + $0x60] sm:$0xff] %v379
                %v381 = vld [vmem:[%s353 + $0xd0] sm:$0xff]
                %382 = vst [vmem:[%s354 + $0x68] sm:$0xff] %v381
                %v383 = vld [vmem:[%s353 + $0xe0] sm:$0xff]
                %384 = vst [vmem:[%s354 + $0x70] sm:$0xff] %v383
                %v385 = vld [vmem:[%s353 + $0xf0] sm:$0xff]
                %386 = vst [vmem:[%s354 + $0x78] sm:$0xff] %v385
                %v387 = vld [vmem:[%s353 + $0x100] sm:$0xff]
                %388 = vst [vmem:[%s354 + $0x80] sm:$0xff] %v387
                %v389 = vld [vmem:[%s353 + $0x110] sm:$0xff]
                %390 = vst [vmem:[%s354 + $0x88] sm:$0xff] %v389
                %v391 = vld [vmem:[%s353 + $0x120] sm:$0xff]
                %392 = vst [vmem:[%s354 + $0x90] sm:$0xff] %v391
                %v393 = vld [vmem:[%s353 + $0x130] sm:$0xff]
                %394 = vst [vmem:[%s354 + $0x98] sm:$0xff] %v393
                %v395 = vld [vmem:[%s353 + $0x140] sm:$0xff]
                %396 = vst [vmem:[%s354 + $0xa0] sm:$0xff] %v395
                %v397 = vld [vmem:[%s353 + $0x150] sm:$0xff]
                %398 = vst [vmem:[%s354 + $0xa8] sm:$0xff] %v397
                %v399 = vld [vmem:[%s353 + $0x160] sm:$0xff]
                %400 = vst [vmem:[%s354 + $0xb0] sm:$0xff] %v399
                %v401 = vld [vmem:[%s353 + $0x170] sm:$0xff]
                %402 = vst [vmem:[%s354 + $0xb8] sm:$0xff] %v401
                %v403 = vld [vmem:[%s353 + $0x180] sm:$0xff]
                %404 = vst [vmem:[%s354 + $0xc0] sm:$0xff] %v403
                %v405 = vld [vmem:[%s353 + $0x190] sm:$0xff]
                %406 = vst [vmem:[%s354 + $0xc8] sm:$0xff] %v405
                %v407 = vld [vmem:[%s353 + $0x1a0] sm:$0xff]
                %408 = vst [vmem:[%s354 + $0xd0] sm:$0xff] %v407
                %v409 = vld [vmem:[%s353 + $0x1b0] sm:$0xff]
                %410 = vst [vmem:[%s354 + $0xd8] sm:$0xff] %v409
                %v411 = vld [vmem:[%s353 + $0x1c0] sm:$0xff]
                %412 = vst [vmem:[%s354 + $0xe0] sm:$0xff] %v411
                %v413 = vld [vmem:[%s353 + $0x1d0] sm:$0xff]
                %414 = vst [vmem:[%s354 + $0xe8] sm:$0xff] %v413
                %v415 = vld [vmem:[%s353 + $0x1e0] sm:$0xff]
                %416 = vst [vmem:[%s354 + $0xf0] sm:$0xff] %v415
                %v417 = vld [vmem:[%s353 + $0x1f0] sm:$0xff]
                %418 = vst [vmem:[%s354 + $0xf8] sm:$0xff] %v417
              $region77: #{conv1d_baseline_forward.1} parent=71 // loop_footer
                %s352 = sadd.s32 1, %s348
              $region78: #{conv1d_baseline_forward.1} parent=71 // loop_footer_branch
                %347 = sbr.rel target = $region74
              $region79: #{conv1d_baseline_forward.1} parent=71 // loop_exit
                _
            $region72: #{conv1d_baseline_forward.1} parent=63 // pred_fallthru
              _
          $region64: #{conv1d_baseline_forward.1} parent=59 // pred_fallthru
            _
          %495 = vnop
        $region60: #{conv1d_baseline_forward.1} parent=55 // pred_fallthru
          _
      $region56: #{conv1d_baseline_forward.1} parent=5 // pred_fallthru
        _
      %p496 = scmp.le.s32.totalorder 1, %s20
      %p497 = scmp.lt.s32.totalorder %s20, 3
      %p498 = pnand %p496, %p497
      %p499 = pneg %p498
      // Predicated region
      $region95: #{conv1d_baseline_forward.1} parent=5 // pred_check
        _
      $region96: #{conv1d_baseline_forward.1} parent=5 // pred_check_branch
        %501 = sbr.rel (%p498) target = $region98
      $region97: #{conv1d_baseline_forward.1} parent=5 // pred_region
        %s502 = ssub.s32 %s20, 1
        %s503 = sand.u32 %s33, 1
        %s504 = sand.u32 %s33, 1
        %s505 = smul.addr %s504, 256
        %s506 = scalar_lea.vmem [#allocation2], %s505
        // Predicated region
        $region99: #{conv1d_baseline_forward.1} parent=97 // pred_check
          %p507 = pneg %p46
        $region100: #{conv1d_baseline_forward.1} parent=97 // pred_check_branch
          %509 = sbr.rel (%p507) target = $region102
        $region101: #{conv1d_baseline_forward.1} parent=97 // pred_region
          _
        $region102: #{conv1d_baseline_forward.1} parent=97 // pred_fallthru
          _
        %s510 = sand.u32 %s33, 1
        %s511 = sand.u32 %s33, 1
        %s512 = smul.addr %s511, 256
        %s513 = scalar_lea.vmem [#allocation2], %s512
        %p514 = pneg %p46
        %p515 = pneg %p43
        %p516 = pneg %p67
        %p517 = pneg %p64
        %p518 = pneg %p88
        %p519 = pneg %p85
        %p520 = pneg %p109
        %p521 = pneg %p106
        %p522 = pneg %p130
        %p523 = pneg %p127
        %p524 = pneg %p151
        %p525 = pneg %p148
        %p526 = pneg %p172
        %p527 = pneg %p169
        %p528 = pneg %p193
        %p529 = pneg %p190
        %p530 = pneg %p214
        %p531 = pneg %p211
        %p532 = pneg %p235
        %p533 = pneg %p232
        %p534 = pneg %p256
        %p535 = pneg %p253
        %p536 = pneg %p282
        %p537 = pneg %p279
        %s538 = sand.u32 %s269, 1
        %s539 = scalar_lea.sflag [#allocation4], %s538
        %s540 = sand.u32 %s269, 1
        %s541 = smul.addr %s540, 8
        %s542 = scalar_lea.vmem [#allocation3], %s541
        %v544 = vld [vmem:[%s506] sm:$0xff]
        %v545 = vld [vmem:[%s506 + $0x8] sm:$0xff]
        %v546 = vld [vmem:[%s506 + $0x10] sm:$0xff]
        %v547 = vld [vmem:[%s506 + $0x18] sm:$0xff]
        %v548 = vld [vmem:[%s506 + $0x20] sm:$0xff]
        %v549 = vld [vmem:[%s506 + $0x28] sm:$0xff]
        %v550 = vld [vmem:[%s506 + $0x30] sm:$0xff]
        %v551 = vld [vmem:[%s506 + $0x38] sm:$0xff]
        %v552 = vld [vmem:[%s506 + $0x40] sm:$0xff]
        %v553 = vld [vmem:[%s506 + $0x48] sm:$0xff]
        %v554 = vld [vmem:[%s506 + $0x50] sm:$0xff]
        %v555 = vld [vmem:[%s506 + $0x58] sm:$0xff]
        %v556 = vld [vmem:[%s506 + $0x60] sm:$0xff]
        %v557 = vld [vmem:[%s506 + $0x68] sm:$0xff]
        %v558 = vld [vmem:[%s506 + $0x70] sm:$0xff]
        %v559 = vld [vmem:[%s506 + $0x78] sm:$0xff]
        %v560 = vld [vmem:[%s506 + $0x80] sm:$0xff]
        %v561 = vld [vmem:[%s506 + $0x88] sm:$0xff]
        %v562 = vld [vmem:[%s506 + $0x90] sm:$0xff]
        %v563 = vld [vmem:[%s506 + $0x98] sm:$0xff]
        %v564 = vld [vmem:[%s506 + $0xa0] sm:$0xff]
        %v565 = vld [vmem:[%s506 + $0xa8] sm:$0xff]
        %v566 = vld [vmem:[%s506 + $0xb0] sm:$0xff]
        %v567 = vld [vmem:[%s506 + $0xb8] sm:$0xff]
        %v568 = vld [vmem:[%s506 + $0xc0] sm:$0xff]
        %v569 = vld [vmem:[%s506 + $0xc8] sm:$0xff]
        %v570 = vld [vmem:[%s506 + $0xd0] sm:$0xff]
        %v571 = vld [vmem:[%s506 + $0xd8] sm:$0xff]
        %v572 = vld [vmem:[%s506 + $0xe0] sm:$0xff]
        %v573 = vld [vmem:[%s506 + $0xe8] sm:$0xff]
        %v574 = vld [vmem:[%s506 + $0xf0] sm:$0xff]
        %v575 = vld [vmem:[%s506 + $0xf8] sm:$0xff]
        %592 = vrot.lane.b32.xlu0 %v544, 2
        %v593 = vpop.permute.xlu0 %592
        %594 = vrot.lane.b32.xlu0 %v546, 2
        %v595 = vpop.permute.xlu0 %594
        %596 = vrot.lane.b32.xlu0 %v548, 2
        %v597 = vpop.permute.xlu0 %596
        %598 = vrot.lane.b32.xlu0 %v550, 2
        %v599 = vpop.permute.xlu0 %598
        %600 = vrot.lane.b32.xlu0 %v552, 2
        %v601 = vpop.permute.xlu0 %600
        %602 = vrot.lane.b32.xlu0 %v554, 2
        %v603 = vpop.permute.xlu0 %602
        %604 = vrot.lane.b32.xlu0 %v556, 2
        %v605 = vpop.permute.xlu0 %604
        %606 = vrot.lane.b32.xlu0 %v558, 2
        %v607 = vpop.permute.xlu0 %606
        %608 = vrot.lane.b32.xlu0 %v560, 2
        %v609 = vpop.permute.xlu0 %608
        %610 = vrot.lane.b32.xlu0 %v562, 2
        %v611 = vpop.permute.xlu0 %610
        %612 = vrot.lane.b32.xlu0 %v564, 2
        %v613 = vpop.permute.xlu0 %612
        %614 = vrot.lane.b32.xlu0 %v566, 2
        %v615 = vpop.permute.xlu0 %614
        %616 = vrot.lane.b32.xlu0 %v568, 2
        %v617 = vpop.permute.xlu0 %616
        %618 = vrot.lane.b32.xlu0 %v570, 2
        %v619 = vpop.permute.xlu0 %618
        %620 = vrot.lane.b32.xlu0 %v572, 2
        %v621 = vpop.permute.xlu0 %620
        %622 = vrot.lane.b32.xlu0 %v574, 2
        %v623 = vpop.permute.xlu0 %622
        %656 = vrot.lane.b32.xlu0 %v545, 4
        %v657 = vpop.permute.xlu0 %656
        %658 = vrot.lane.b32.xlu0 %v547, 4
        %v659 = vpop.permute.xlu0 %658
        %660 = vrot.lane.b32.xlu0 %v549, 4
        %v661 = vpop.permute.xlu0 %660
        %662 = vrot.lane.b32.xlu0 %v551, 4
        %v663 = vpop.permute.xlu0 %662
        %664 = vrot.lane.b32.xlu0 %v553, 4
        %v665 = vpop.permute.xlu0 %664
        %666 = vrot.lane.b32.xlu0 %v555, 4
        %v667 = vpop.permute.xlu0 %666
        %668 = vrot.lane.b32.xlu0 %v557, 4
        %v669 = vpop.permute.xlu0 %668
        %670 = vrot.lane.b32.xlu0 %v559, 4
        %v671 = vpop.permute.xlu0 %670
        %672 = vrot.lane.b32.xlu0 %v561, 4
        %v673 = vpop.permute.xlu0 %672
        %674 = vrot.lane.b32.xlu0 %v563, 4
        %v675 = vpop.permute.xlu0 %674
        %676 = vrot.lane.b32.xlu0 %v565, 4
        %v677 = vpop.permute.xlu0 %676
        %678 = vrot.lane.b32.xlu0 %v567, 4
        %v679 = vpop.permute.xlu0 %678
        %680 = vrot.lane.b32.xlu0 %v569, 4
        %v681 = vpop.permute.xlu0 %680
        %682 = vrot.lane.b32.xlu0 %v571, 4
        %v683 = vpop.permute.xlu0 %682
        %684 = vrot.lane.b32.xlu0 %v573, 4
        %v685 = vpop.permute.xlu0 %684
        %686 = vrot.lane.b32.xlu0 %v575, 4
        %v687 = vpop.permute.xlu0 %686
        %705 = vrot.lane.b32.xlu0 %v546, 6
        %v706 = vpop.permute.xlu0 %705
        %707 = vrot.lane.b32.xlu0 %v548, 6
        %v708 = vpop.permute.xlu0 %707
        %709 = vrot.lane.b32.xlu0 %v550, 6
        %v710 = vpop.permute.xlu0 %709
        %711 = vrot.lane.b32.xlu0 %v552, 6
        %v712 = vpop.permute.xlu0 %711
        %713 = vrot.lane.b32.xlu0 %v554, 6
        %v714 = vpop.permute.xlu0 %713
        %715 = vrot.lane.b32.xlu0 %v556, 6
        %v716 = vpop.permute.xlu0 %715
        %717 = vrot.lane.b32.xlu0 %v558, 6
        %v718 = vpop.permute.xlu0 %717
        %719 = vrot.lane.b32.xlu0 %v560, 6
        %v720 = vpop.permute.xlu0 %719
        %721 = vrot.lane.b32.xlu0 %v562, 6
        %v722 = vpop.permute.xlu0 %721
        %723 = vrot.lane.b32.xlu0 %v564, 6
        %v724 = vpop.permute.xlu0 %723
        %725 = vrot.lane.b32.xlu0 %v566, 6
        %v726 = vpop.permute.xlu0 %725
        %727 = vrot.lane.b32.xlu0 %v568, 6
        %v728 = vpop.permute.xlu0 %727
        %729 = vrot.lane.b32.xlu0 %v570, 6
        %v730 = vpop.permute.xlu0 %729
        %731 = vrot.lane.b32.xlu0 %v572, 6
        %v732 = vpop.permute.xlu0 %731
        %733 = vrot.lane.b32.xlu0 %v574, 6
        %v734 = vpop.permute.xlu0 %733
        %735 = vrot.lane.b32.xlu0 0.0, 6
        %v736 = vpop.permute.xlu0 %735
        %vm753 = vcmask 15360
        %v754 = vsel %vm753, 0.0, %v593
        %v755 = vsel %vm753, %v545, %v595
        %v756 = vsel %vm753, %v547, %v597
        %v757 = vsel %vm753, %v549, %v599
        %v758 = vsel %vm753, %v551, %v601
        %v759 = vsel %vm753, %v553, %v603
        %v760 = vsel %vm753, %v555, %v605
        %v761 = vsel %vm753, %v557, %v607
        %v762 = vsel %vm753, %v559, %v609
        %v763 = vsel %vm753, %v561, %v611
        %v764 = vsel %vm753, %v563, %v613
        %v765 = vsel %vm753, %v565, %v615
        %v766 = vsel %vm753, %v567, %v617
        %v767 = vsel %vm753, %v569, %v619
        %v768 = vsel %vm753, %v571, %v621
        %v769 = vsel %vm753, %v573, %v623
        %vm770 = vcmask 31744
        %v771 = vsel %vm770, %v754, %v657
        %v772 = vsel %vm770, %v755, %v659
        %v773 = vsel %vm770, %v756, %v661
        %v774 = vsel %vm770, %v757, %v663
        %v775 = vsel %vm770, %v758, %v665
        %v776 = vsel %vm770, %v759, %v667
        %v777 = vsel %vm770, %v760, %v669
        %v778 = vsel %vm770, %v761, %v671
        %v779 = vsel %vm770, %v762, %v673
        %v780 = vsel %vm770, %v763, %v675
        %v781 = vsel %vm770, %v764, %v677
        %v782 = vsel %vm770, %v765, %v679
        %v783 = vsel %vm770, %v766, %v681
        %v784 = vsel %vm770, %v767, %v683
        %v785 = vsel %vm770, %v768, %v685
        %v786 = vsel %vm770, %v769, %v687
        %vm787 = vcmask 48128
        %v788 = vsel %vm787, %v771, %v706
        %v789 = vsel %vm787, %v772, %v708
        %v790 = vsel %vm787, %v773, %v710
        %v791 = vsel %vm787, %v774, %v712
        %v792 = vsel %vm787, %v775, %v714
        %v793 = vsel %vm787, %v776, %v716
        %v794 = vsel %vm787, %v777, %v718
        %v795 = vsel %vm787, %v778, %v720
        %v796 = vsel %vm787, %v779, %v722
        %v797 = vsel %vm787, %v780, %v724
        %v798 = vsel %vm787, %v781, %v726
        %v799 = vsel %vm787, %v782, %v728
        %v800 = vsel %vm787, %v783, %v730
        %v801 = vsel %vm787, %v784, %v732
        %v802 = vsel %vm787, %v785, %v734
        %v803 = vsel %vm787, %v786, %v736
        %v804 = vpack.c.bf16 %v789, %v788
        %v805 = vpack.c.bf16 %v791, %v790
        %v806 = vpack.c.bf16 %v793, %v792
        %v807 = vpack.c.bf16 %v795, %v794
        %v808 = vpack.c.bf16 %v797, %v796
        %v809 = vpack.c.bf16 %v799, %v798
        %v810 = vpack.c.bf16 %v801, %v800
        %v811 = vpack.c.bf16 %v803, %v802
        %v812 = vld [vmem:[%s1] sm:$0xf]
        %v813 = vld [vmem:[%s6] sm:$0x1]
        %v815 = vlaneseq
        %v816 = vshrl.u32 %v815, 7
        %v817 = vsub.s32 0, %v816
        %v818 = vrot.slane %v813, %v817
        %vm820 = vcmask 64512
        %v822 = vsel %vm820, %v804, 0
        %v825 = vsel %vm820, %v805, 0
        %v828 = vsel %vm820, %v806, 0
        %v831 = vsel %vm820, %v807, 0
        %v834 = vsel %vm820, %v808, 0
        %v837 = vsel %vm820, %v809, 0
        %v840 = vsel %vm820, %v810, 0
        %v843 = vsel %vm820, %v811, 0
        %vm845 = vcmask 1043456
        %v847 = vsel %vm845, %v812, 0
        %849 = vmatprep.subr.bf16.mxu0 0
        %850 = vmatpush1.bf16.msra.mxu0 %v847
        %851 = vmatprep.subr.bf16.mxu0 0
        %852 = vmatpush1.bf16.msra.mxu0 0
        %853 = vmatprep.subr.bf16.mxu0 0
        %854 = vmatpush1.bf16.msra.mxu0 0
        %855 = vmatprep.subr.bf16.mxu0 0
        %856 = vmatpush1.bf16.msra.mxu0 0
        %857 = vmatprep.subr.bf16.mxu0 0
        %858 = vmatpush1.bf16.msra.mxu0 0
        %859 = vmatprep.subr.bf16.mxu0 0
        %860 = vmatpush1.bf16.msra.mxu0 0
        %861 = vmatprep.subr.bf16.mxu0 0
        %862 = vmatpush1.bf16.msra.mxu0 0
        %863 = vmatprep.subr.bf16.mxu0 0
        %864 = vmatpush1.bf16.msra.mxu0 0
        %865 = vmatprep.subr.bf16.mxu0 0
        %866 = vmatpush1.bf16.msra.mxu0 0
        %867 = vmatprep.subr.bf16.mxu0 0
        %868 = vmatpush1.bf16.msra.mxu0 0
        %869 = vmatprep.subr.bf16.mxu0 0
        %870 = vmatpush1.bf16.msra.mxu0 0
        %871 = vmatprep.subr.bf16.mxu0 0
        %872 = vmatpush1.bf16.msra.mxu0 0
        %873 = vmatprep.subr.bf16.mxu0 0
        %874 = vmatpush1.bf16.msra.mxu0 0
        %875 = vmatprep.subr.bf16.mxu0 0
        %876 = vmatpush1.bf16.msra.mxu0 0
        %877 = vmatprep.subr.bf16.mxu0 0
        %878 = vmatpush1.bf16.msra.mxu0 0
        %879 = vmatprep.subr.bf16.mxu0 0
        %880 = vmatpush1.bf16.msra.mxu0 0
        %881 = vmatprep.mubr.bf16.mxu0 0
        %882 = vmatmul.mubr.bf16.gmra.mrb[0].mxu0 %v822
        %v883 = vpop.f32.mrb[0].mxu0
        %v884 = vadd.f32 %v818, %v883
        %v885 = vpop.f32.mrb[0].mxu0
        %v886 = vpop.f32.mrb[0].mxu0
        %v887 = vadd.f32 %v818, %v886
        %v888 = vpop.f32.mrb[0].mxu0
        %889 = vmatprep.mubr.bf16.mxu0 0
        %890 = vmatmul.mubr.bf16.gmra.mrb[0].mxu0 %v825
        %v891 = vpop.f32.mrb[0].mxu0
        %v892 = vadd.f32 %v818, %v891
        %v893 = vpop.f32.mrb[0].mxu0
        %v894 = vpop.f32.mrb[0].mxu0
        %v895 = vadd.f32 %v818, %v894
        %v896 = vpop.f32.mrb[0].mxu0
        %897 = vmatprep.mubr.bf16.mxu0 0
        %898 = vmatmul.mubr.bf16.gmra.mrb[0].mxu0 %v828
        %v899 = vpop.f32.mrb[0].mxu0
        %v900 = vadd.f32 %v818, %v899
        %v901 = vpop.f32.mrb[0].mxu0
        %v902 = vpop.f32.mrb[0].mxu0
        %v903 = vadd.f32 %v818, %v902
        %v904 = vpop.f32.mrb[0].mxu0
        %905 = vmatprep.mubr.bf16.mxu0 0
        %906 = vmatmul.mubr.bf16.gmra.mrb[0].mxu0 %v831
        %v907 = vpop.f32.mrb[0].mxu0
        %v908 = vadd.f32 %v818, %v907
        %v909 = vpop.f32.mrb[0].mxu0
        %v910 = vpop.f32.mrb[0].mxu0
        %v911 = vadd.f32 %v818, %v910
        %v912 = vpop.f32.mrb[0].mxu0
        %913 = vmatprep.mubr.bf16.mxu0 0
        %914 = vmatmul.mubr.bf16.gmra.mrb[0].mxu0 %v834
        %v915 = vpop.f32.mrb[0].mxu0
        %v916 = vadd.f32 %v818, %v915
        %v917 = vpop.f32.mrb[0].mxu0
        %v918 = vpop.f32.mrb[0].mxu0
        %v919 = vadd.f32 %v818, %v918
        %v920 = vpop.f32.mrb[0].mxu0
        %921 = vmatprep.mubr.bf16.mxu0 0
        %922 = vmatmul.mubr.bf16.gmra.mrb[0].mxu0 %v837
        %v923 = vpop.f32.mrb[0].mxu0
        %v924 = vadd.f32 %v818, %v923
        %v925 = vpop.f32.mrb[0].mxu0
        %v926 = vpop.f32.mrb[0].mxu0
        %v927 = vadd.f32 %v818, %v926
        %v928 = vpop.f32.mrb[0].mxu0
        %929 = vmatprep.mubr.bf16.mxu0 0
        %930 = vmatmul.mubr.bf16.gmra.mrb[0].mxu0 %v840
        %v931 = vpop.f32.mrb[0].mxu0
        %v932 = vadd.f32 %v818, %v931
        %v933 = vpop.f32.mrb[0].mxu0
        %v934 = vpop.f32.mrb[0].mxu0
        %v935 = vadd.f32 %v818, %v934
        %v936 = vpop.f32.mrb[0].mxu0
        %937 = vmatprep.mubr.bf16.mxu0 0
        %938 = vmatmul.mubr.bf16.gmra.mrb[0].mxu0 %v843
        %v939 = vpop.f32.mrb[0].mxu0
        %v940 = vadd.f32 %v818, %v939
        %v941 = vpop.f32.mrb[0].mxu0
        %v942 = vpop.f32.mrb[0].mxu0
        %v943 = vadd.f32 %v818, %v942
        %v944 = vpop.f32.mrb[0].mxu0
        %945 = vdwg.mxu0
        %vm946 = vcmp.gt.f32.partialorder %v884, 0.0
        %vm947 = vcmp.gt.f32.partialorder %v887, 0.0
        %vm948 = vcmp.gt.f32.partialorder %v892, 0.0
        %vm949 = vcmp.gt.f32.partialorder %v895, 0.0
        %vm950 = vcmp.gt.f32.partialorder %v900, 0.0
        %vm951 = vcmp.gt.f32.partialorder %v903, 0.0
        %vm952 = vcmp.gt.f32.partialorder %v908, 0.0
        %vm953 = vcmp.gt.f32.partialorder %v911, 0.0
        %vm954 = vcmp.gt.f32.partialorder %v916, 0.0
        %vm955 = vcmp.gt.f32.partialorder %v919, 0.0
        %vm956 = vcmp.gt.f32.partialorder %v924, 0.0
        %vm957 = vcmp.gt.f32.partialorder %v927, 0.0
        %vm958 = vcmp.gt.f32.partialorder %v932, 0.0
        %vm959 = vcmp.gt.f32.partialorder %v935, 0.0
        %vm960 = vcmp.gt.f32.partialorder %v940, 0.0
        %vm961 = vcmp.gt.f32.partialorder %v943, 0.0
        %v962 = vmul.f32 %v884, 0.01
        %v963 = vmul.f32 %v887, 0.01
        %v964 = vmul.f32 %v892, 0.01
        %v965 = vmul.f32 %v895, 0.01
        %v966 = vmul.f32 %v900, 0.01
        %v967 = vmul.f32 %v903, 0.01
        %v968 = vmul.f32 %v908, 0.01
        %v969 = vmul.f32 %v911, 0.01
        %v970 = vmul.f32 %v916, 0.01
        %v971 = vmul.f32 %v919, 0.01
        %v972 = vmul.f32 %v924, 0.01
        %v973 = vmul.f32 %v927, 0.01
        %v974 = vmul.f32 %v932, 0.01
        %v975 = vmul.f32 %v935, 0.01
        %v976 = vmul.f32 %v940, 0.01
        %v977 = vmul.f32 %v943, 0.01
        %v978 = vsel %vm946, %v884, %v962
        %v979 = vsel %vm947, %v887, %v963
        %v980 = vsel %vm948, %v892, %v964
        %v981 = vsel %vm949, %v895, %v965
        %v982 = vsel %vm950, %v900, %v966
        %v983 = vsel %vm951, %v903, %v967
        %v984 = vsel %vm952, %v908, %v968
        %v985 = vsel %vm953, %v911, %v969
        %v986 = vsel %vm954, %v916, %v970
        %v987 = vsel %vm955, %v919, %v971
        %v988 = vsel %vm956, %v924, %v972
        %v989 = vsel %vm957, %v927, %v973
        %v990 = vsel %vm958, %v932, %v974
        %v991 = vsel %vm959, %v935, %v975
        %v992 = vsel %vm960, %v940, %v976
        %v993 = vsel %vm961, %v943, %v977
        %1002 = vrot.lane.b32.xlu0 %v978, 48
        %v1003 = vpop.permute.xlu0 %1002
        %1004 = vrot.lane.b32.xlu0 %v980, 48
        %v1005 = vpop.permute.xlu0 %1004
        %1006 = vrot.lane.b32.xlu0 %v982, 48
        %v1007 = vpop.permute.xlu0 %1006
        %1008 = vrot.lane.b32.xlu0 %v984, 48
        %v1009 = vpop.permute.xlu0 %1008
        %1010 = vrot.lane.b32.xlu0 %v986, 48
        %v1011 = vpop.permute.xlu0 %1010
        %1012 = vrot.lane.b32.xlu0 %v988, 48
        %v1013 = vpop.permute.xlu0 %1012
        %1014 = vrot.lane.b32.xlu0 %v990, 48
        %v1015 = vpop.permute.xlu0 %1014
        %1016 = vrot.lane.b32.xlu0 %v992, 48
        %v1017 = vpop.permute.xlu0 %1016
        %1034 = vrot.lane.b32.xlu0 %v979, 96
        %v1035 = vpop.permute.xlu0 %1034
        %1036 = vrot.lane.b32.xlu0 %v981, 96
        %v1037 = vpop.permute.xlu0 %1036
        %1038 = vrot.lane.b32.xlu0 %v983, 96
        %v1039 = vpop.permute.xlu0 %1038
        %1040 = vrot.lane.b32.xlu0 %v985, 96
        %v1041 = vpop.permute.xlu0 %1040
        %1042 = vrot.lane.b32.xlu0 %v987, 96
        %v1043 = vpop.permute.xlu0 %1042
        %1044 = vrot.lane.b32.xlu0 %v989, 96
        %v1045 = vpop.permute.xlu0 %1044
        %1046 = vrot.lane.b32.xlu0 %v991, 96
        %v1047 = vpop.permute.xlu0 %1046
        %1048 = vrot.lane.b32.xlu0 %v993, 96
        %v1049 = vpop.permute.xlu0 %1048
        %1058 = vrot.lane.b32.xlu0 %v980, 16
        %v1059 = vpop.permute.xlu0 %1058
        %1060 = vrot.lane.b32.xlu0 %v982, 16
        %v1061 = vpop.permute.xlu0 %1060
        %1062 = vrot.lane.b32.xlu0 %v984, 16
        %v1063 = vpop.permute.xlu0 %1062
        %1064 = vrot.lane.b32.xlu0 %v986, 16
        %v1065 = vpop.permute.xlu0 %1064
        %1066 = vrot.lane.b32.xlu0 %v988, 16
        %v1067 = vpop.permute.xlu0 %1066
        %1068 = vrot.lane.b32.xlu0 %v990, 16
        %v1069 = vpop.permute.xlu0 %1068
        %1070 = vrot.lane.b32.xlu0 %v992, 16
        %v1071 = vpop.permute.xlu0 %1070
        %1072 = vrot.lane.b32.xlu0 0.0, 16
        %v1073 = vpop.permute.xlu0 %1072
        %vm1082 = vcmask 392192
        %v1083 = vsel %vm1082, 0.0, %v1003
        %v1084 = vsel %vm1082, %v979, %v1005
        %v1085 = vsel %vm1082, %v981, %v1007
        %v1086 = vsel %vm1082, %v983, %v1009
        %v1087 = vsel %vm1082, %v985, %v1011
        %v1088 = vsel %vm1082, %v987, %v1013
        %v1089 = vsel %vm1082, %v989, %v1015
        %v1090 = vsel %vm1082, %v991, %v1017
        %vm1091 = vcmask 785408
        %v1092 = vsel %vm1091, %v1083, %v1035
        %v1093 = vsel %vm1091, %v1084, %v1037
        %v1094 = vsel %vm1091, %v1085, %v1039
        %v1095 = vsel %vm1091, %v1086, %v1041
        %v1096 = vsel %vm1091, %v1087, %v1043
        %v1097 = vsel %vm1091, %v1088, %v1045
        %v1098 = vsel %vm1091, %v1089, %v1047
        %v1099 = vsel %vm1091, %v1090, %v1049
        %vm1100 = vcmask 130048
        %v1101 = vsel %vm1100, %v1035, %v1059
        %v1102 = vsel %vm1100, %v1037, %v1061
        %v1103 = vsel %vm1100, %v1039, %v1063
        %v1104 = vsel %vm1100, %v1041, %v1065
        %v1105 = vsel %vm1100, %v1043, %v1067
        %v1106 = vsel %vm1100, %v1045, %v1069
        %v1107 = vsel %vm1100, %v1047, %v1071
        %v1108 = vsel %vm1100, %v1049, %v1073
        %v1109 = vpack.c.bf16 %v1093, %v1092
        %v1110 = vpack.c.bf16 %v1102, %v1101
        %v1111 = vpack.c.bf16 %v1095, %v1094
        %v1112 = vpack.c.bf16 %v1104, %v1103
        %v1113 = vpack.c.bf16 %v1097, %v1096
        %v1114 = vpack.c.bf16 %v1106, %v1105
        %v1115 = vpack.c.bf16 %v1099, %v1098
        %v1116 = vpack.c.bf16 %v1108, %v1107
        %v1117 = vld [vmem:[%s2] sm:$0xf]
        %v1118 = vld [vmem:[%s2 + $0x4] sm:$0xf]
        %v1119 = vld [vmem:[%s2 + $0x8] sm:$0xf]
        %v1120 = vld [vmem:[%s2 + $0xc] sm:$0xf]
        %v1121 = vld [vmem:[%s2 + $0x10] sm:$0xf]
        %v1122 = vld [vmem:[%s2 + $0x14] sm:$0xf]
        %v1123 = vld [vmem:[%s2 + $0x18] sm:$0xf]
        %v1124 = vld [vmem:[%s2 + $0x1c] sm:$0xf]
        %v1125 = vld [vmem:[%s2 + $0x20] sm:$0xf]
        %v1126 = vld [vmem:[%s2 + $0x24] sm:$0xf]
        %v1127 = vld [vmem:[%s2 + $0x28] sm:$0xf]
        %v1128 = vld [vmem:[%s2 + $0x2c] sm:$0xf]
        %v1129 = vld [vmem:[%s2 + $0x30] sm:$0xf]
        %v1130 = vld [vmem:[%s2 + $0x34] sm:$0xf]
        %v1131 = vld [vmem:[%s2 + $0x38] sm:$0xf]
        %v1132 = vld [vmem:[%s2 + $0x3c] sm:$0xf]
        %v1133 = vld [vmem:[%s2 + $0x40] sm:$0xf]
        %v1134 = vld [vmem:[%s2 + $0x44] sm:$0xf]
        %v1135 = vld [vmem:[%s2 + $0x48] sm:$0xf]
        %v1136 = vld [vmem:[%s2 + $0x4c] sm:$0xf]
        %v1137 = vld [vmem:[%s2 + $0x50] sm:$0xf]
        %v1138 = vld [vmem:[%s2 + $0x54] sm:$0xf]
        %v1139 = vld [vmem:[%s2 + $0x58] sm:$0xf]
        %v1140 = vld [vmem:[%s2 + $0x5c] sm:$0xf]
        %v1141 = vld [vmem:[%s7] sm:$0x1]
        %v1143 = vlaneseq
        %v1144 = vshrl.u32 %v1143, 7
        %v1145 = vsub.s32 0, %v1144
        %v1146 = vrot.slane %v1141, %v1145
        %v1172 = vunpack.c.l.b16 %v1117
        %v1173 = vunpack.c.l.b16 %v1118
        %v1174 = vunpack.c.l.b16 %v1119
        %v1175 = vunpack.c.l.b16 %v1120
        %v1176 = vunpack.c.l.b16 %v1121
        %v1177 = vunpack.c.l.b16 %v1122
        %v1178 = vunpack.c.l.b16 %v1123
        %v1179 = vunpack.c.l.b16 %v1124
        %v1180 = vunpack.c.l.b16 %v1125
        %v1181 = vunpack.c.l.b16 %v1126
        %v1182 = vunpack.c.l.b16 %v1127
        %v1183 = vunpack.c.l.b16 %v1128
        %v1184 = vunpack.c.l.b16 %v1129
        %v1185 = vunpack.c.l.b16 %v1130
        %v1186 = vunpack.c.l.b16 %v1131
        %v1187 = vunpack.c.l.b16 %v1132
        %v1188 = vunpack.c.l.b16 %v1133
        %v1189 = vunpack.c.l.b16 %v1134
        %v1190 = vunpack.c.l.b16 %v1135
        %v1191 = vunpack.c.l.b16 %v1136
        %v1192 = vunpack.c.l.b16 %v1137
        %v1193 = vunpack.c.l.b16 %v1138
        %v1194 = vunpack.c.l.b16 %v1139
        %v1195 = vunpack.c.l.b16 %v1140
        %v1196 = vpack.c.b16 %v1173, %v1172
        %v1197 = vpack.c.b16 %v1175, %v1174
        %v1198 = vpack.c.b16 %v1177, %v1176
        %v1199 = vpack.c.b16 %v1179, %v1178
        %v1200 = vpack.c.b16 %v1181, %v1180
        %v1201 = vpack.c.b16 %v1183, %v1182
        %v1202 = vpack.c.b16 %v1185, %v1184
        %v1203 = vpack.c.b16 %v1187, %v1186
        %v1204 = vpack.c.b16 %v1189, %v1188
        %v1205 = vpack.c.b16 %v1191, %v1190
        %v1206 = vpack.c.b16 %v1193, %v1192
        %v1207 = vpack.c.b16 %v1195, %v1194
        %vm1220 = vcmask 523264
        %v1222 = vsel %vm1220, %v1110, 0
        %v1225 = vsel %vm1220, %v1112, 0
        %v1228 = vsel %vm1220, %v1114, 0
        %v1231 = vsel %vm1220, %v1116, 0
        %1233 = vmatprep.subr.bf16.mxu0 0
        %1234 = vmatpush1.bf16.msra.mxu0 %v1196
        %1235 = vmatprep.subr.bf16.mxu0 0
        %1236 = vmatpush1.bf16.msra.mxu0 %v1197
        %1237 = vmatprep.subr.bf16.mxu0 0
        %1238 = vmatpush1.bf16.msra.mxu0 %v1198
        %1239 = vmatprep.subr.bf16.mxu0 0
        %1240 = vmatpush1.bf16.msra.mxu0 %v1199
        %1241 = vmatprep.subr.bf16.mxu0 0
        %1242 = vmatpush1.bf16.msra.mxu0 %v1200
        %1243 = vmatprep.subr.bf16.mxu0 0
        %1244 = vmatpush1.bf16.msra.mxu0 %v1201
        %1245 = vmatprep.subr.bf16.mxu0 0
        %1246 = vmatpush1.bf16.msra.mxu0 %v1202
        %1247 = vmatprep.subr.bf16.mxu0 0
        %1248 = vmatpush1.bf16.msra.mxu0 %v1203
        %1249 = vmatprep.subr.bf16.mxu0 0
        %1250 = vmatpush1.bf16.msra.mxu0 %v1204
        %1251 = vmatprep.subr.bf16.mxu0 0
        %1252 = vmatpush1.bf16.msra.mxu0 %v1205
        %1253 = vmatprep.subr.bf16.mxu0 0
        %1254 = vmatpush1.bf16.msra.mxu0 %v1206
        %1255 = vmatprep.subr.bf16.mxu0 0
        %1256 = vmatpush1.bf16.msra.mxu0 %v1207
        %1257 = vmatprep.subr.bf16.mxu0 0
        %1258 = vmatpush1.bf16.msra.mxu0 0
        %1259 = vmatprep.subr.bf16.mxu0 0
        %1260 = vmatpush1.bf16.msra.mxu0 0
        %1261 = vmatprep.subr.bf16.mxu0 0
        %1262 = vmatpush1.bf16.msra.mxu0 0
        %1263 = vmatprep.subr.bf16.mxu0 0
        %1264 = vmatpush1.bf16.msra.mxu0 0
        %1265 = vmatprep.mubr.bf16.mxu0 %v1222
        %1266 = vmatmul.mubr.bf16.gmra.mrb[0].mxu0 %v1109
        %v1267 = vpop.f32.mrb[0].mxu0
        %v1268 = vadd.f32 %v1146, %v1267
        %v1269 = vpop.f32.mrb[0].mxu0
        %v1270 = vpop.f32.mrb[0].mxu0
        %v1271 = vadd.f32 %v1146, %v1270
        %v1272 = vpop.f32.mrb[0].mxu0
        %1273 = vmatprep.mubr.bf16.mxu0 %v1225
        %1274 = vmatmul.mubr.bf16.gmra.mrb[0].mxu0 %v1111
        %v1275 = vpop.f32.mrb[0].mxu0
        %v1276 = vadd.f32 %v1146, %v1275
        %v1277 = vpop.f32.mrb[0].mxu0
        %v1278 = vpop.f32.mrb[0].mxu0
        %v1279 = vadd.f32 %v1146, %v1278
        %v1280 = vpop.f32.mrb[0].mxu0
        %1281 = vmatprep.mubr.bf16.mxu0 %v1228
        %1282 = vmatmul.mubr.bf16.gmra.mrb[0].mxu0 %v1113
        %v1283 = vpop.f32.mrb[0].mxu0
        %v1284 = vadd.f32 %v1146, %v1283
        %v1285 = vpop.f32.mrb[0].mxu0
        %v1286 = vpop.f32.mrb[0].mxu0
        %v1287 = vadd.f32 %v1146, %v1286
        %v1288 = vpop.f32.mrb[0].mxu0
        %1289 = vmatprep.mubr.bf16.mxu0 %v1231
        %1290 = vmatmul.mubr.bf16.gmra.mrb[0].mxu0 %v1115
        %v1291 = vpop.f32.mrb[0].mxu0
        %v1292 = vadd.f32 %v1146, %v1291
        %v1293 = vpop.f32.mrb[0].mxu0
        %v1294 = vpop.f32.mrb[0].mxu0
        %v1295 = vadd.f32 %v1146, %v1294
        %v1296 = vpop.f32.mrb[0].mxu0
        %1297 = vdwg.mxu0
        %vm1298 = vcmp.gt.f32.partialorder %v1268, 0.0
        %vm1299 = vcmp.gt.f32.partialorder %v1271, 0.0
        %vm1300 = vcmp.gt.f32.partialorder %v1276, 0.0
        %vm1301 = vcmp.gt.f32.partialorder %v1279, 0.0
        %vm1302 = vcmp.gt.f32.partialorder %v1284, 0.0
        %vm1303 = vcmp.gt.f32.partialorder %v1287, 0.0
        %vm1304 = vcmp.gt.f32.partialorder %v1292, 0.0
        %vm1305 = vcmp.gt.f32.partialorder %v1295, 0.0
        %v1306 = vmul.f32 %v1268, 0.01
        %v1307 = vmul.f32 %v1271, 0.01
        %v1308 = vmul.f32 %v1276, 0.01
        %v1309 = vmul.f32 %v1279, 0.01
        %v1310 = vmul.f32 %v1284, 0.01
        %v1311 = vmul.f32 %v1287, 0.01
        %v1312 = vmul.f32 %v1292, 0.01
        %v1313 = vmul.f32 %v1295, 0.01
        %v1314 = vsel %vm1298, %v1268, %v1306
        %v1315 = vsel %vm1299, %v1271, %v1307
        %v1316 = vsel %vm1300, %v1276, %v1308
        %v1317 = vsel %vm1301, %v1279, %v1309
        %v1318 = vsel %vm1302, %v1284, %v1310
        %v1319 = vsel %vm1303, %v1287, %v1311
        %v1320 = vsel %vm1304, %v1292, %v1312
        %v1321 = vsel %vm1305, %v1295, %v1313
        %1326 = vrot.lane.b32.xlu0 %v1314, 96
        %v1327 = vpop.permute.xlu0 %1326
        %1328 = vrot.lane.b32.xlu0 %v1316, 96
        %v1329 = vpop.permute.xlu0 %1328
        %1330 = vrot.lane.b32.xlu0 %v1318, 96
        %v1331 = vpop.permute.xlu0 %1330
        %1332 = vrot.lane.b32.xlu0 %v1320, 96
        %v1333 = vpop.permute.xlu0 %1332
        %1342 = vrot.lane.b32.xlu0 %v1315, 64
        %v1343 = vpop.permute.xlu0 %1342
        %1344 = vrot.lane.b32.xlu0 %v1317, 64
        %v1345 = vpop.permute.xlu0 %1344
        %1346 = vrot.lane.b32.xlu0 %v1319, 64
        %v1347 = vpop.permute.xlu0 %1346
        %1348 = vrot.lane.b32.xlu0 %v1321, 64
        %v1349 = vpop.permute.xlu0 %1348
        %1354 = vrot.lane.b32.xlu0 %v1316, 32
        %v1355 = vpop.permute.xlu0 %1354
        %1356 = vrot.lane.b32.xlu0 %v1318, 32
        %v1357 = vpop.permute.xlu0 %1356
        %1358 = vrot.lane.b32.xlu0 %v1320, 32
        %v1359 = vpop.permute.xlu0 %1358
        %1360 = vrot.lane.b32.xlu0 0.0, 32
        %v1361 = vpop.permute.xlu0 %1360
        %v1366 = vsel %vm1091, 0.0, %v1327
        %v1367 = vsel %vm1091, %v1315, %v1329
        %v1368 = vsel %vm1091, %v1317, %v1331
        %v1369 = vsel %vm1091, %v1319, %v1333
        %v1370 = vsel %vm1220, %v1327, %v1343
        %v1371 = vsel %vm1220, %v1329, %v1345
        %v1372 = vsel %vm1220, %v1331, %v1347
        %v1373 = vsel %vm1220, %v1333, %v1349
        %vm1374 = vcmask 261120
        %v1375 = vsel %vm1374, %v1343, %v1355
        %v1376 = vsel %vm1374, %v1345, %v1357
        %v1377 = vsel %vm1374, %v1347, %v1359
        %v1378 = vsel %vm1374, %v1349, %v1361
        %v1379 = vpack.c.bf16 %v1367, %v1366
        %v1380 = vpack.c.bf16 %v1371, %v1370
        %v1381 = vpack.c.bf16 %v1376, %v1375
        %v1382 = vpack.c.bf16 %v1369, %v1368
        %v1383 = vpack.c.bf16 %v1373, %v1372
        %v1384 = vpack.c.bf16 %v1378, %v1377
        %v1385 = vld [vmem:[%s3] sm:$0xff]
        %v1386 = vld [vmem:[%s3 + $0x8] sm:$0xff]
        %v1387 = vld [vmem:[%s3 + $0x10] sm:$0xff]
        %v1388 = vld [vmem:[%s3 + $0x18] sm:$0xff]
        %v1389 = vld [vmem:[%s3 + $0x20] sm:$0xff]
        %v1390 = vld [vmem:[%s3 + $0x28] sm:$0xff]
        %v1391 = vld [vmem:[%s3 + $0x30] sm:$0xff]
        %v1392 = vld [vmem:[%s3 + $0x38] sm:$0xff]
        %v1393 = vld [vmem:[%s3 + $0x40] sm:$0xff]
        %v1394 = vld [vmem:[%s3 + $0x48] sm:$0xff]
        %v1395 = vld [vmem:[%s3 + $0x50] sm:$0xff]
        %v1396 = vld [vmem:[%s3 + $0x58] sm:$0xff]
        %v1397 = vld [vmem:[%s3 + $0x60] sm:$0xff]
        %v1398 = vld [vmem:[%s3 + $0x68] sm:$0xff]
        %v1399 = vld [vmem:[%s3 + $0x70] sm:$0xff]
        %v1400 = vld [vmem:[%s3 + $0x78] sm:$0xff]
        %v1401 = vld [vmem:[%s3 + $0x80] sm:$0xff]
        %v1402 = vld [vmem:[%s3 + $0x88] sm:$0xff]
        %v1403 = vld [vmem:[%s3 + $0x90] sm:$0xff]
        %v1404 = vld [vmem:[%s3 + $0x98] sm:$0xff]
        %v1405 = vld [vmem:[%s3 + $0xa0] sm:$0xff]
        %v1406 = vld [vmem:[%s3 + $0xa8] sm:$0xff]
        %v1407 = vld [vmem:[%s3 + $0xb0] sm:$0xff]
        %v1408 = vld [vmem:[%s3 + $0xb8] sm:$0xff]
        %v1409 = vld [vmem:[%s3 + $0xc0] sm:$0xff]
        %v1410 = vld [vmem:[%s3 + $0xc8] sm:$0xff]
        %v1411 = vld [vmem:[%s3 + $0xd0] sm:$0xff]
        %v1412 = vld [vmem:[%s3 + $0xd8] sm:$0xff]
        %v1413 = vld [vmem:[%s3 + $0xe0] sm:$0xff]
        %v1414 = vld [vmem:[%s3 + $0xe8] sm:$0xff]
        %v1415 = vld [vmem:[%s3 + $0xf0] sm:$0xff]
        %v1416 = vld [vmem:[%s3 + $0xf8] sm:$0xff]
        %v1417 = vld [vmem:[%s3 + $0x100] sm:$0xff]
        %v1418 = vld [vmem:[%s3 + $0x108] sm:$0xff]
        %v1419 = vld [vmem:[%s3 + $0x110] sm:$0xff]
        %v1420 = vld [vmem:[%s3 + $0x118] sm:$0xff]
        %v1421 = vld [vmem:[%s3 + $0x120] sm:$0xff]
        %v1422 = vld [vmem:[%s3 + $0x128] sm:$0xff]
        %v1423 = vld [vmem:[%s3 + $0x130] sm:$0xff]
        %v1424 = vld [vmem:[%s3 + $0x138] sm:$0xff]
        %v1425 = vld [vmem:[%s3 + $0x140] sm:$0xff]
        %v1426 = vld [vmem:[%s3 + $0x148] sm:$0xff]
        %v1427 = vld [vmem:[%s3 + $0x150] sm:$0xff]
        %v1428 = vld [vmem:[%s3 + $0x158] sm:$0xff]
        %v1429 = vld [vmem:[%s3 + $0x160] sm:$0xff]
        %v1430 = vld [vmem:[%s3 + $0x168] sm:$0xff]
        %v1431 = vld [vmem:[%s3 + $0x170] sm:$0xff]
        %v1432 = vld [vmem:[%s3 + $0x178] sm:$0xff]
        %v1433 = vld [vmem:[%s8] sm:$0x3]
        %v1435 = vlaneseq
        %v1436 = vshrl.u32 %v1435, 7
        %v1437 = vsub.s32 0, %v1436
        %v1438 = vrot.slane %v1433, %v1437
        %v1439 = vlaneseq
        %v1440 = vshrl.u32 %v1439, 7
        %v1441 = vsub.s32 1, %v1440
        %v1442 = vrot.slane %v1433, %v1441
        %v1493 = vunpack.c.l.b16 %v1385
        %v1494 = vunpack.c.h.b16 %v1385
        %v1495 = vunpack.c.l.b16 %v1386
        %v1496 = vunpack.c.h.b16 %v1386
        %v1497 = vunpack.c.l.b16 %v1387
        %v1498 = vunpack.c.h.b16 %v1387
        %v1499 = vunpack.c.l.b16 %v1388
        %v1500 = vunpack.c.h.b16 %v1388
        %v1501 = vunpack.c.l.b16 %v1389
        %v1502 = vunpack.c.h.b16 %v1389
        %v1503 = vunpack.c.l.b16 %v1390
        %v1504 = vunpack.c.h.b16 %v1390
        %v1505 = vunpack.c.l.b16 %v1391
        %v1506 = vunpack.c.h.b16 %v1391
        %v1507 = vunpack.c.l.b16 %v1392
        %v1508 = vunpack.c.h.b16 %v1392
        %v1509 = vunpack.c.l.b16 %v1393
        %v1510 = vunpack.c.h.b16 %v1393
        %v1511 = vunpack.c.l.b16 %v1394
        %v1512 = vunpack.c.h.b16 %v1394
        %v1513 = vunpack.c.l.b16 %v1395
        %v1514 = vunpack.c.h.b16 %v1395
        %v1515 = vunpack.c.l.b16 %v1396
        %v1516 = vunpack.c.h.b16 %v1396
        %v1517 = vunpack.c.l.b16 %v1397
        %v1518 = vunpack.c.h.b16 %v1397
        %v1519 = vunpack.c.l.b16 %v1398
        %v1520 = vunpack.c.h.b16 %v1398
        %v1521 = vunpack.c.l.b16 %v1399
        %v1522 = vunpack.c.h.b16 %v1399
        %v1523 = vunpack.c.l.b16 %v1400
        %v1524 = vunpack.c.h.b16 %v1400
        %v1525 = vunpack.c.l.b16 %v1401
        %v1526 = vunpack.c.h.b16 %v1401
        %v1527 = vunpack.c.l.b16 %v1402
        %v1528 = vunpack.c.h.b16 %v1402
        %v1529 = vunpack.c.l.b16 %v1403
        %v1530 = vunpack.c.h.b16 %v1403
        %v1531 = vunpack.c.l.b16 %v1404
        %v1532 = vunpack.c.h.b16 %v1404
        %v1533 = vunpack.c.l.b16 %v1405
        %v1534 = vunpack.c.h.b16 %v1405
        %v1535 = vunpack.c.l.b16 %v1406
        %v1536 = vunpack.c.h.b16 %v1406
        %v1537 = vunpack.c.l.b16 %v1407
        %v1538 = vunpack.c.h.b16 %v1407
        %v1539 = vunpack.c.l.b16 %v1408
        %v1540 = vunpack.c.h.b16 %v1408
        %v1541 = vunpack.c.l.b16 %v1409
        %v1542 = vunpack.c.h.b16 %v1409
        %v1543 = vunpack.c.l.b16 %v1410
        %v1544 = vunpack.c.h.b16 %v1410
        %v1545 = vunpack.c.l.b16 %v1411
        %v1546 = vunpack.c.h.b16 %v1411
        %v1547 = vunpack.c.l.b16 %v1412
        %v1548 = vunpack.c.h.b16 %v1412
        %v1549 = vunpack.c.l.b16 %v1413
        %v1550 = vunpack.c.h.b16 %v1413
        %v1551 = vunpack.c.l.b16 %v1414
        %v1552 = vunpack.c.h.b16 %v1414
        %v1553 = vunpack.c.l.b16 %v1415
        %v1554 = vunpack.c.h.b16 %v1415
        %v1555 = vunpack.c.l.b16 %v1416
        %v1556 = vunpack.c.h.b16 %v1416
        %v1557 = vunpack.c.l.b16 %v1417
        %v1558 = vunpack.c.h.b16 %v1417
        %v1559 = vunpack.c.l.b16 %v1418
        %v1560 = vunpack.c.h.b16 %v1418
        %v1561 = vunpack.c.l.b16 %v1419
        %v1562 = vunpack.c.h.b16 %v1419
        %v1563 = vunpack.c.l.b16 %v1420
        %v1564 = vunpack.c.h.b16 %v1420
        %v1565 = vunpack.c.l.b16 %v1421
        %v1566 = vunpack.c.h.b16 %v1421
        %v1567 = vunpack.c.l.b16 %v1422
        %v1568 = vunpack.c.h.b16 %v1422
        %v1569 = vunpack.c.l.b16 %v1423
        %v1570 = vunpack.c.h.b16 %v1423
        %v1571 = vunpack.c.l.b16 %v1424
        %v1572 = vunpack.c.h.b16 %v1424
        %v1573 = vunpack.c.l.b16 %v1425
        %v1574 = vunpack.c.h.b16 %v1425
        %v1575 = vunpack.c.l.b16 %v1426
        %v1576 = vunpack.c.h.b16 %v1426
        %v1577 = vunpack.c.l.b16 %v1427
        %v1578 = vunpack.c.h.b16 %v1427
        %v1579 = vunpack.c.l.b16 %v1428
        %v1580 = vunpack.c.h.b16 %v1428
        %v1581 = vunpack.c.l.b16 %v1429
        %v1582 = vunpack.c.h.b16 %v1429
        %v1583 = vunpack.c.l.b16 %v1430
        %v1584 = vunpack.c.h.b16 %v1430
        %v1585 = vunpack.c.l.b16 %v1431
        %v1586 = vunpack.c.h.b16 %v1431
        %v1587 = vunpack.c.l.b16 %v1432
        %v1588 = vunpack.c.h.b16 %v1432
        %v1589 = vpack.c.b16 %v1495, %v1493
        %v1590 = vpack.c.b16 %v1496, %v1494
        %v1591 = vpack.c.b16 %v1499, %v1497
        %v1592 = vpack.c.b16 %v1500, %v1498
        %v1593 = vpack.c.b16 %v1503, %v1501
        %v1594 = vpack.c.b16 %v1504, %v1502
        %v1595 = vpack.c.b16 %v1507, %v1505
        %v1596 = vpack.c.b16 %v1508, %v1506
        %v1597 = vpack.c.b16 %v1511, %v1509
        %v1598 = vpack.c.b16 %v1512, %v1510
        %v1599 = vpack.c.b16 %v1515, %v1513
        %v1600 = vpack.c.b16 %v1516, %v1514
        %v1601 = vpack.c.b16 %v1519, %v1517
        %v1602 = vpack.c.b16 %v1520, %v1518
        %v1603 = vpack.c.b16 %v1523, %v1521
        %v1604 = vpack.c.b16 %v1524, %v1522
        %v1605 = vpack.c.b16 %v1527, %v1525
        %v1606 = vpack.c.b16 %v1528, %v1526
        %v1607 = vpack.c.b16 %v1531, %v1529
        %v1608 = vpack.c.b16 %v1532, %v1530
        %v1609 = vpack.c.b16 %v1535, %v1533
        %v1610 = vpack.c.b16 %v1536, %v1534
        %v1611 = vpack.c.b16 %v1539, %v1537
        %v1612 = vpack.c.b16 %v1540, %v1538
        %v1613 = vpack.c.b16 %v1543, %v1541
        %v1614 = vpack.c.b16 %v1544, %v1542
        %v1615 = vpack.c.b16 %v1547, %v1545
        %v1616 = vpack.c.b16 %v1548, %v1546
        %v1617 = vpack.c.b16 %v1551, %v1549
        %v1618 = vpack.c.b16 %v1552, %v1550
        %v1619 = vpack.c.b16 %v1555, %v1553
        %v1620 = vpack.c.b16 %v1556, %v1554
        %v1621 = vpack.c.b16 %v1559, %v1557
        %v1622 = vpack.c.b16 %v1560, %v1558
        %v1623 = vpack.c.b16 %v1563, %v1561
        %v1624 = vpack.c.b16 %v1564, %v1562
        %v1625 = vpack.c.b16 %v1567, %v1565
        %v1626 = vpack.c.b16 %v1568, %v1566
        %v1627 = vpack.c.b16 %v1571, %v1569
        %v1628 = vpack.c.b16 %v1572, %v1570
        %v1629 = vpack.c.b16 %v1575, %v1573
        %v1630 = vpack.c.b16 %v1576, %v1574
        %v1631 = vpack.c.b16 %v1579, %v1577
        %v1632 = vpack.c.b16 %v1580, %v1578
        %v1633 = vpack.c.b16 %v1583, %v1581
        %v1634 = vpack.c.b16 %v1584, %v1582
        %v1635 = vpack.c.b16 %v1587, %v1585
        %v1636 = vpack.c.b16 %v1588, %v1586
        %1685 = vmatprep.subr.bf16.mxu0 %v1590
        %1686 = vmatpush1.bf16.msra.mxu0 %v1589
        %1687 = vmatprep.subr.bf16.mxu0 %v1592
        %1688 = vmatpush1.bf16.msra.mxu0 %v1591
        %1689 = vmatprep.subr.bf16.mxu0 %v1594
        %1690 = vmatpush1.bf16.msra.mxu0 %v1593
        %1691 = vmatprep.subr.bf16.mxu0 %v1596
        %1692 = vmatpush1.bf16.msra.mxu0 %v1595
        %1693 = vmatprep.subr.bf16.mxu0 %v1598
        %1694 = vmatpush1.bf16.msra.mxu0 %v1597
        %1695 = vmatprep.subr.bf16.mxu0 %v1600
        %1696 = vmatpush1.bf16.msra.mxu0 %v1599
        %1697 = vmatprep.subr.bf16.mxu0 %v1602
        %1698 = vmatpush1.bf16.msra.mxu0 %v1601
        %1699 = vmatprep.subr.bf16.mxu0 %v1604
        %1700 = vmatpush1.bf16.msra.mxu0 %v1603
        %1701 = vmatprep.subr.bf16.mxu0 %v1606
        %1702 = vmatpush1.bf16.msra.mxu0 %v1605
        %1703 = vmatprep.subr.bf16.mxu0 %v1608
        %1704 = vmatpush1.bf16.msra.mxu0 %v1607
        %1705 = vmatprep.subr.bf16.mxu0 %v1610
        %1706 = vmatpush1.bf16.msra.mxu0 %v1609
        %1707 = vmatprep.subr.bf16.mxu0 %v1612
        %1708 = vmatpush1.bf16.msra.mxu0 %v1611
        %1709 = vmatprep.subr.bf16.mxu0 %v1614
        %1710 = vmatpush1.bf16.msra.mxu0 %v1613
        %1711 = vmatprep.subr.bf16.mxu0 %v1616
        %1712 = vmatpush1.bf16.msra.mxu0 %v1615
        %1713 = vmatprep.subr.bf16.mxu0 %v1618
        %1714 = vmatpush1.bf16.msra.mxu0 %v1617
        %1715 = vmatprep.subr.bf16.mxu0 %v1620
        %1716 = vmatpush1.bf16.msra.mxu0 %v1619
        %1717 = vmatprep.mubr.bf16.mxu0 %v1380
        %1718 = vmatmul.mubr.bf16.gmra.mrb[0].mxu0 %v1379
        %v1719 = vpop.f32.mrb[0].mxu0
        %v1720 = vadd.f32 %v1438, %v1719
        %v1721 = vpop.f32.mrb[0].mxu0
        %v1722 = vadd.f32 %v1442, %v1721
        %v1723 = vpop.f32.mrb[0].mxu0
        %v1724 = vadd.f32 %v1438, %v1723
        %v1725 = vpop.f32.mrb[0].mxu0
        %v1726 = vadd.f32 %v1442, %v1725
        %1727 = vmatprep.mubr.bf16.mxu0 %v1383
        %1728 = vmatmul.mubr.bf16.gmra.mrb[0].mxu0 %v1382
        %v1729 = vpop.f32.mrb[0].mxu0
        %v1730 = vadd.f32 %v1438, %v1729
        %v1731 = vpop.f32.mrb[0].mxu0
        %v1732 = vadd.f32 %v1442, %v1731
        %v1733 = vpop.f32.mrb[0].mxu0
        %v1734 = vadd.f32 %v1438, %v1733
        %v1735 = vpop.f32.mrb[0].mxu0
        %v1736 = vadd.f32 %v1442, %v1735
        %1737 = vdwg.mxu0
        %1738 = vmatprep.subr.bf16.mxu0 %v1622
        %1739 = vmatpush1.bf16.msra.mxu0 %v1621
        %1740 = vmatprep.subr.bf16.mxu0 %v1624
        %1741 = vmatpush1.bf16.msra.mxu0 %v1623
        %1742 = vmatprep.subr.bf16.mxu0 %v1626
        %1743 = vmatpush1.bf16.msra.mxu0 %v1625
        %1744 = vmatprep.subr.bf16.mxu0 %v1628
        %1745 = vmatpush1.bf16.msra.mxu0 %v1627
        %1746 = vmatprep.subr.bf16.mxu0 %v1630
        %1747 = vmatpush1.bf16.msra.mxu0 %v1629
        %1748 = vmatprep.subr.bf16.mxu0 %v1632
        %1749 = vmatpush1.bf16.msra.mxu0 %v1631
        %1750 = vmatprep.subr.bf16.mxu0 %v1634
        %1751 = vmatpush1.bf16.msra.mxu0 %v1633
        %1752 = vmatprep.subr.bf16.mxu0 %v1636
        %1753 = vmatpush1.bf16.msra.mxu0 %v1635
        %1754 = vmatprep.subr.bf16.mxu0 0
        %1755 = vmatpush1.bf16.msra.mxu0 0
        %1756 = vmatprep.subr.bf16.mxu0 0
        %1757 = vmatpush1.bf16.msra.mxu0 0
        %1758 = vmatprep.subr.bf16.mxu0 0
        %1759 = vmatpush1.bf16.msra.mxu0 0
        %1760 = vmatprep.subr.bf16.mxu0 0
        %1761 = vmatpush1.bf16.msra.mxu0 0
        %1762 = vmatprep.subr.bf16.mxu0 0
        %1763 = vmatpush1.bf16.msra.mxu0 0
        %1764 = vmatprep.subr.bf16.mxu0 0
        %1765 = vmatpush1.bf16.msra.mxu0 0
        %1766 = vmatprep.subr.bf16.mxu0 0
        %1767 = vmatpush1.bf16.msra.mxu0 0
        %1768 = vmatprep.subr.bf16.mxu0 0
        %1769 = vmatpush1.bf16.msra.mxu0 0
        %1770 = vmatprep.mubr.bf16.mxu0 0
        %1771 = vmatmul.mubr.bf16.gmra.mrb[0].mxu0 %v1381
        %v1772 = vpop.f32.mrb[0].mxu0
        %v1773 = vadd.f32 %v1720, %v1772
        %v1774 = vpop.f32.mrb[0].mxu0
        %v1775 = vadd.f32 %v1722, %v1774
        %v1776 = vpop.f32.mrb[0].mxu0
        %v1777 = vadd.f32 %v1724, %v1776
        %v1778 = vpop.f32.mrb[0].mxu0
        %v1779 = vadd.f32 %v1726, %v1778
        %1780 = vmatprep.mubr.bf16.mxu0 0
        %1781 = vmatmul.mubr.bf16.gmra.mrb[0].mxu0 %v1384
        %v1782 = vpop.f32.mrb[0].mxu0
        %v1783 = vadd.f32 %v1730, %v1782
        %v1784 = vpop.f32.mrb[0].mxu0
        %v1785 = vadd.f32 %v1732, %v1784
        %v1786 = vpop.f32.mrb[0].mxu0
        %v1787 = vadd.f32 %v1734, %v1786
        %v1788 = vpop.f32.mrb[0].mxu0
        %v1789 = vadd.f32 %v1736, %v1788
        %1790 = vdwg.mxu0
        %vm1791 = vcmp.gt.f32.partialorder %v1773, 0.0
        %vm1792 = vcmp.gt.f32.partialorder %v1775, 0.0
        %vm1793 = vcmp.gt.f32.partialorder %v1777, 0.0
        %vm1794 = vcmp.gt.f32.partialorder %v1779, 0.0
        %vm1795 = vcmp.gt.f32.partialorder %v1783, 0.0
        %vm1796 = vcmp.gt.f32.partialorder %v1785, 0.0
        %vm1797 = vcmp.gt.f32.partialorder %v1787, 0.0
        %vm1798 = vcmp.gt.f32.partialorder %v1789, 0.0
        %v1799 = vmul.f32 %v1773, 0.01
        %v1800 = vmul.f32 %v1775, 0.01
        %v1801 = vmul.f32 %v1777, 0.01
        %v1802 = vmul.f32 %v1779, 0.01
        %v1803 = vmul.f32 %v1783, 0.01
        %v1804 = vmul.f32 %v1785, 0.01
        %v1805 = vmul.f32 %v1787, 0.01
        %v1806 = vmul.f32 %v1789, 0.01
        %v1807 = vsel %vm1791, %v1773, %v1799
        %v1808 = vsel %vm1792, %v1775, %v1800
        %v1809 = vsel %vm1793, %v1777, %v1801
        %v1810 = vsel %vm1794, %v1779, %v1802
        %v1811 = vsel %vm1795, %v1783, %v1803
        %v1812 = vsel %vm1796, %v1785, %v1804
        %v1813 = vsel %vm1797, %v1787, %v1805
        %v1814 = vsel %vm1798, %v1789, %v1806
        %1819 = vrot.lane.b32.xlu0 %v1807, 64
        %v1820 = vpop.permute.xlu0 %1819
        %1821 = vrot.lane.b32.xlu0 %v1808, 64
        %v1822 = vpop.permute.xlu0 %1821
        %1823 = vrot.lane.b32.xlu0 %v1811, 64
        %v1824 = vpop.permute.xlu0 %1823
        %1825 = vrot.lane.b32.xlu0 %v1812, 64
        %v1826 = vpop.permute.xlu0 %1825
        %v1827 = vsel %vm1220, %v1820, %v1822
        %v1828 = vsel %vm1220, %v1824, %v1826
        %1833 = vrot.lane.b32.xlu0 0.0, 64
        %v1834 = vpop.permute.xlu0 %1833
        %v1836 = vsel %vm1220, 0.0, %v1820
        %v1837 = vsel %vm1220, %v1810, %v1824
        %v1838 = vsel %vm1220, %v1814, %v1834
        %v1839 = vpack.c.bf16 %v1809, 0.0
        %v1840 = vpack.c.bf16 %v1837, %v1836
        %v1841 = vpack.c.bf16 %v1828, %v1827
        %v1842 = vpack.c.bf16 %v1813, %v1809
        %v1843 = vpack.c.bf16 %v1838, %v1837
        %v1844 = vpack.c.bf16 %v1834, %v1828
        %v1845 = vld [vmem:[%s4] sm:$0xff]
        %v1846 = vld [vmem:[%s4 + $0x8] sm:$0xf]
        %v1847 = vld [vmem:[%s4 + $0xc] sm:$0xff]
        %v1848 = vld [vmem:[%s4 + $0x14] sm:$0xf]
        %v1849 = vld [vmem:[%s4 + $0x18] sm:$0xff]
        %v1850 = vld [vmem:[%s4 + $0x20] sm:$0xf]
        %v1851 = vld [vmem:[%s4 + $0x24] sm:$0xff]
        %v1852 = vld [vmem:[%s4 + $0x2c] sm:$0xf]
        %v1853 = vld [vmem:[%s4 + $0x30] sm:$0xff]
        %v1854 = vld [vmem:[%s4 + $0x38] sm:$0xf]
        %v1855 = vld [vmem:[%s4 + $0x3c] sm:$0xff]
        %v1856 = vld [vmem:[%s4 + $0x44] sm:$0xf]
        %v1857 = vld [vmem:[%s4 + $0x48] sm:$0xff]
        %v1858 = vld [vmem:[%s4 + $0x50] sm:$0xf]
        %v1859 = vld [vmem:[%s4 + $0x54] sm:$0xff]
        %v1860 = vld [vmem:[%s4 + $0x5c] sm:$0xf]
        %v1861 = vld [vmem:[%s4 + $0x60] sm:$0xff]
        %v1862 = vld [vmem:[%s4 + $0x68] sm:$0xf]
        %v1863 = vld [vmem:[%s4 + $0x6c] sm:$0xff]
        %v1864 = vld [vmem:[%s4 + $0x74] sm:$0xf]
        %v1865 = vld [vmem:[%s4 + $0x78] sm:$0xff]
        %v1866 = vld [vmem:[%s4 + $0x80] sm:$0xf]
        %v1867 = vld [vmem:[%s4 + $0x84] sm:$0xff]
        %v1868 = vld [vmem:[%s4 + $0x8c] sm:$0xf]
        %v1869 = vld [vmem:[%s4 + $0x90] sm:$0xff]
        %v1870 = vld [vmem:[%s4 + $0x98] sm:$0xf]
        %v1871 = vld [vmem:[%s4 + $0x9c] sm:$0xff]
        %v1872 = vld [vmem:[%s4 + $0xa4] sm:$0xf]
        %v1873 = vld [vmem:[%s4 + $0xa8] sm:$0xff]
        %v1874 = vld [vmem:[%s4 + $0xb0] sm:$0xf]
        %v1875 = vld [vmem:[%s4 + $0xb4] sm:$0xff]
        %v1876 = vld [vmem:[%s4 + $0xbc] sm:$0xf]
        %v1877 = vld [vmem:[%s4 + $0xc0] sm:$0xff]
        %v1878 = vld [vmem:[%s4 + $0xc8] sm:$0xf]
        %v1879 = vld [vmem:[%s4 + $0xcc] sm:$0xff]
        %v1880 = vld [vmem:[%s4 + $0xd4] sm:$0xf]
        %v1881 = vld [vmem:[%s4 + $0xd8] sm:$0xff]
        %v1882 = vld [vmem:[%s4 + $0xe0] sm:$0xf]
        %v1883 = vld [vmem:[%s4 + $0xe4] sm:$0xff]
        %v1884 = vld [vmem:[%s4 + $0xec] sm:$0xf]
        %v1885 = vld [vmem:[%s4 + $0xf0] sm:$0xff]
        %v1886 = vld [vmem:[%s4 + $0xf8] sm:$0xf]
        %v1887 = vld [vmem:[%s4 + $0xfc] sm:$0xff]
        %v1888 = vld [vmem:[%s4 + $0x104] sm:$0xf]
        %v1889 = vld [vmem:[%s4 + $0x108] sm:$0xff]
        %v1890 = vld [vmem:[%s4 + $0x110] sm:$0xf]
        %v1891 = vld [vmem:[%s4 + $0x114] sm:$0xff]
        %v1892 = vld [vmem:[%s4 + $0x11c] sm:$0xf]
        %v1893 = vld [vmem:[%s4 + $0x120] sm:$0xff]
        %v1894 = vld [vmem:[%s4 + $0x128] sm:$0xf]
        %v1895 = vld [vmem:[%s4 + $0x12c] sm:$0xff]
        %v1896 = vld [vmem:[%s4 + $0x134] sm:$0xf]
        %v1897 = vld [vmem:[%s4 + $0x138] sm:$0xff]
        %v1898 = vld [vmem:[%s4 + $0x140] sm:$0xf]
        %v1899 = vld [vmem:[%s4 + $0x144] sm:$0xff]
        %v1900 = vld [vmem:[%s4 + $0x14c] sm:$0xf]
        %v1901 = vld [vmem:[%s4 + $0x150] sm:$0xff]
        %v1902 = vld [vmem:[%s4 + $0x158] sm:$0xf]
        %v1903 = vld [vmem:[%s4 + $0x15c] sm:$0xff]
        %v1904 = vld [vmem:[%s4 + $0x164] sm:$0xf]
        %v1905 = vld [vmem:[%s4 + $0x168] sm:$0xff]
        %v1906 = vld [vmem:[%s4 + $0x170] sm:$0xf]
        %v1907 = vld [vmem:[%s4 + $0x174] sm:$0xff]
        %v1908 = vld [vmem:[%s4 + $0x17c] sm:$0xf]
        %v1909 = vld [vmem:[%s4 + $0x180] sm:$0xff]
        %v1910 = vld [vmem:[%s4 + $0x188] sm:$0xf]
        %v1911 = vld [vmem:[%s4 + $0x18c] sm:$0xff]
        %v1912 = vld [vmem:[%s4 + $0x194] sm:$0xf]
        %v1913 = vld [vmem:[%s4 + $0x198] sm:$0xff]
        %v1914 = vld [vmem:[%s4 + $0x1a0] sm:$0xf]
        %v1915 = vld [vmem:[%s4 + $0x1a4] sm:$0xff]
        %v1916 = vld [vmem:[%s4 + $0x1ac] sm:$0xf]
        %v1917 = vld [vmem:[%s4 + $0x1b0] sm:$0xff]
        %v1918 = vld [vmem:[%s4 + $0x1b8] sm:$0xf]
        %v1919 = vld [vmem:[%s4 + $0x1bc] sm:$0xff]
        %v1920 = vld [vmem:[%s4 + $0x1c4] sm:$0xf]
        %v1921 = vld [vmem:[%s4 + $0x1c8] sm:$0xff]
        %v1922 = vld [vmem:[%s4 + $0x1d0] sm:$0xf]
        %v1923 = vld [vmem:[%s4 + $0x1d4] sm:$0xff]
        %v1924 = vld [vmem:[%s4 + $0x1dc] sm:$0xf]
        %v1925 = vld [vmem:[%s4 + $0x1e0] sm:$0xff]
        %v1926 = vld [vmem:[%s4 + $0x1e8] sm:$0xf]
        %v1927 = vld [vmem:[%s4 + $0x1ec] sm:$0xff]
        %v1928 = vld [vmem:[%s4 + $0x1f4] sm:$0xf]
        %v1929 = vld [vmem:[%s4 + $0x1f8] sm:$0xff]
        %v1930 = vld [vmem:[%s4 + $0x200] sm:$0xf]
        %v1931 = vld [vmem:[%s4 + $0x204] sm:$0xff]
        %v1932 = vld [vmem:[%s4 + $0x20c] sm:$0xf]
        %v1933 = vld [vmem:[%s4 + $0x210] sm:$0xff]
        %v1934 = vld [vmem:[%s4 + $0x218] sm:$0xf]
        %v1935 = vld [vmem:[%s4 + $0x21c] sm:$0xff]
        %v1936 = vld [vmem:[%s4 + $0x224] sm:$0xf]
        %v1937 = vld [vmem:[%s4 + $0x228] sm:$0xff]
        %v1938 = vld [vmem:[%s4 + $0x230] sm:$0xf]
        %v1939 = vld [vmem:[%s4 + $0x234] sm:$0xff]
        %v1940 = vld [vmem:[%s4 + $0x23c] sm:$0xf]
        %v1941 = vld [vmem:[%s4 + $0x240] sm:$0xff]
        %v1942 = vld [vmem:[%s4 + $0x248] sm:$0xf]
        %v1943 = vld [vmem:[%s4 + $0x24c] sm:$0xff]
        %v1944 = vld [vmem:[%s4 + $0x254] sm:$0xf]
        %v1945 = vld [vmem:[%s4 + $0x258] sm:$0xff]
        %v1946 = vld [vmem:[%s4 + $0x260] sm:$0xf]
        %v1947 = vld [vmem:[%s4 + $0x264] sm:$0xff]
        %v1948 = vld [vmem:[%s4 + $0x26c] sm:$0xf]
        %v1949 = vld [vmem:[%s4 + $0x270] sm:$0xff]
        %v1950 = vld [vmem:[%s4 + $0x278] sm:$0xf]
        %v1951 = vld [vmem:[%s4 + $0x27c] sm:$0xff]
        %v1952 = vld [vmem:[%s4 + $0x284] sm:$0xf]
        %v1953 = vld [vmem:[%s4 + $0x288] sm:$0xff]
        %v1954 = vld [vmem:[%s4 + $0x290] sm:$0xf]
        %v1955 = vld [vmem:[%s4 + $0x294] sm:$0xff]
        %v1956 = vld [vmem:[%s4 + $0x29c] sm:$0xf]
        %v1957 = vld [vmem:[%s4 + $0x2a0] sm:$0xff]
        %v1958 = vld [vmem:[%s4 + $0x2a8] sm:$0xf]
        %v1959 = vld [vmem:[%s4 + $0x2ac] sm:$0xff]
        %v1960 = vld [vmem:[%s4 + $0x2b4] sm:$0xf]
        %v1961 = vld [vmem:[%s4 + $0x2b8] sm:$0xff]
        %v1962 = vld [vmem:[%s4 + $0x2c0] sm:$0xf]
        %v1963 = vld [vmem:[%s4 + $0x2c4] sm:$0xff]
        %v1964 = vld [vmem:[%s4 + $0x2cc] sm:$0xf]
        %v1965 = vld [vmem:[%s4 + $0x2d0] sm:$0xff]
        %v1966 = vld [vmem:[%s4 + $0x2d8] sm:$0xf]
        %v1967 = vld [vmem:[%s4 + $0x2dc] sm:$0xff]
        %v1968 = vld [vmem:[%s4 + $0x2e4] sm:$0xf]
        %v1969 = vld [vmem:[%s4 + $0x2e8] sm:$0xff]
        %v1970 = vld [vmem:[%s4 + $0x2f0] sm:$0xf]
        %v1971 = vld [vmem:[%s4 + $0x2f4] sm:$0xff]
        %v1972 = vld [vmem:[%s4 + $0x2fc] sm:$0xf]
        %v1973 = vld [vmem:[%s4 + $0x300] sm:$0xff]
        %v1974 = vld [vmem:[%s4 + $0x308] sm:$0xf]
        %v1975 = vld [vmem:[%s4 + $0x30c] sm:$0xff]
        %v1976 = vld [vmem:[%s4 + $0x314] sm:$0xf]
        %v1977 = vld [vmem:[%s4 + $0x318] sm:$0xff]
        %v1978 = vld [vmem:[%s4 + $0x320] sm:$0xf]
        %v1979 = vld [vmem:[%s4 + $0x324] sm:$0xff]
        %v1980 = vld [vmem:[%s4 + $0x32c] sm:$0xf]
        %v1981 = vld [vmem:[%s4 + $0x330] sm:$0xff]
        %v1982 = vld [vmem:[%s4 + $0x338] sm:$0xf]
        %v1983 = vld [vmem:[%s4 + $0x33c] sm:$0xff]
        %v1984 = vld [vmem:[%s4 + $0x344] sm:$0xf]
        %v1985 = vld [vmem:[%s4 + $0x348] sm:$0xff]
        %v1986 = vld [vmem:[%s4 + $0x350] sm:$0xf]
        %v1987 = vld [vmem:[%s4 + $0x354] sm:$0xff]
        %v1988 = vld [vmem:[%s4 + $0x35c] sm:$0xf]
        %v1989 = vld [vmem:[%s4 + $0x360] sm:$0xff]
        %v1990 = vld [vmem:[%s4 + $0x368] sm:$0xf]
        %v1991 = vld [vmem:[%s4 + $0x36c] sm:$0xff]
        %v1992 = vld [vmem:[%s4 + $0x374] sm:$0xf]
        %v1993 = vld [vmem:[%s4 + $0x378] sm:$0xff]
        %v1994 = vld [vmem:[%s4 + $0x380] sm:$0xf]
        %v1995 = vld [vmem:[%s4 + $0x384] sm:$0xff]
        %v1996 = vld [vmem:[%s4 + $0x38c] sm:$0xf]
        %v1997 = vld [vmem:[%s4 + $0x390] sm:$0xff]
        %v1998 = vld [vmem:[%s4 + $0x398] sm:$0xf]
        %v1999 = vld [vmem:[%s4 + $0x39c] sm:$0xff]
        %v2000 = vld [vmem:[%s4 + $0x3a4] sm:$0xf]
        %v2001 = vld [vmem:[%s4 + $0x3a8] sm:$0xff]
        %v2002 = vld [vmem:[%s4 + $0x3b0] sm:$0xf]
        %v2003 = vld [vmem:[%s4 + $0x3b4] sm:$0xff]
        %v2004 = vld [vmem:[%s4 + $0x3bc] sm:$0xf]
        %v2005 = vld [vmem:[%s4 + $0x3c0] sm:$0xff]
        %v2006 = vld [vmem:[%s4 + $0x3c8] sm:$0xf]
        %v2007 = vld [vmem:[%s4 + $0x3cc] sm:$0xff]
        %v2008 = vld [vmem:[%s4 + $0x3d4] sm:$0xf]
        %v2009 = vld [vmem:[%s4 + $0x3d8] sm:$0xff]
        %v2010 = vld [vmem:[%s4 + $0x3e0] sm:$0xf]
        %v2011 = vld [vmem:[%s4 + $0x3e4] sm:$0xff]
        %v2012 = vld [vmem:[%s4 + $0x3ec] sm:$0xf]
        %v2013 = vld [vmem:[%s4 + $0x3f0] sm:$0xff]
        %v2014 = vld [vmem:[%s4 + $0x3f8] sm:$0xf]
        %v2015 = vld [vmem:[%s4 + $0x3fc] sm:$0xff]
        %v2016 = vld [vmem:[%s4 + $0x404] sm:$0xf]
        %v2017 = vld [vmem:[%s4 + $0x408] sm:$0xff]
        %v2018 = vld [vmem:[%s4 + $0x410] sm:$0xf]
        %v2019 = vld [vmem:[%s4 + $0x414] sm:$0xff]
        %v2020 = vld [vmem:[%s4 + $0x41c] sm:$0xf]
        %v2021 = vld [vmem:[%s4 + $0x420] sm:$0xff]
        %v2022 = vld [vmem:[%s4 + $0x428] sm:$0xf]
        %v2023 = vld [vmem:[%s4 + $0x42c] sm:$0xff]
        %v2024 = vld [vmem:[%s4 + $0x434] sm:$0xf]
        %v2025 = vld [vmem:[%s4 + $0x438] sm:$0xff]
        %v2026 = vld [vmem:[%s4 + $0x440] sm:$0xf]
        %v2027 = vld [vmem:[%s4 + $0x444] sm:$0xff]
        %v2028 = vld [vmem:[%s4 + $0x44c] sm:$0xf]
        %v2029 = vld [vmem:[%s4 + $0x450] sm:$0xff]
        %v2030 = vld [vmem:[%s4 + $0x458] sm:$0xf]
        %v2031 = vld [vmem:[%s4 + $0x45c] sm:$0xff]
        %v2032 = vld [vmem:[%s4 + $0x464] sm:$0xf]
        %v2033 = vld [vmem:[%s4 + $0x468] sm:$0xff]
        %v2034 = vld [vmem:[%s4 + $0x470] sm:$0xf]
        %v2035 = vld [vmem:[%s4 + $0x474] sm:$0xff]
        %v2036 = vld [vmem:[%s4 + $0x47c] sm:$0xf]
        %v2037 = vld [vmem:[%s9] sm:$0x7]
        %v2039 = vlaneseq
        %v2040 = vshrl.u32 %v2039, 7
        %v2041 = vsub.s32 0, %v2040
        %v2042 = vrot.slane %v2037, %v2041
        %v2043 = vlaneseq
        %v2044 = vshrl.u32 %v2043, 7
        %v2045 = vsub.s32 1, %v2044
        %v2046 = vrot.slane %v2037, %v2045
        %v2047 = vlaneseq
        %v2048 = vshrl.u32 %v2047, 7
        %v2049 = vsub.s32 2, %v2048
        %v2050 = vrot.slane %v2037, %v2049
        %v2246 = vunpack.c.l.b16 %v1845
        %v2247 = vunpack.c.h.b16 %v1845
        %v2248 = vunpack.c.l.b16 %v1846
        %v2249 = vunpack.c.l.b16 %v1847
        %v2250 = vunpack.c.h.b16 %v1847
        %v2251 = vunpack.c.l.b16 %v1848
        %v2252 = vunpack.c.l.b16 %v1849
        %v2253 = vunpack.c.h.b16 %v1849
        %v2254 = vunpack.c.l.b16 %v1850
        %v2255 = vunpack.c.l.b16 %v1851
        %v2256 = vunpack.c.h.b16 %v1851
        %v2257 = vunpack.c.l.b16 %v1852
        %v2258 = vunpack.c.l.b16 %v1853
        %v2259 = vunpack.c.h.b16 %v1853
        %v2260 = vunpack.c.l.b16 %v1854
        %v2261 = vunpack.c.l.b16 %v1855
        %v2262 = vunpack.c.h.b16 %v1855
        %v2263 = vunpack.c.l.b16 %v1856
        %v2264 = vunpack.c.l.b16 %v1857
        %v2265 = vunpack.c.h.b16 %v1857
        %v2266 = vunpack.c.l.b16 %v1858
        %v2267 = vunpack.c.l.b16 %v1859
        %v2268 = vunpack.c.h.b16 %v1859
        %v2269 = vunpack.c.l.b16 %v1860
        %v2270 = vunpack.c.l.b16 %v1861
        %v2271 = vunpack.c.h.b16 %v1861
        %v2272 = vunpack.c.l.b16 %v1862
        %v2273 = vunpack.c.l.b16 %v1863
        %v2274 = vunpack.c.h.b16 %v1863
        %v2275 = vunpack.c.l.b16 %v1864
        %v2276 = vunpack.c.l.b16 %v1865
        %v2277 = vunpack.c.h.b16 %v1865
        %v2278 = vunpack.c.l.b16 %v1866
        %v2279 = vunpack.c.l.b16 %v1867
        %v2280 = vunpack.c.h.b16 %v1867
        %v2281 = vunpack.c.l.b16 %v1868
        %v2282 = vunpack.c.l.b16 %v1869
        %v2283 = vunpack.c.h.b16 %v1869
        %v2284 = vunpack.c.l.b16 %v1870
        %v2285 = vunpack.c.l.b16 %v1871
        %v2286 = vunpack.c.h.b16 %v1871
        %v2287 = vunpack.c.l.b16 %v1872
        %v2288 = vunpack.c.l.b16 %v1873
        %v2289 = vunpack.c.h.b16 %v1873
        %v2290 = vunpack.c.l.b16 %v1874
        %v2291 = vunpack.c.l.b16 %v1875
        %v2292 = vunpack.c.h.b16 %v1875
        %v2293 = vunpack.c.l.b16 %v1876
        %v2294 = vunpack.c.l.b16 %v1877
        %v2295 = vunpack.c.h.b16 %v1877
        %v2296 = vunpack.c.l.b16 %v1878
        %v2297 = vunpack.c.l.b16 %v1879
        %v2298 = vunpack.c.h.b16 %v1879
        %v2299 = vunpack.c.l.b16 %v1880
        %v2300 = vunpack.c.l.b16 %v1881
        %v2301 = vunpack.c.h.b16 %v1881
        %v2302 = vunpack.c.l.b16 %v1882
        %v2303 = vunpack.c.l.b16 %v1883
        %v2304 = vunpack.c.h.b16 %v1883
        %v2305 = vunpack.c.l.b16 %v1884
        %v2306 = vunpack.c.l.b16 %v1885
        %v2307 = vunpack.c.h.b16 %v1885
        %v2308 = vunpack.c.l.b16 %v1886
        %v2309 = vunpack.c.l.b16 %v1887
        %v2310 = vunpack.c.h.b16 %v1887
        %v2311 = vunpack.c.l.b16 %v1888
        %v2312 = vunpack.c.l.b16 %v1889
        %v2313 = vunpack.c.h.b16 %v1889
        %v2314 = vunpack.c.l.b16 %v1890
        %v2315 = vunpack.c.l.b16 %v1891
        %v2316 = vunpack.c.h.b16 %v1891
        %v2317 = vunpack.c.l.b16 %v1892
        %v2318 = vunpack.c.l.b16 %v1893
        %v2319 = vunpack.c.h.b16 %v1893
        %v2320 = vunpack.c.l.b16 %v1894
        %v2321 = vunpack.c.l.b16 %v1895
        %v2322 = vunpack.c.h.b16 %v1895
        %v2323 = vunpack.c.l.b16 %v1896
        %v2324 = vunpack.c.l.b16 %v1897
        %v2325 = vunpack.c.h.b16 %v1897
        %v2326 = vunpack.c.l.b16 %v1898
        %v2327 = vunpack.c.l.b16 %v1899
        %v2328 = vunpack.c.h.b16 %v1899
        %v2329 = vunpack.c.l.b16 %v1900
        %v2330 = vunpack.c.l.b16 %v1901
        %v2331 = vunpack.c.h.b16 %v1901
        %v2332 = vunpack.c.l.b16 %v1902
        %v2333 = vunpack.c.l.b16 %v1903
        %v2334 = vunpack.c.h.b16 %v1903
        %v2335 = vunpack.c.l.b16 %v1904
        %v2336 = vunpack.c.l.b16 %v1905
        %v2337 = vunpack.c.h.b16 %v1905
        %v2338 = vunpack.c.l.b16 %v1906
        %v2339 = vunpack.c.l.b16 %v1907
        %v2340 = vunpack.c.h.b16 %v1907
        %v2341 = vunpack.c.l.b16 %v1908
        %v2342 = vunpack.c.l.b16 %v1909
        %v2343 = vunpack.c.h.b16 %v1909
        %v2344 = vunpack.c.l.b16 %v1910
        %v2345 = vunpack.c.l.b16 %v1911
        %v2346 = vunpack.c.h.b16 %v1911
        %v2347 = vunpack.c.l.b16 %v1912
        %v2348 = vunpack.c.l.b16 %v1913
        %v2349 = vunpack.c.h.b16 %v1913
        %v2350 = vunpack.c.l.b16 %v1914
        %v2351 = vunpack.c.l.b16 %v1915
        %v2352 = vunpack.c.h.b16 %v1915
        %v2353 = vunpack.c.l.b16 %v1916
        %v2354 = vunpack.c.l.b16 %v1917
        %v2355 = vunpack.c.h.b16 %v1917
        %v2356 = vunpack.c.l.b16 %v1918
        %v2357 = vunpack.c.l.b16 %v1919
        %v2358 = vunpack.c.h.b16 %v1919
        %v2359 = vunpack.c.l.b16 %v1920
        %v2360 = vunpack.c.l.b16 %v1921
        %v2361 = vunpack.c.h.b16 %v1921
        %v2362 = vunpack.c.l.b16 %v1922
        %v2363 = vunpack.c.l.b16 %v1923
        %v2364 = vunpack.c.h.b16 %v1923
        %v2365 = vunpack.c.l.b16 %v1924
        %v2366 = vunpack.c.l.b16 %v1925
        %v2367 = vunpack.c.h.b16 %v1925
        %v2368 = vunpack.c.l.b16 %v1926
        %v2369 = vunpack.c.l.b16 %v1927
        %v2370 = vunpack.c.h.b16 %v1927
        %v2371 = vunpack.c.l.b16 %v1928
        %v2372 = vunpack.c.l.b16 %v1929
        %v2373 = vunpack.c.h.b16 %v1929
        %v2374 = vunpack.c.l.b16 %v1930
        %v2375 = vunpack.c.l.b16 %v1931
        %v2376 = vunpack.c.h.b16 %v1931
        %v2377 = vunpack.c.l.b16 %v1932
        %v2378 = vunpack.c.l.b16 %v1933
        %v2379 = vunpack.c.h.b16 %v1933
        %v2380 = vunpack.c.l.b16 %v1934
        %v2381 = vunpack.c.l.b16 %v1935
        %v2382 = vunpack.c.h.b16 %v1935
        %v2383 = vunpack.c.l.b16 %v1936
        %v2384 = vunpack.c.l.b16 %v1937
        %v2385 = vunpack.c.h.b16 %v1937
        %v2386 = vunpack.c.l.b16 %v1938
        %v2387 = vunpack.c.l.b16 %v1939
        %v2388 = vunpack.c.h.b16 %v1939
        %v2389 = vunpack.c.l.b16 %v1940
        %v2390 = vunpack.c.l.b16 %v1941
        %v2391 = vunpack.c.h.b16 %v1941
        %v2392 = vunpack.c.l.b16 %v1942
        %v2393 = vunpack.c.l.b16 %v1943
        %v2394 = vunpack.c.h.b16 %v1943
        %v2395 = vunpack.c.l.b16 %v1944
        %v2396 = vunpack.c.l.b16 %v1945
        %v2397 = vunpack.c.h.b16 %v1945
        %v2398 = vunpack.c.l.b16 %v1946
        %v2399 = vunpack.c.l.b16 %v1947
        %v2400 = vunpack.c.h.b16 %v1947
        %v2401 = vunpack.c.l.b16 %v1948
        %v2402 = vunpack.c.l.b16 %v1949
        %v2403 = vunpack.c.h.b16 %v1949
        %v2404 = vunpack.c.l.b16 %v1950
        %v2405 = vunpack.c.l.b16 %v1951
        %v2406 = vunpack.c.h.b16 %v1951
        %v2407 = vunpack.c.l.b16 %v1952
        %v2408 = vunpack.c.l.b16 %v1953
        %v2409 = vunpack.c.h.b16 %v1953
        %v2410 = vunpack.c.l.b16 %v1954
        %v2411 = vunpack.c.l.b16 %v1955
        %v2412 = vunpack.c.h.b16 %v1955
        %v2413 = vunpack.c.l.b16 %v1956
        %v2414 = vunpack.c.l.b16 %v1957
        %v2415 = vunpack.c.h.b16 %v1957
        %v2416 = vunpack.c.l.b16 %v1958
        %v2417 = vunpack.c.l.b16 %v1959
        %v2418 = vunpack.c.h.b16 %v1959
        %v2419 = vunpack.c.l.b16 %v1960
        %v2420 = vunpack.c.l.b16 %v1961
        %v2421 = vunpack.c.h.b16 %v1961
        %v2422 = vunpack.c.l.b16 %v1962
        %v2423 = vunpack.c.l.b16 %v1963
        %v2424 = vunpack.c.h.b16 %v1963
        %v2425 = vunpack.c.l.b16 %v1964
        %v2426 = vunpack.c.l.b16 %v1965
        %v2427 = vunpack.c.h.b16 %v1965
        %v2428 = vunpack.c.l.b16 %v1966
        %v2429 = vunpack.c.l.b16 %v1967
        %v2430 = vunpack.c.h.b16 %v1967
        %v2431 = vunpack.c.l.b16 %v1968
        %v2432 = vunpack.c.l.b16 %v1969
        %v2433 = vunpack.c.h.b16 %v1969
        %v2434 = vunpack.c.l.b16 %v1970
        %v2435 = vunpack.c.l.b16 %v1971
        %v2436 = vunpack.c.h.b16 %v1971
        %v2437 = vunpack.c.l.b16 %v1972
        %v2438 = vunpack.c.l.b16 %v1973
        %v2439 = vunpack.c.h.b16 %v1973
        %v2440 = vunpack.c.l.b16 %v1974
        %v2441 = vunpack.c.l.b16 %v1975
        %v2442 = vunpack.c.h.b16 %v1975
        %v2443 = vunpack.c.l.b16 %v1976
        %v2444 = vunpack.c.l.b16 %v1977
        %v2445 = vunpack.c.h.b16 %v1977
        %v2446 = vunpack.c.l.b16 %v1978
        %v2447 = vunpack.c.l.b16 %v1979
        %v2448 = vunpack.c.h.b16 %v1979
        %v2449 = vunpack.c.l.b16 %v1980
        %v2450 = vunpack.c.l.b16 %v1981
        %v2451 = vunpack.c.h.b16 %v1981
        %v2452 = vunpack.c.l.b16 %v1982
        %v2453 = vunpack.c.l.b16 %v1983
        %v2454 = vunpack.c.h.b16 %v1983
        %v2455 = vunpack.c.l.b16 %v1984
        %v2456 = vunpack.c.l.b16 %v1985
        %v2457 = vunpack.c.h.b16 %v1985
        %v2458 = vunpack.c.l.b16 %v1986
        %v2459 = vunpack.c.l.b16 %v1987
        %v2460 = vunpack.c.h.b16 %v1987
        %v2461 = vunpack.c.l.b16 %v1988
        %v2462 = vunpack.c.l.b16 %v1989
        %v2463 = vunpack.c.h.b16 %v1989
        %v2464 = vunpack.c.l.b16 %v1990
        %v2465 = vunpack.c.l.b16 %v1991
        %v2466 = vunpack.c.h.b16 %v1991
        %v2467 = vunpack.c.l.b16 %v1992
        %v2468 = vunpack.c.l.b16 %v1993
        %v2469 = vunpack.c.h.b16 %v1993
        %v2470 = vunpack.c.l.b16 %v1994
        %v2471 = vunpack.c.l.b16 %v1995
        %v2472 = vunpack.c.h.b16 %v1995
        %v2473 = vunpack.c.l.b16 %v1996
        %v2474 = vunpack.c.l.b16 %v1997
        %v2475 = vunpack.c.h.b16 %v1997
        %v2476 = vunpack.c.l.b16 %v1998
        %v2477 = vunpack.c.l.b16 %v1999
        %v2478 = vunpack.c.h.b16 %v1999
        %v2479 = vunpack.c.l.b16 %v2000
        %v2480 = vunpack.c.l.b16 %v2001
        %v2481 = vunpack.c.h.b16 %v2001
        %v2482 = vunpack.c.l.b16 %v2002
        %v2483 = vunpack.c.l.b16 %v2003
        %v2484 = vunpack.c.h.b16 %v2003
        %v2485 = vunpack.c.l.b16 %v2004
        %v2486 = vunpack.c.l.b16 %v2005
        %v2487 = vunpack.c.h.b16 %v2005
        %v2488 = vunpack.c.l.b16 %v2006
        %v2489 = vunpack.c.l.b16 %v2007
        %v2490 = vunpack.c.h.b16 %v2007
        %v2491 = vunpack.c.l.b16 %v2008
        %v2492 = vunpack.c.l.b16 %v2009
        %v2493 = vunpack.c.h.b16 %v2009
        %v2494 = vunpack.c.l.b16 %v2010
        %v2495 = vunpack.c.l.b16 %v2011
        %v2496 = vunpack.c.h.b16 %v2011
        %v2497 = vunpack.c.l.b16 %v2012
        %v2498 = vunpack.c.l.b16 %v2013
        %v2499 = vunpack.c.h.b16 %v2013
        %v2500 = vunpack.c.l.b16 %v2014
        %v2501 = vunpack.c.l.b16 %v2015
        %v2502 = vunpack.c.h.b16 %v2015
        %v2503 = vunpack.c.l.b16 %v2016
        %v2504 = vunpack.c.l.b16 %v2017
        %v2505 = vunpack.c.h.b16 %v2017
        %v2506 = vunpack.c.l.b16 %v2018
        %v2507 = vunpack.c.l.b16 %v2019
        %v2508 = vunpack.c.h.b16 %v2019
        %v2509 = vunpack.c.l.b16 %v2020
        %v2510 = vunpack.c.l.b16 %v2021
        %v2511 = vunpack.c.h.b16 %v2021
        %v2512 = vunpack.c.l.b16 %v2022
        %v2513 = vunpack.c.l.b16 %v2023
        %v2514 = vunpack.c.h.b16 %v2023
        %v2515 = vunpack.c.l.b16 %v2024
        %v2516 = vunpack.c.l.b16 %v2025
        %v2517 = vunpack.c.h.b16 %v2025
        %v2518 = vunpack.c.l.b16 %v2026
        %v2519 = vunpack.c.l.b16 %v2027
        %v2520 = vunpack.c.h.b16 %v2027
        %v2521 = vunpack.c.l.b16 %v2028
        %v2522 = vunpack.c.l.b16 %v2029
        %v2523 = vunpack.c.h.b16 %v2029
        %v2524 = vunpack.c.l.b16 %v2030
        %v2525 = vunpack.c.l.b16 %v2031
        %v2526 = vunpack.c.h.b16 %v2031
        %v2527 = vunpack.c.l.b16 %v2032
        %v2528 = vunpack.c.l.b16 %v2033
        %v2529 = vunpack.c.h.b16 %v2033
        %v2530 = vunpack.c.l.b16 %v2034
        %v2531 = vunpack.c.l.b16 %v2035
        %v2532 = vunpack.c.h.b16 %v2035
        %v2533 = vunpack.c.l.b16 %v2036
        %v2534 = vpack.c.b16 %v2249, %v2246
        %v2535 = vpack.c.b16 %v2250, %v2247
        %v2536 = vpack.c.b16 %v2251, %v2248
        %v2537 = vpack.c.b16 %v2255, %v2252
        %v2538 = vpack.c.b16 %v2256, %v2253
        %v2539 = vpack.c.b16 %v2257, %v2254
        %v2540 = vpack.c.b16 %v2261, %v2258
        %v2541 = vpack.c.b16 %v2262, %v2259
        %v2542 = vpack.c.b16 %v2263, %v2260
        %v2543 = vpack.c.b16 %v2267, %v2264
        %v2544 = vpack.c.b16 %v2268, %v2265
        %v2545 = vpack.c.b16 %v2269, %v2266
        %v2546 = vpack.c.b16 %v2273, %v2270
        %v2547 = vpack.c.b16 %v2274, %v2271
        %v2548 = vpack.c.b16 %v2275, %v2272
        %v2549 = vpack.c.b16 %v2279, %v2276
        %v2550 = vpack.c.b16 %v2280, %v2277
        %v2551 = vpack.c.b16 %v2281, %v2278
        %v2552 = vpack.c.b16 %v2285, %v2282
        %v2553 = vpack.c.b16 %v2286, %v2283
        %v2554 = vpack.c.b16 %v2287, %v2284
        %v2555 = vpack.c.b16 %v2291, %v2288
        %v2556 = vpack.c.b16 %v2292, %v2289
        %v2557 = vpack.c.b16 %v2293, %v2290
        %v2558 = vpack.c.b16 %v2297, %v2294
        %v2559 = vpack.c.b16 %v2298, %v2295
        %v2560 = vpack.c.b16 %v2299, %v2296
        %v2561 = vpack.c.b16 %v2303, %v2300
        %v2562 = vpack.c.b16 %v2304, %v2301
        %v2563 = vpack.c.b16 %v2305, %v2302
        %v2564 = vpack.c.b16 %v2309, %v2306
        %v2565 = vpack.c.b16 %v2310, %v2307
        %v2566 = vpack.c.b16 %v2311, %v2308
        %v2567 = vpack.c.b16 %v2315, %v2312
        %v2568 = vpack.c.b16 %v2316, %v2313
        %v2569 = vpack.c.b16 %v2317, %v2314
        %v2570 = vpack.c.b16 %v2321, %v2318
        %v2571 = vpack.c.b16 %v2322, %v2319
        %v2572 = vpack.c.b16 %v2323, %v2320
        %v2573 = vpack.c.b16 %v2327, %v2324
        %v2574 = vpack.c.b16 %v2328, %v2325
        %v2575 = vpack.c.b16 %v2329, %v2326
        %v2576 = vpack.c.b16 %v2333, %v2330
        %v2577 = vpack.c.b16 %v2334, %v2331
        %v2578 = vpack.c.b16 %v2335, %v2332
        %v2579 = vpack.c.b16 %v2339, %v2336
        %v2580 = vpack.c.b16 %v2340, %v2337
        %v2581 = vpack.c.b16 %v2341, %v2338
        %v2582 = vpack.c.b16 %v2345, %v2342
        %v2583 = vpack.c.b16 %v2346, %v2343
        %v2584 = vpack.c.b16 %v2347, %v2344
        %v2585 = vpack.c.b16 %v2351, %v2348
        %v2586 = vpack.c.b16 %v2352, %v2349
        %v2587 = vpack.c.b16 %v2353, %v2350
        %v2588 = vpack.c.b16 %v2357, %v2354
        %v2589 = vpack.c.b16 %v2358, %v2355
        %v2590 = vpack.c.b16 %v2359, %v2356
        %v2591 = vpack.c.b16 %v2363, %v2360
        %v2592 = vpack.c.b16 %v2364, %v2361
        %v2593 = vpack.c.b16 %v2365, %v2362
        %v2594 = vpack.c.b16 %v2369, %v2366
        %v2595 = vpack.c.b16 %v2370, %v2367
        %v2596 = vpack.c.b16 %v2371, %v2368
        %v2597 = vpack.c.b16 %v2375, %v2372
        %v2598 = vpack.c.b16 %v2376, %v2373
        %v2599 = vpack.c.b16 %v2377, %v2374
        %v2600 = vpack.c.b16 %v2381, %v2378
        %v2601 = vpack.c.b16 %v2382, %v2379
        %v2602 = vpack.c.b16 %v2383, %v2380
        %v2603 = vpack.c.b16 %v2387, %v2384
        %v2604 = vpack.c.b16 %v2388, %v2385
        %v2605 = vpack.c.b16 %v2389, %v2386
        %v2606 = vpack.c.b16 %v2393, %v2390
        %v2607 = vpack.c.b16 %v2394, %v2391
        %v2608 = vpack.c.b16 %v2395, %v2392
        %v2609 = vpack.c.b16 %v2399, %v2396
        %v2610 = vpack.c.b16 %v2400, %v2397
        %v2611 = vpack.c.b16 %v2401, %v2398
        %v2612 = vpack.c.b16 %v2405, %v2402
        %v2613 = vpack.c.b16 %v2406, %v2403
        %v2614 = vpack.c.b16 %v2407, %v2404
        %v2615 = vpack.c.b16 %v2411, %v2408
        %v2616 = vpack.c.b16 %v2412, %v2409
        %v2617 = vpack.c.b16 %v2413, %v2410
        %v2618 = vpack.c.b16 %v2417, %v2414
        %v2619 = vpack.c.b16 %v2418, %v2415
        %v2620 = vpack.c.b16 %v2419, %v2416
        %v2621 = vpack.c.b16 %v2423, %v2420
        %v2622 = vpack.c.b16 %v2424, %v2421
        %v2623 = vpack.c.b16 %v2425, %v2422
        %v2624 = vpack.c.b16 %v2429, %v2426
        %v2625 = vpack.c.b16 %v2430, %v2427
        %v2626 = vpack.c.b16 %v2431, %v2428
        %v2627 = vpack.c.b16 %v2435, %v2432
        %v2628 = vpack.c.b16 %v2436, %v2433
        %v2629 = vpack.c.b16 %v2437, %v2434
        %v2630 = vpack.c.b16 %v2441, %v2438
        %v2631 = vpack.c.b16 %v2442, %v2439
        %v2632 = vpack.c.b16 %v2443, %v2440
        %v2633 = vpack.c.b16 %v2447, %v2444
        %v2634 = vpack.c.b16 %v2448, %v2445
        %v2635 = vpack.c.b16 %v2449, %v2446
        %v2636 = vpack.c.b16 %v2453, %v2450
        %v2637 = vpack.c.b16 %v2454, %v2451
        %v2638 = vpack.c.b16 %v2455, %v2452
        %v2639 = vpack.c.b16 %v2459, %v2456
        %v2640 = vpack.c.b16 %v2460, %v2457
        %v2641 = vpack.c.b16 %v2461, %v2458
        %v2642 = vpack.c.b16 %v2465, %v2462
        %v2643 = vpack.c.b16 %v2466, %v2463
        %v2644 = vpack.c.b16 %v2467, %v2464
        %v2645 = vpack.c.b16 %v2471, %v2468
        %v2646 = vpack.c.b16 %v2472, %v2469
        %v2647 = vpack.c.b16 %v2473, %v2470
        %v2648 = vpack.c.b16 %v2477, %v2474
        %v2649 = vpack.c.b16 %v2478, %v2475
        %v2650 = vpack.c.b16 %v2479, %v2476
        %v2651 = vpack.c.b16 %v2483, %v2480
        %v2652 = vpack.c.b16 %v2484, %v2481
        %v2653 = vpack.c.b16 %v2485, %v2482
        %v2654 = vpack.c.b16 %v2489, %v2486
        %v2655 = vpack.c.b16 %v2490, %v2487
        %v2656 = vpack.c.b16 %v2491, %v2488
        %v2657 = vpack.c.b16 %v2495, %v2492
        %v2658 = vpack.c.b16 %v2496, %v2493
        %v2659 = vpack.c.b16 %v2497, %v2494
        %v2660 = vpack.c.b16 %v2501, %v2498
        %v2661 = vpack.c.b16 %v2502, %v2499
        %v2662 = vpack.c.b16 %v2503, %v2500
        %v2663 = vpack.c.b16 %v2507, %v2504
        %v2664 = vpack.c.b16 %v2508, %v2505
        %v2665 = vpack.c.b16 %v2509, %v2506
        %v2666 = vpack.c.b16 %v2513, %v2510
        %v2667 = vpack.c.b16 %v2514, %v2511
        %v2668 = vpack.c.b16 %v2515, %v2512
        %v2669 = vpack.c.b16 %v2519, %v2516
        %v2670 = vpack.c.b16 %v2520, %v2517
        %v2671 = vpack.c.b16 %v2521, %v2518
        %v2672 = vpack.c.b16 %v2525, %v2522
        %v2673 = vpack.c.b16 %v2526, %v2523
        %v2674 = vpack.c.b16 %v2527, %v2524
        %v2675 = vpack.c.b16 %v2531, %v2528
        %v2676 = vpack.c.b16 %v2532, %v2529
        %v2677 = vpack.c.b16 %v2533, %v2530
        %2822 = vmatprep.subr.bf16.mxu0 %v2535
        %2823 = vmatpush1.bf16.msra.mxu0 %v2534
        %2824 = vmatprep.subr.bf16.mxu0 %v2538
        %2825 = vmatpush1.bf16.msra.mxu0 %v2537
        %2826 = vmatprep.subr.bf16.mxu0 %v2541
        %2827 = vmatpush1.bf16.msra.mxu0 %v2540
        %2828 = vmatprep.subr.bf16.mxu0 %v2544
        %2829 = vmatpush1.bf16.msra.mxu0 %v2543
        %2830 = vmatprep.subr.bf16.mxu0 %v2547
        %2831 = vmatpush1.bf16.msra.mxu0 %v2546
        %2832 = vmatprep.subr.bf16.mxu0 %v2550
        %2833 = vmatpush1.bf16.msra.mxu0 %v2549
        %2834 = vmatprep.subr.bf16.mxu0 %v2553
        %2835 = vmatpush1.bf16.msra.mxu0 %v2552
        %2836 = vmatprep.subr.bf16.mxu0 %v2556
        %2837 = vmatpush1.bf16.msra.mxu0 %v2555
        %2838 = vmatprep.subr.bf16.mxu0 %v2559
        %2839 = vmatpush1.bf16.msra.mxu0 %v2558
        %2840 = vmatprep.subr.bf16.mxu0 %v2562
        %2841 = vmatpush1.bf16.msra.mxu0 %v2561
        %2842 = vmatprep.subr.bf16.mxu0 %v2565
        %2843 = vmatpush1.bf16.msra.mxu0 %v2564
        %2844 = vmatprep.subr.bf16.mxu0 %v2568
        %2845 = vmatpush1.bf16.msra.mxu0 %v2567
        %2846 = vmatprep.subr.bf16.mxu0 %v2571
        %2847 = vmatpush1.bf16.msra.mxu0 %v2570
        %2848 = vmatprep.subr.bf16.mxu0 %v2574
        %2849 = vmatpush1.bf16.msra.mxu0 %v2573
        %2850 = vmatprep.subr.bf16.mxu0 %v2577
        %2851 = vmatpush1.bf16.msra.mxu0 %v2576
        %2852 = vmatprep.subr.bf16.mxu0 %v2580
        %2853 = vmatpush1.bf16.msra.mxu0 %v2579
        %2854 = vmatprep.mubr.bf16.mxu0 %v1840
        %2855 = vmatmul.mubr.bf16.gmra.mrb[0].mxu0 %v1839
        %v2856 = vpop.f32.mrb[0].mxu0
        %v2857 = vadd.f32 %v2042, %v2856
        %v2858 = vpop.f32.mrb[0].mxu0
        %v2859 = vadd.f32 %v2046, %v2858
        %v2860 = vpop.f32.mrb[0].mxu0
        %v2861 = vadd.f32 %v2042, %v2860
        %v2862 = vpop.f32.mrb[0].mxu0
        %v2863 = vadd.f32 %v2046, %v2862
        %2864 = vdwg.mxu0
        %2865 = vmatprep.subr.bf16.mxu0 %v2583
        %2866 = vmatpush1.bf16.msra.mxu0 %v2582
        %2867 = vmatprep.subr.bf16.mxu0 %v2586
        %2868 = vmatpush1.bf16.msra.mxu0 %v2585
        %2869 = vmatprep.subr.bf16.mxu0 %v2589
        %2870 = vmatpush1.bf16.msra.mxu0 %v2588
        %2871 = vmatprep.subr.bf16.mxu0 %v2592
        %2872 = vmatpush1.bf16.msra.mxu0 %v2591
        %2873 = vmatprep.subr.bf16.mxu0 %v2595
        %2874 = vmatpush1.bf16.msra.mxu0 %v2594
        %2875 = vmatprep.subr.bf16.mxu0 %v2598
        %2876 = vmatpush1.bf16.msra.mxu0 %v2597
        %2877 = vmatprep.subr.bf16.mxu0 %v2601
        %2878 = vmatpush1.bf16.msra.mxu0 %v2600
        %2879 = vmatprep.subr.bf16.mxu0 %v2604
        %2880 = vmatpush1.bf16.msra.mxu0 %v2603
        %2881 = vmatprep.subr.bf16.mxu0 %v2607
        %2882 = vmatpush1.bf16.msra.mxu0 %v2606
        %2883 = vmatprep.subr.bf16.mxu0 %v2610
        %2884 = vmatpush1.bf16.msra.mxu0 %v2609
        %2885 = vmatprep.subr.bf16.mxu0 %v2613
        %2886 = vmatpush1.bf16.msra.mxu0 %v2612
        %2887 = vmatprep.subr.bf16.mxu0 %v2616
        %2888 = vmatpush1.bf16.msra.mxu0 %v2615
        %2889 = vmatprep.subr.bf16.mxu0 %v2619
        %2890 = vmatpush1.bf16.msra.mxu0 %v2618
        %2891 = vmatprep.subr.bf16.mxu0 %v2622
        %2892 = vmatpush1.bf16.msra.mxu0 %v2621
        %2893 = vmatprep.subr.bf16.mxu0 %v2625
        %2894 = vmatpush1.bf16.msra.mxu0 %v2624
        %2895 = vmatprep.subr.bf16.mxu0 %v2628
        %2896 = vmatpush1.bf16.msra.mxu0 %v2627
        %2897 = vmatprep.mubr.bf16.mxu0 %v1842
        %2898 = vmatmul.mubr.bf16.gmra.mrb[0].mxu0 %v1841
        %v2899 = vpop.f32.mrb[0].mxu0
        %v2900 = vadd.f32 %v2857, %v2899
        %v2901 = vpop.f32.mrb[0].mxu0
        %v2902 = vadd.f32 %v2859, %v2901
        %v2903 = vpop.f32.mrb[0].mxu0
        %v2904 = vadd.f32 %v2861, %v2903
        %v2905 = vpop.f32.mrb[0].mxu0
        %v2906 = vadd.f32 %v2863, %v2905
        %2907 = vdwg.mxu0
        %2908 = vmatprep.subr.bf16.mxu0 %v2631
        %2909 = vmatpush1.bf16.msra.mxu0 %v2630
        %2910 = vmatprep.subr.bf16.mxu0 %v2634
        %2911 = vmatpush1.bf16.msra.mxu0 %v2633
        %2912 = vmatprep.subr.bf16.mxu0 %v2637
        %2913 = vmatpush1.bf16.msra.mxu0 %v2636
        %2914 = vmatprep.subr.bf16.mxu0 %v2640
        %2915 = vmatpush1.bf16.msra.mxu0 %v2639
        %2916 = vmatprep.subr.bf16.mxu0 %v2643
        %2917 = vmatpush1.bf16.msra.mxu0 %v2642
        %2918 = vmatprep.subr.bf16.mxu0 %v2646
        %2919 = vmatpush1.bf16.msra.mxu0 %v2645
        %2920 = vmatprep.subr.bf16.mxu0 %v2649
        %2921 = vmatpush1.bf16.msra.mxu0 %v2648
        %2922 = vmatprep.subr.bf16.mxu0 %v2652
        %2923 = vmatpush1.bf16.msra.mxu0 %v2651
        %2924 = vmatprep.subr.bf16.mxu0 %v2655
        %2925 = vmatpush1.bf16.msra.mxu0 %v2654
        %2926 = vmatprep.subr.bf16.mxu0 %v2658
        %2927 = vmatpush1.bf16.msra.mxu0 %v2657
        %2928 = vmatprep.subr.bf16.mxu0 %v2661
        %2929 = vmatpush1.bf16.msra.mxu0 %v2660
        %2930 = vmatprep.subr.bf16.mxu0 %v2664
        %2931 = vmatpush1.bf16.msra.mxu0 %v2663
        %2932 = vmatprep.subr.bf16.mxu0 %v2667
        %2933 = vmatpush1.bf16.msra.mxu0 %v2666
        %2934 = vmatprep.subr.bf16.mxu0 %v2670
        %2935 = vmatpush1.bf16.msra.mxu0 %v2669
        %2936 = vmatprep.subr.bf16.mxu0 %v2673
        %2937 = vmatpush1.bf16.msra.mxu0 %v2672
        %2938 = vmatprep.subr.bf16.mxu0 %v2676
        %2939 = vmatpush1.bf16.msra.mxu0 %v2675
        %2940 = vmatprep.mubr.bf16.mxu0 %v1844
        %2941 = vmatmul.mubr.bf16.gmra.mrb[0].mxu0 %v1843
        %v2942 = vpop.f32.mrb[0].mxu0
        %v2943 = vadd.f32 %v2900, %v2942
        %v2944 = vpop.f32.mrb[0].mxu0
        %v2945 = vadd.f32 %v2902, %v2944
        %v2946 = vpop.f32.mrb[0].mxu0
        %v2947 = vadd.f32 %v2904, %v2946
        %v2948 = vpop.f32.mrb[0].mxu0
        %v2949 = vadd.f32 %v2906, %v2948
        %2950 = vdwg.mxu0
        %2951 = vmatprep.subr.bf16.mxu0 0
        %2952 = vmatpush1.bf16.msra.mxu0 %v2536
        %2953 = vmatprep.subr.bf16.mxu0 0
        %2954 = vmatpush1.bf16.msra.mxu0 %v2539
        %2955 = vmatprep.subr.bf16.mxu0 0
        %2956 = vmatpush1.bf16.msra.mxu0 %v2542
        %2957 = vmatprep.subr.bf16.mxu0 0
        %2958 = vmatpush1.bf16.msra.mxu0 %v2545
        %2959 = vmatprep.subr.bf16.mxu0 0
        %2960 = vmatpush1.bf16.msra.mxu0 %v2548
        %2961 = vmatprep.subr.bf16.mxu0 0
        %2962 = vmatpush1.bf16.msra.mxu0 %v2551
        %2963 = vmatprep.subr.bf16.mxu0 0
        %2964 = vmatpush1.bf16.msra.mxu0 %v2554
        %2965 = vmatprep.subr.bf16.mxu0 0
        %2966 = vmatpush1.bf16.msra.mxu0 %v2557
        %2967 = vmatprep.subr.bf16.mxu0 0
        %2968 = vmatpush1.bf16.msra.mxu0 %v2560
        %2969 = vmatprep.subr.bf16.mxu0 0
        %2970 = vmatpush1.bf16.msra.mxu0 %v2563
        %2971 = vmatprep.subr.bf16.mxu0 0
        %2972 = vmatpush1.bf16.msra.mxu0 %v2566
        %2973 = vmatprep.subr.bf16.mxu0 0
        %2974 = vmatpush1.bf16.msra.mxu0 %v2569
        %2975 = vmatprep.subr.bf16.mxu0 0
        %2976 = vmatpush1.bf16.msra.mxu0 %v2572
        %2977 = vmatprep.subr.bf16.mxu0 0
        %2978 = vmatpush1.bf16.msra.mxu0 %v2575
        %2979 = vmatprep.subr.bf16.mxu0 0
        %2980 = vmatpush1.bf16.msra.mxu0 %v2578
        %2981 = vmatprep.subr.bf16.mxu0 0
        %2982 = vmatpush1.bf16.msra.mxu0 %v2581
        %2983 = vmatprep.mubr.bf16.mxu0 %v1840
        %2984 = vmatmul.mubr.bf16.gmra.mrb[0].mxu0 %v1839
        %v2985 = vpop.f32.mrb[0].mxu0
        %v2986 = vadd.f32 %v2050, %v2985
        %v2987 = vpop.f32.mrb[0].mxu0
        %v2988 = vpop.f32.mrb[0].mxu0
        %v2989 = vadd.f32 %v2050, %v2988
        %v2990 = vpop.f32.mrb[0].mxu0
        %2991 = vdwg.mxu0
        %2992 = vmatprep.subr.bf16.mxu0 0
        %2993 = vmatpush1.bf16.msra.mxu0 %v2584
        %2994 = vmatprep.subr.bf16.mxu0 0
        %2995 = vmatpush1.bf16.msra.mxu0 %v2587
        %2996 = vmatprep.subr.bf16.mxu0 0
        %2997 = vmatpush1.bf16.msra.mxu0 %v2590
        %2998 = vmatprep.subr.bf16.mxu0 0
        %2999 = vmatpush1.bf16.msra.mxu0 %v2593
        %3000 = vmatprep.subr.bf16.mxu0 0
        %3001 = vmatpush1.bf16.msra.mxu0 %v2596
        %3002 = vmatprep.subr.bf16.mxu0 0
        %3003 = vmatpush1.bf16.msra.mxu0 %v2599
        %3004 = vmatprep.subr.bf16.mxu0 0
        %3005 = vmatpush1.bf16.msra.mxu0 %v2602
        %3006 = vmatprep.subr.bf16.mxu0 0
        %3007 = vmatpush1.bf16.msra.mxu0 %v2605
        %3008 = vmatprep.subr.bf16.mxu0 0
        %3009 = vmatpush1.bf16.msra.mxu0 %v2608
        %3010 = vmatprep.subr.bf16.mxu0 0
        %3011 = vmatpush1.bf16.msra.mxu0 %v2611
        %3012 = vmatprep.subr.bf16.mxu0 0
        %3013 = vmatpush1.bf16.msra.mxu0 %v2614
        %3014 = vmatprep.subr.bf16.mxu0 0
        %3015 = vmatpush1.bf16.msra.mxu0 %v2617
        %3016 = vmatprep.subr.bf16.mxu0 0
        %3017 = vmatpush1.bf16.msra.mxu0 %v2620
        %3018 = vmatprep.subr.bf16.mxu0 0
        %3019 = vmatpush1.bf16.msra.mxu0 %v2623
        %3020 = vmatprep.subr.bf16.mxu0 0
        %3021 = vmatpush1.bf16.msra.mxu0 %v2626
        %3022 = vmatprep.subr.bf16.mxu0 0
        %3023 = vmatpush1.bf16.msra.mxu0 %v2629
        %3024 = vmatprep.mubr.bf16.mxu0 %v1842
        %3025 = vmatmul.mubr.bf16.gmra.mrb[0].mxu0 %v1841
        %v3026 = vpop.f32.mrb[0].mxu0
        %v3027 = vadd.f32 %v2986, %v3026
        %v3028 = vpop.f32.mrb[0].mxu0
        %v3029 = vpop.f32.mrb[0].mxu0
        %v3030 = vadd.f32 %v2989, %v3029
        %v3031 = vpop.f32.mrb[0].mxu0
        %3032 = vdwg.mxu0
        %3033 = vmatprep.subr.bf16.mxu0 0
        %3034 = vmatpush1.bf16.msra.mxu0 %v2632
        %3035 = vmatprep.subr.bf16.mxu0 0
        %3036 = vmatpush1.bf16.msra.mxu0 %v2635
        %3037 = vmatprep.subr.bf16.mxu0 0
        %3038 = vmatpush1.bf16.msra.mxu0 %v2638
        %3039 = vmatprep.subr.bf16.mxu0 0
        %3040 = vmatpush1.bf16.msra.mxu0 %v2641
        %3041 = vmatprep.subr.bf16.mxu0 0
        %3042 = vmatpush1.bf16.msra.mxu0 %v2644
        %3043 = vmatprep.subr.bf16.mxu0 0
        %3044 = vmatpush1.bf16.msra.mxu0 %v2647
        %3045 = vmatprep.subr.bf16.mxu0 0
        %3046 = vmatpush1.bf16.msra.mxu0 %v2650
        %3047 = vmatprep.subr.bf16.mxu0 0
        %3048 = vmatpush1.bf16.msra.mxu0 %v2653
        %3049 = vmatprep.subr.bf16.mxu0 0
        %3050 = vmatpush1.bf16.msra.mxu0 %v2656
        %3051 = vmatprep.subr.bf16.mxu0 0
        %3052 = vmatpush1.bf16.msra.mxu0 %v2659
        %3053 = vmatprep.subr.bf16.mxu0 0
        %3054 = vmatpush1.bf16.msra.mxu0 %v2662
        %3055 = vmatprep.subr.bf16.mxu0 0
        %3056 = vmatpush1.bf16.msra.mxu0 %v2665
        %3057 = vmatprep.subr.bf16.mxu0 0
        %3058 = vmatpush1.bf16.msra.mxu0 %v2668
        %3059 = vmatprep.subr.bf16.mxu0 0
        %3060 = vmatpush1.bf16.msra.mxu0 %v2671
        %3061 = vmatprep.subr.bf16.mxu0 0
        %3062 = vmatpush1.bf16.msra.mxu0 %v2674
        %3063 = vmatprep.subr.bf16.mxu0 0
        %3064 = vmatpush1.bf16.msra.mxu0 %v2677
        %3065 = vmatprep.mubr.bf16.mxu0 %v1844
        %3066 = vmatmul.mubr.bf16.gmra.mrb[0].mxu0 %v1843
        %v3067 = vpop.f32.mrb[0].mxu0
        %v3068 = vadd.f32 %v3027, %v3067
        %v3069 = vpop.f32.mrb[0].mxu0
        %v3070 = vpop.f32.mrb[0].mxu0
        %v3071 = vadd.f32 %v3030, %v3070
        %v3072 = vpop.f32.mrb[0].mxu0
        %3073 = vdwg.mxu0
        %vm3074 = vcmp.gt.f32.partialorder %v2943, 0.0
        %vm3075 = vcmp.gt.f32.partialorder %v2945, 0.0
        %vm3076 = vcmp.gt.f32.partialorder %v3068, 0.0
        %vm3077 = vcmp.gt.f32.partialorder %v2947, 0.0
        %vm3078 = vcmp.gt.f32.partialorder %v2949, 0.0
        %vm3079 = vcmp.gt.f32.partialorder %v3071, 0.0
        %v3080 = vmul.f32 %v2943, 0.01
        %v3081 = vmul.f32 %v2945, 0.01
        %v3082 = vmul.f32 %v3068, 0.01
        %v3083 = vmul.f32 %v2947, 0.01
        %v3084 = vmul.f32 %v2949, 0.01
        %v3085 = vmul.f32 %v3071, 0.01
        %v3086 = vsel %vm3074, %v2943, %v3080
        %v3087 = vsel %vm3075, %v2945, %v3081
        %v3088 = vsel %vm3076, %v3068, %v3082
        %v3089 = vsel %vm3077, %v2947, %v3083
        %v3090 = vsel %vm3078, %v2949, %v3084
        %v3091 = vsel %vm3079, %v3071, %v3085
        %v3092 = vpack.c.bf16 0.0, 0.0
        %v3093 = vpack.c.bf16 %v3086, %v3086
        %v3094 = vpack.c.bf16 %v3087, %v3087
        %v3095 = vpack.c.bf16 %v3088, %v3088
        %v3096 = vpack.c.bf16 %v3089, %v3089
        %v3097 = vpack.c.bf16 %v3090, %v3090
        %v3098 = vpack.c.bf16 %v3091, %v3091
        %v3099 = vld [vmem:[%s5] sm:$0xf]
        %v3100 = vld [vmem:[%s5 + $0x4] sm:$0xf]
        %v3101 = vld [vmem:[%s5 + $0x8] sm:$0xf]
        %v3102 = vld [vmem:[%s5 + $0xc] sm:$0xf]
        %v3103 = vld [vmem:[%s5 + $0x10] sm:$0xf]
        %v3104 = vld [vmem:[%s5 + $0x14] sm:$0xf]
        %v3105 = vld [vmem:[%s5 + $0x18] sm:$0xf]
        %v3106 = vld [vmem:[%s5 + $0x1c] sm:$0xf]
        %v3107 = vld [vmem:[%s5 + $0x20] sm:$0xf]
        %v3108 = vld [vmem:[%s5 + $0x24] sm:$0xf]
        %v3109 = vld [vmem:[%s5 + $0x28] sm:$0xf]
        %v3110 = vld [vmem:[%s5 + $0x2c] sm:$0xf]
        %v3111 = vld [vmem:[%s5 + $0x30] sm:$0xf]
        %v3112 = vld [vmem:[%s5 + $0x34] sm:$0xf]
        %v3113 = vld [vmem:[%s5 + $0x38] sm:$0xf]
        %v3114 = vld [vmem:[%s5 + $0x3c] sm:$0xf]
        %v3115 = vld [vmem:[%s5 + $0x40] sm:$0xf]
        %v3116 = vld [vmem:[%s5 + $0x44] sm:$0xf]
        %v3117 = vld [vmem:[%s5 + $0x48] sm:$0xf]
        %v3118 = vld [vmem:[%s5 + $0x4c] sm:$0xf]
        %v3119 = vld [vmem:[%s5 + $0x50] sm:$0xf]
        %v3120 = vld [vmem:[%s5 + $0x54] sm:$0xf]
        %v3121 = vld [vmem:[%s5 + $0x58] sm:$0xf]
        %v3122 = vld [vmem:[%s5 + $0x5c] sm:$0xf]
        %v3123 = vld [vmem:[%s5 + $0x60] sm:$0xf]
        %v3124 = vld [vmem:[%s5 + $0x64] sm:$0xf]
        %v3125 = vld [vmem:[%s5 + $0x68] sm:$0xf]
        %v3126 = vld [vmem:[%s5 + $0x6c] sm:$0xf]
        %v3127 = vld [vmem:[%s5 + $0x70] sm:$0xf]
        %v3128 = vld [vmem:[%s5 + $0x74] sm:$0xf]
        %v3129 = vld [vmem:[%s5 + $0x78] sm:$0xf]
        %v3130 = vld [vmem:[%s5 + $0x7c] sm:$0xf]
        %v3131 = vld [vmem:[%s5 + $0x80] sm:$0xf]
        %v3132 = vld [vmem:[%s5 + $0x84] sm:$0xf]
        %v3133 = vld [vmem:[%s5 + $0x88] sm:$0xf]
        %v3134 = vld [vmem:[%s5 + $0x8c] sm:$0xf]
        %v3135 = vld [vmem:[%s5 + $0x90] sm:$0xf]
        %v3136 = vld [vmem:[%s5 + $0x94] sm:$0xf]
        %v3137 = vld [vmem:[%s5 + $0x98] sm:$0xf]
        %v3138 = vld [vmem:[%s5 + $0x9c] sm:$0xf]
        %v3139 = vld [vmem:[%s5 + $0xa0] sm:$0xf]
        %v3140 = vld [vmem:[%s5 + $0xa4] sm:$0xf]
        %v3141 = vld [vmem:[%s5 + $0xa8] sm:$0xf]
        %v3142 = vld [vmem:[%s5 + $0xac] sm:$0xf]
        %v3143 = vld [vmem:[%s5 + $0xb0] sm:$0xf]
        %v3144 = vld [vmem:[%s5 + $0xb4] sm:$0xf]
        %v3145 = vld [vmem:[%s5 + $0xb8] sm:$0xf]
        %v3146 = vld [vmem:[%s5 + $0xbc] sm:$0xf]
        %v3147 = vld [vmem:[%s5 + $0xc0] sm:$0xf]
        %v3148 = vld [vmem:[%s5 + $0xc4] sm:$0xf]
        %v3149 = vld [vmem:[%s5 + $0xc8] sm:$0xf]
        %v3150 = vld [vmem:[%s5 + $0xcc] sm:$0xf]
        %v3151 = vld [vmem:[%s5 + $0xd0] sm:$0xf]
        %v3152 = vld [vmem:[%s5 + $0xd4] sm:$0xf]
        %v3153 = vld [vmem:[%s5 + $0xd8] sm:$0xf]
        %v3154 = vld [vmem:[%s5 + $0xdc] sm:$0xf]
        %v3155 = vld [vmem:[%s5 + $0xe0] sm:$0xf]
        %v3156 = vld [vmem:[%s5 + $0xe4] sm:$0xf]
        %v3157 = vld [vmem:[%s5 + $0xe8] sm:$0xf]
        %v3158 = vld [vmem:[%s5 + $0xec] sm:$0xf]
        %v3159 = vld [vmem:[%s5 + $0xf0] sm:$0xf]
        %v3160 = vld [vmem:[%s5 + $0xf4] sm:$0xf]
        %v3161 = vld [vmem:[%s5 + $0xf8] sm:$0xf]
        %v3162 = vld [vmem:[%s5 + $0xfc] sm:$0xf]
        %v3163 = vld [vmem:[%s5 + $0x100] sm:$0xf]
        %v3164 = vld [vmem:[%s5 + $0x104] sm:$0xf]
        %v3165 = vld [vmem:[%s5 + $0x108] sm:$0xf]
        %v3166 = vld [vmem:[%s5 + $0x10c] sm:$0xf]
        %v3167 = vld [vmem:[%s5 + $0x110] sm:$0xf]
        %v3168 = vld [vmem:[%s5 + $0x114] sm:$0xf]
        %v3169 = vld [vmem:[%s5 + $0x118] sm:$0xf]
        %v3170 = vld [vmem:[%s5 + $0x11c] sm:$0xf]
        %v3171 = vld [vmem:[%s5 + $0x120] sm:$0xf]
        %v3172 = vld [vmem:[%s5 + $0x124] sm:$0xf]
        %v3173 = vld [vmem:[%s5 + $0x128] sm:$0xf]
        %v3174 = vld [vmem:[%s5 + $0x12c] sm:$0xf]
        %v3175 = vld [vmem:[%s5 + $0x130] sm:$0xf]
        %v3176 = vld [vmem:[%s5 + $0x134] sm:$0xf]
        %v3177 = vld [vmem:[%s5 + $0x138] sm:$0xf]
        %v3178 = vld [vmem:[%s5 + $0x13c] sm:$0xf]
        %v3179 = vld [vmem:[%s5 + $0x140] sm:$0xf]
        %v3180 = vld [vmem:[%s5 + $0x144] sm:$0xf]
        %v3181 = vld [vmem:[%s5 + $0x148] sm:$0xf]
        %v3182 = vld [vmem:[%s5 + $0x14c] sm:$0xf]
        %v3183 = vld [vmem:[%s5 + $0x150] sm:$0xf]
        %v3184 = vld [vmem:[%s5 + $0x154] sm:$0xf]
        %v3185 = vld [vmem:[%s5 + $0x158] sm:$0xf]
        %v3186 = vld [vmem:[%s5 + $0x15c] sm:$0xf]
        %v3187 = vld [vmem:[%s5 + $0x160] sm:$0xf]
        %v3188 = vld [vmem:[%s5 + $0x164] sm:$0xf]
        %v3189 = vld [vmem:[%s5 + $0x168] sm:$0xf]
        %v3190 = vld [vmem:[%s5 + $0x16c] sm:$0xf]
        %v3191 = vld [vmem:[%s5 + $0x170] sm:$0xf]
        %v3192 = vld [vmem:[%s5 + $0x174] sm:$0xf]
        %v3193 = vld [vmem:[%s5 + $0x178] sm:$0xf]
        %v3194 = vld [vmem:[%s5 + $0x17c] sm:$0xf]
        %v3195 = vld [vmem:[%s5 + $0x180] sm:$0xf]
        %v3196 = vld [vmem:[%s5 + $0x184] sm:$0xf]
        %v3197 = vld [vmem:[%s5 + $0x188] sm:$0xf]
        %v3198 = vld [vmem:[%s5 + $0x18c] sm:$0xf]
        %v3199 = vld [vmem:[%s5 + $0x190] sm:$0xf]
        %v3200 = vld [vmem:[%s5 + $0x194] sm:$0xf]
        %v3201 = vld [vmem:[%s5 + $0x198] sm:$0xf]
        %v3202 = vld [vmem:[%s5 + $0x19c] sm:$0xf]
        %v3203 = vld [vmem:[%s5 + $0x1a0] sm:$0xf]
        %v3204 = vld [vmem:[%s5 + $0x1a4] sm:$0xf]
        %v3205 = vld [vmem:[%s5 + $0x1a8] sm:$0xf]
        %v3206 = vld [vmem:[%s5 + $0x1ac] sm:$0xf]
        %v3207 = vld [vmem:[%s5 + $0x1b0] sm:$0xf]
        %v3208 = vld [vmem:[%s5 + $0x1b4] sm:$0xf]
        %v3209 = vld [vmem:[%s5 + $0x1b8] sm:$0xf]
        %v3210 = vld [vmem:[%s5 + $0x1bc] sm:$0xf]
        %v3211 = vld [vmem:[%s5 + $0x1c0] sm:$0xf]
        %v3212 = vld [vmem:[%s5 + $0x1c4] sm:$0xf]
        %v3213 = vld [vmem:[%s5 + $0x1c8] sm:$0xf]
        %v3214 = vld [vmem:[%s5 + $0x1cc] sm:$0xf]
        %v3215 = vld [vmem:[%s5 + $0x1d0] sm:$0xf]
        %v3216 = vld [vmem:[%s5 + $0x1d4] sm:$0xf]
        %v3217 = vld [vmem:[%s5 + $0x1d8] sm:$0xf]
        %v3218 = vld [vmem:[%s5 + $0x1dc] sm:$0xf]
        %v3219 = vld [vmem:[%s5 + $0x1e0] sm:$0xf]
        %v3220 = vld [vmem:[%s5 + $0x1e4] sm:$0xf]
        %v3221 = vld [vmem:[%s5 + $0x1e8] sm:$0xf]
        %v3222 = vld [vmem:[%s5 + $0x1ec] sm:$0xf]
        %v3223 = vld [vmem:[%s5 + $0x1f0] sm:$0xf]
        %v3224 = vld [vmem:[%s5 + $0x1f4] sm:$0xf]
        %v3225 = vld [vmem:[%s5 + $0x1f8] sm:$0xf]
        %v3226 = vld [vmem:[%s5 + $0x1fc] sm:$0xf]
        %v3227 = vld [vmem:[%s5 + $0x200] sm:$0xf]
        %v3228 = vld [vmem:[%s5 + $0x204] sm:$0xf]
        %v3229 = vld [vmem:[%s5 + $0x208] sm:$0xf]
        %v3230 = vld [vmem:[%s5 + $0x20c] sm:$0xf]
        %v3231 = vld [vmem:[%s5 + $0x210] sm:$0xf]
        %v3232 = vld [vmem:[%s5 + $0x214] sm:$0xf]
        %v3233 = vld [vmem:[%s5 + $0x218] sm:$0xf]
        %v3234 = vld [vmem:[%s5 + $0x21c] sm:$0xf]
        %v3235 = vld [vmem:[%s5 + $0x220] sm:$0xf]
        %v3236 = vld [vmem:[%s5 + $0x224] sm:$0xf]
        %v3237 = vld [vmem:[%s5 + $0x228] sm:$0xf]
        %v3238 = vld [vmem:[%s5 + $0x22c] sm:$0xf]
        %v3239 = vld [vmem:[%s5 + $0x230] sm:$0xf]
        %v3240 = vld [vmem:[%s5 + $0x234] sm:$0xf]
        %v3241 = vld [vmem:[%s5 + $0x238] sm:$0xf]
        %v3242 = vld [vmem:[%s5 + $0x23c] sm:$0xf]
        %v3243 = vld [vmem:[%s5 + $0x240] sm:$0xf]
        %v3244 = vld [vmem:[%s5 + $0x244] sm:$0xf]
        %v3245 = vld [vmem:[%s5 + $0x248] sm:$0xf]
        %v3246 = vld [vmem:[%s5 + $0x24c] sm:$0xf]
        %v3247 = vld [vmem:[%s5 + $0x250] sm:$0xf]
        %v3248 = vld [vmem:[%s5 + $0x254] sm:$0xf]
        %v3249 = vld [vmem:[%s5 + $0x258] sm:$0xf]
        %v3250 = vld [vmem:[%s5 + $0x25c] sm:$0xf]
        %v3251 = vld [vmem:[%s5 + $0x260] sm:$0xf]
        %v3252 = vld [vmem:[%s5 + $0x264] sm:$0xf]
        %v3253 = vld [vmem:[%s5 + $0x268] sm:$0xf]
        %v3254 = vld [vmem:[%s5 + $0x26c] sm:$0xf]
        %v3255 = vld [vmem:[%s5 + $0x270] sm:$0xf]
        %v3256 = vld [vmem:[%s5 + $0x274] sm:$0xf]
        %v3257 = vld [vmem:[%s5 + $0x278] sm:$0xf]
        %v3258 = vld [vmem:[%s5 + $0x27c] sm:$0xf]
        %v3259 = vld [vmem:[%s5 + $0x280] sm:$0xf]
        %v3260 = vld [vmem:[%s5 + $0x284] sm:$0xf]
        %v3261 = vld [vmem:[%s5 + $0x288] sm:$0xf]
        %v3262 = vld [vmem:[%s5 + $0x28c] sm:$0xf]
        %v3263 = vld [vmem:[%s5 + $0x290] sm:$0xf]
        %v3264 = vld [vmem:[%s5 + $0x294] sm:$0xf]
        %v3265 = vld [vmem:[%s5 + $0x298] sm:$0xf]
        %v3266 = vld [vmem:[%s5 + $0x29c] sm:$0xf]
        %v3267 = vld [vmem:[%s5 + $0x2a0] sm:$0xf]
        %v3268 = vld [vmem:[%s5 + $0x2a4] sm:$0xf]
        %v3269 = vld [vmem:[%s5 + $0x2a8] sm:$0xf]
        %v3270 = vld [vmem:[%s5 + $0x2ac] sm:$0xf]
        %v3271 = vld [vmem:[%s5 + $0x2b0] sm:$0xf]
        %v3272 = vld [vmem:[%s5 + $0x2b4] sm:$0xf]
        %v3273 = vld [vmem:[%s5 + $0x2b8] sm:$0xf]
        %v3274 = vld [vmem:[%s5 + $0x2bc] sm:$0xf]
        %v3275 = vld [vmem:[%s5 + $0x2c0] sm:$0xf]
        %v3276 = vld [vmem:[%s5 + $0x2c4] sm:$0xf]
        %v3277 = vld [vmem:[%s5 + $0x2c8] sm:$0xf]
        %v3278 = vld [vmem:[%s5 + $0x2cc] sm:$0xf]
        %v3279 = vld [vmem:[%s5 + $0x2d0] sm:$0xf]
        %v3280 = vld [vmem:[%s5 + $0x2d4] sm:$0xf]
        %v3281 = vld [vmem:[%s5 + $0x2d8] sm:$0xf]
        %v3282 = vld [vmem:[%s5 + $0x2dc] sm:$0xf]
        %v3283 = vld [vmem:[%s5 + $0x2e0] sm:$0xf]
        %v3284 = vld [vmem:[%s5 + $0x2e4] sm:$0xf]
        %v3285 = vld [vmem:[%s5 + $0x2e8] sm:$0xf]
        %v3286 = vld [vmem:[%s5 + $0x2ec] sm:$0xf]
        %v3287 = vld [vmem:[%s5 + $0x2f0] sm:$0xf]
        %v3288 = vld [vmem:[%s5 + $0x2f4] sm:$0xf]
        %v3289 = vld [vmem:[%s5 + $0x2f8] sm:$0xf]
        %v3290 = vld [vmem:[%s5 + $0x2fc] sm:$0xf]
        %v3291 = vld [vmem:[%s10] sm:$0x1]
        %v3293 = vlaneseq
        %v3294 = vshrl.u32 %v3293, 7
        %v3295 = vsub.s32 0, %v3294
        %v3296 = vrot.slane %v3291, %v3295
        %v3490 = vunpack.c.l.b16 %v3099
        %v3491 = vunpack.c.l.b16 %v3100
        %v3492 = vunpack.c.l.b16 %v3101
        %v3493 = vunpack.c.l.b16 %v3102
        %v3494 = vunpack.c.l.b16 %v3103
        %v3495 = vunpack.c.l.b16 %v3104
        %v3496 = vunpack.c.l.b16 %v3105
        %v3497 = vunpack.c.l.b16 %v3106
        %v3498 = vunpack.c.l.b16 %v3107
        %v3499 = vunpack.c.l.b16 %v3108
        %v3500 = vunpack.c.l.b16 %v3109
        %v3501 = vunpack.c.l.b16 %v3110
        %v3502 = vunpack.c.l.b16 %v3111
        %v3503 = vunpack.c.l.b16 %v3112
        %v3504 = vunpack.c.l.b16 %v3113
        %v3505 = vunpack.c.l.b16 %v3114
        %v3506 = vunpack.c.l.b16 %v3115
        %v3507 = vunpack.c.l.b16 %v3116
        %v3508 = vunpack.c.l.b16 %v3117
        %v3509 = vunpack.c.l.b16 %v3118
        %v3510 = vunpack.c.l.b16 %v3119
        %v3511 = vunpack.c.l.b16 %v3120
        %v3512 = vunpack.c.l.b16 %v3121
        %v3513 = vunpack.c.l.b16 %v3122
        %v3514 = vunpack.c.l.b16 %v3123
        %v3515 = vunpack.c.l.b16 %v3124
        %v3516 = vunpack.c.l.b16 %v3125
        %v3517 = vunpack.c.l.b16 %v3126
        %v3518 = vunpack.c.l.b16 %v3127
        %v3519 = vunpack.c.l.b16 %v3128
        %v3520 = vunpack.c.l.b16 %v3129
        %v3521 = vunpack.c.l.b16 %v3130
        %v3522 = vunpack.c.l.b16 %v3131
        %v3523 = vunpack.c.l.b16 %v3132
        %v3524 = vunpack.c.l.b16 %v3133
        %v3525 = vunpack.c.l.b16 %v3134
        %v3526 = vunpack.c.l.b16 %v3135
        %v3527 = vunpack.c.l.b16 %v3136
        %v3528 = vunpack.c.l.b16 %v3137
        %v3529 = vunpack.c.l.b16 %v3138
        %v3530 = vunpack.c.l.b16 %v3139
        %v3531 = vunpack.c.l.b16 %v3140
        %v3532 = vunpack.c.l.b16 %v3141
        %v3533 = vunpack.c.l.b16 %v3142
        %v3534 = vunpack.c.l.b16 %v3143
        %v3535 = vunpack.c.l.b16 %v3144
        %v3536 = vunpack.c.l.b16 %v3145
        %v3537 = vunpack.c.l.b16 %v3146
        %v3538 = vunpack.c.l.b16 %v3147
        %v3539 = vunpack.c.l.b16 %v3148
        %v3540 = vunpack.c.l.b16 %v3149
        %v3541 = vunpack.c.l.b16 %v3150
        %v3542 = vunpack.c.l.b16 %v3151
        %v3543 = vunpack.c.l.b16 %v3152
        %v3544 = vunpack.c.l.b16 %v3153
        %v3545 = vunpack.c.l.b16 %v3154
        %v3546 = vunpack.c.l.b16 %v3155
        %v3547 = vunpack.c.l.b16 %v3156
        %v3548 = vunpack.c.l.b16 %v3157
        %v3549 = vunpack.c.l.b16 %v3158
        %v3550 = vunpack.c.l.b16 %v3159
        %v3551 = vunpack.c.l.b16 %v3160
        %v3552 = vunpack.c.l.b16 %v3161
        %v3553 = vunpack.c.l.b16 %v3162
        %v3554 = vunpack.c.l.b16 %v3163
        %v3555 = vunpack.c.l.b16 %v3164
        %v3556 = vunpack.c.l.b16 %v3165
        %v3557 = vunpack.c.l.b16 %v3166
        %v3558 = vunpack.c.l.b16 %v3167
        %v3559 = vunpack.c.l.b16 %v3168
        %v3560 = vunpack.c.l.b16 %v3169
        %v3561 = vunpack.c.l.b16 %v3170
        %v3562 = vunpack.c.l.b16 %v3171
        %v3563 = vunpack.c.l.b16 %v3172
        %v3564 = vunpack.c.l.b16 %v3173
        %v3565 = vunpack.c.l.b16 %v3174
        %v3566 = vunpack.c.l.b16 %v3175
        %v3567 = vunpack.c.l.b16 %v3176
        %v3568 = vunpack.c.l.b16 %v3177
        %v3569 = vunpack.c.l.b16 %v3178
        %v3570 = vunpack.c.l.b16 %v3179
        %v3571 = vunpack.c.l.b16 %v3180
        %v3572 = vunpack.c.l.b16 %v3181
        %v3573 = vunpack.c.l.b16 %v3182
        %v3574 = vunpack.c.l.b16 %v3183
        %v3575 = vunpack.c.l.b16 %v3184
        %v3576 = vunpack.c.l.b16 %v3185
        %v3577 = vunpack.c.l.b16 %v3186
        %v3578 = vunpack.c.l.b16 %v3187
        %v3579 = vunpack.c.l.b16 %v3188
        %v3580 = vunpack.c.l.b16 %v3189
        %v3581 = vunpack.c.l.b16 %v3190
        %v3582 = vunpack.c.l.b16 %v3191
        %v3583 = vunpack.c.l.b16 %v3192
        %v3584 = vunpack.c.l.b16 %v3193
        %v3585 = vunpack.c.l.b16 %v3194
        %v3586 = vunpack.c.l.b16 %v3195
        %v3587 = vunpack.c.l.b16 %v3196
        %v3588 = vunpack.c.l.b16 %v3197
        %v3589 = vunpack.c.l.b16 %v3198
        %v3590 = vunpack.c.l.b16 %v3199
        %v3591 = vunpack.c.l.b16 %v3200
        %v3592 = vunpack.c.l.b16 %v3201
        %v3593 = vunpack.c.l.b16 %v3202
        %v3594 = vunpack.c.l.b16 %v3203
        %v3595 = vunpack.c.l.b16 %v3204
        %v3596 = vunpack.c.l.b16 %v3205
        %v3597 = vunpack.c.l.b16 %v3206
        %v3598 = vunpack.c.l.b16 %v3207
        %v3599 = vunpack.c.l.b16 %v3208
        %v3600 = vunpack.c.l.b16 %v3209
        %v3601 = vunpack.c.l.b16 %v3210
        %v3602 = vunpack.c.l.b16 %v3211
        %v3603 = vunpack.c.l.b16 %v3212
        %v3604 = vunpack.c.l.b16 %v3213
        %v3605 = vunpack.c.l.b16 %v3214
        %v3606 = vunpack.c.l.b16 %v3215
        %v3607 = vunpack.c.l.b16 %v3216
        %v3608 = vunpack.c.l.b16 %v3217
        %v3609 = vunpack.c.l.b16 %v3218
        %v3610 = vunpack.c.l.b16 %v3219
        %v3611 = vunpack.c.l.b16 %v3220
        %v3612 = vunpack.c.l.b16 %v3221
        %v3613 = vunpack.c.l.b16 %v3222
        %v3614 = vunpack.c.l.b16 %v3223
        %v3615 = vunpack.c.l.b16 %v3224
        %v3616 = vunpack.c.l.b16 %v3225
        %v3617 = vunpack.c.l.b16 %v3226
        %v3618 = vunpack.c.l.b16 %v3227
        %v3619 = vunpack.c.l.b16 %v3228
        %v3620 = vunpack.c.l.b16 %v3229
        %v3621 = vunpack.c.l.b16 %v3230
        %v3622 = vunpack.c.l.b16 %v3231
        %v3623 = vunpack.c.l.b16 %v3232
        %v3624 = vunpack.c.l.b16 %v3233
        %v3625 = vunpack.c.l.b16 %v3234
        %v3626 = vunpack.c.l.b16 %v3235
        %v3627 = vunpack.c.l.b16 %v3236
        %v3628 = vunpack.c.l.b16 %v3237
        %v3629 = vunpack.c.l.b16 %v3238
        %v3630 = vunpack.c.l.b16 %v3239
        %v3631 = vunpack.c.l.b16 %v3240
        %v3632 = vunpack.c.l.b16 %v3241
        %v3633 = vunpack.c.l.b16 %v3242
        %v3634 = vunpack.c.l.b16 %v3243
        %v3635 = vunpack.c.l.b16 %v3244
        %v3636 = vunpack.c.l.b16 %v3245
        %v3637 = vunpack.c.l.b16 %v3246
        %v3638 = vunpack.c.l.b16 %v3247
        %v3639 = vunpack.c.l.b16 %v3248
        %v3640 = vunpack.c.l.b16 %v3249
        %v3641 = vunpack.c.l.b16 %v3250
        %v3642 = vunpack.c.l.b16 %v3251
        %v3643 = vunpack.c.l.b16 %v3252
        %v3644 = vunpack.c.l.b16 %v3253
        %v3645 = vunpack.c.l.b16 %v3254
        %v3646 = vunpack.c.l.b16 %v3255
        %v3647 = vunpack.c.l.b16 %v3256
        %v3648 = vunpack.c.l.b16 %v3257
        %v3649 = vunpack.c.l.b16 %v3258
        %v3650 = vunpack.c.l.b16 %v3259
        %v3651 = vunpack.c.l.b16 %v3260
        %v3652 = vunpack.c.l.b16 %v3261
        %v3653 = vunpack.c.l.b16 %v3262
        %v3654 = vunpack.c.l.b16 %v3263
        %v3655 = vunpack.c.l.b16 %v3264
        %v3656 = vunpack.c.l.b16 %v3265
        %v3657 = vunpack.c.l.b16 %v3266
        %v3658 = vunpack.c.l.b16 %v3267
        %v3659 = vunpack.c.l.b16 %v3268
        %v3660 = vunpack.c.l.b16 %v3269
        %v3661 = vunpack.c.l.b16 %v3270
        %v3662 = vunpack.c.l.b16 %v3271
        %v3663 = vunpack.c.l.b16 %v3272
        %v3664 = vunpack.c.l.b16 %v3273
        %v3665 = vunpack.c.l.b16 %v3274
        %v3666 = vunpack.c.l.b16 %v3275
        %v3667 = vunpack.c.l.b16 %v3276
        %v3668 = vunpack.c.l.b16 %v3277
        %v3669 = vunpack.c.l.b16 %v3278
        %v3670 = vunpack.c.l.b16 %v3279
        %v3671 = vunpack.c.l.b16 %v3280
        %v3672 = vunpack.c.l.b16 %v3281
        %v3673 = vunpack.c.l.b16 %v3282
        %v3674 = vunpack.c.l.b16 %v3283
        %v3675 = vunpack.c.l.b16 %v3284
        %v3676 = vunpack.c.l.b16 %v3285
        %v3677 = vunpack.c.l.b16 %v3286
        %v3678 = vunpack.c.l.b16 %v3287
        %v3679 = vunpack.c.l.b16 %v3288
        %v3680 = vunpack.c.l.b16 %v3289
        %v3681 = vunpack.c.l.b16 %v3290
        %v3682 = vpack.c.b16 %v3491, %v3490
        %v3683 = vpack.c.b16 %v3493, %v3492
        %v3684 = vpack.c.b16 %v3495, %v3494
        %v3685 = vpack.c.b16 %v3497, %v3496
        %v3686 = vpack.c.b16 %v3499, %v3498
        %v3687 = vpack.c.b16 %v3501, %v3500
        %v3688 = vpack.c.b16 %v3503, %v3502
        %v3689 = vpack.c.b16 %v3505, %v3504
        %v3690 = vpack.c.b16 %v3507, %v3506
        %v3691 = vpack.c.b16 %v3509, %v3508
        %v3692 = vpack.c.b16 %v3511, %v3510
        %v3693 = vpack.c.b16 %v3513, %v3512
        %v3694 = vpack.c.b16 %v3515, %v3514
        %v3695 = vpack.c.b16 %v3517, %v3516
        %v3696 = vpack.c.b16 %v3519, %v3518
        %v3697 = vpack.c.b16 %v3521, %v3520
        %v3698 = vpack.c.b16 %v3523, %v3522
        %v3699 = vpack.c.b16 %v3525, %v3524
        %v3700 = vpack.c.b16 %v3527, %v3526
        %v3701 = vpack.c.b16 %v3529, %v3528
        %v3702 = vpack.c.b16 %v3531, %v3530
        %v3703 = vpack.c.b16 %v3533, %v3532
        %v3704 = vpack.c.b16 %v3535, %v3534
        %v3705 = vpack.c.b16 %v3537, %v3536
        %v3706 = vpack.c.b16 %v3539, %v3538
        %v3707 = vpack.c.b16 %v3541, %v3540
        %v3708 = vpack.c.b16 %v3543, %v3542
        %v3709 = vpack.c.b16 %v3545, %v3544
        %v3710 = vpack.c.b16 %v3547, %v3546
        %v3711 = vpack.c.b16 %v3549, %v3548
        %v3712 = vpack.c.b16 %v3551, %v3550
        %v3713 = vpack.c.b16 %v3553, %v3552
        %v3714 = vpack.c.b16 %v3555, %v3554
        %v3715 = vpack.c.b16 %v3557, %v3556
        %v3716 = vpack.c.b16 %v3559, %v3558
        %v3717 = vpack.c.b16 %v3561, %v3560
        %v3718 = vpack.c.b16 %v3563, %v3562
        %v3719 = vpack.c.b16 %v3565, %v3564
        %v3720 = vpack.c.b16 %v3567, %v3566
        %v3721 = vpack.c.b16 %v3569, %v3568
        %v3722 = vpack.c.b16 %v3571, %v3570
        %v3723 = vpack.c.b16 %v3573, %v3572
        %v3724 = vpack.c.b16 %v3575, %v3574
        %v3725 = vpack.c.b16 %v3577, %v3576
        %v3726 = vpack.c.b16 %v3579, %v3578
        %v3727 = vpack.c.b16 %v3581, %v3580
        %v3728 = vpack.c.b16 %v3583, %v3582
        %v3729 = vpack.c.b16 %v3585, %v3584
        %v3730 = vpack.c.b16 %v3587, %v3586
        %v3731 = vpack.c.b16 %v3589, %v3588
        %v3732 = vpack.c.b16 %v3591, %v3590
        %v3733 = vpack.c.b16 %v3593, %v3592
        %v3734 = vpack.c.b16 %v3595, %v3594
        %v3735 = vpack.c.b16 %v3597, %v3596
        %v3736 = vpack.c.b16 %v3599, %v3598
        %v3737 = vpack.c.b16 %v3601, %v3600
        %v3738 = vpack.c.b16 %v3603, %v3602
        %v3739 = vpack.c.b16 %v3605, %v3604
        %v3740 = vpack.c.b16 %v3607, %v3606
        %v3741 = vpack.c.b16 %v3609, %v3608
        %v3742 = vpack.c.b16 %v3611, %v3610
        %v3743 = vpack.c.b16 %v3613, %v3612
        %v3744 = vpack.c.b16 %v3615, %v3614
        %v3745 = vpack.c.b16 %v3617, %v3616
        %v3746 = vpack.c.b16 %v3619, %v3618
        %v3747 = vpack.c.b16 %v3621, %v3620
        %v3748 = vpack.c.b16 %v3623, %v3622
        %v3749 = vpack.c.b16 %v3625, %v3624
        %v3750 = vpack.c.b16 %v3627, %v3626
        %v3751 = vpack.c.b16 %v3629, %v3628
        %v3752 = vpack.c.b16 %v3631, %v3630
        %v3753 = vpack.c.b16 %v3633, %v3632
        %v3754 = vpack.c.b16 %v3635, %v3634
        %v3755 = vpack.c.b16 %v3637, %v3636
        %v3756 = vpack.c.b16 %v3639, %v3638
        %v3757 = vpack.c.b16 %v3641, %v3640
        %v3758 = vpack.c.b16 %v3643, %v3642
        %v3759 = vpack.c.b16 %v3645, %v3644
        %v3760 = vpack.c.b16 %v3647, %v3646
        %v3761 = vpack.c.b16 %v3649, %v3648
        %v3762 = vpack.c.b16 %v3651, %v3650
        %v3763 = vpack.c.b16 %v3653, %v3652
        %v3764 = vpack.c.b16 %v3655, %v3654
        %v3765 = vpack.c.b16 %v3657, %v3656
        %v3766 = vpack.c.b16 %v3659, %v3658
        %v3767 = vpack.c.b16 %v3661, %v3660
        %v3768 = vpack.c.b16 %v3663, %v3662
        %v3769 = vpack.c.b16 %v3665, %v3664
        %v3770 = vpack.c.b16 %v3667, %v3666
        %v3771 = vpack.c.b16 %v3669, %v3668
        %v3772 = vpack.c.b16 %v3671, %v3670
        %v3773 = vpack.c.b16 %v3673, %v3672
        %v3774 = vpack.c.b16 %v3675, %v3674
        %v3775 = vpack.c.b16 %v3677, %v3676
        %v3776 = vpack.c.b16 %v3679, %v3678
        %v3777 = vpack.c.b16 %v3681, %v3680
        %3874 = vmatprep.subr.bf16.mxu0 0
        %3875 = vmatpush1.bf16.msra.mxu0 %v3682
        %3876 = vmatprep.subr.bf16.mxu0 0
        %3877 = vmatpush1.bf16.msra.mxu0 %v3683
        %3878 = vmatprep.subr.bf16.mxu0 0
        %3879 = vmatpush1.bf16.msra.mxu0 %v3684
        %3880 = vmatprep.subr.bf16.mxu0 0
        %3881 = vmatpush1.bf16.msra.mxu0 %v3685
        %3882 = vmatprep.subr.bf16.mxu0 0
        %3883 = vmatpush1.bf16.msra.mxu0 %v3686
        %3884 = vmatprep.subr.bf16.mxu0 0
        %3885 = vmatpush1.bf16.msra.mxu0 %v3687
        %3886 = vmatprep.subr.bf16.mxu0 0
        %3887 = vmatpush1.bf16.msra.mxu0 %v3688
        %3888 = vmatprep.subr.bf16.mxu0 0
        %3889 = vmatpush1.bf16.msra.mxu0 %v3689
        %3890 = vmatprep.subr.bf16.mxu0 0
        %3891 = vmatpush1.bf16.msra.mxu0 %v3690
        %3892 = vmatprep.subr.bf16.mxu0 0
        %3893 = vmatpush1.bf16.msra.mxu0 %v3691
        %3894 = vmatprep.subr.bf16.mxu0 0
        %3895 = vmatpush1.bf16.msra.mxu0 %v3692
        %3896 = vmatprep.subr.bf16.mxu0 0
        %3897 = vmatpush1.bf16.msra.mxu0 %v3693
        %3898 = vmatprep.subr.bf16.mxu0 0
        %3899 = vmatpush1.bf16.msra.mxu0 %v3694
        %3900 = vmatprep.subr.bf16.mxu0 0
        %3901 = vmatpush1.bf16.msra.mxu0 %v3695
        %3902 = vmatprep.subr.bf16.mxu0 0
        %3903 = vmatpush1.bf16.msra.mxu0 %v3696
        %3904 = vmatprep.subr.bf16.mxu0 0
        %3905 = vmatpush1.bf16.msra.mxu0 %v3697
        %3906 = vmatprep.mubr.bf16.mxu0 %v3092
        %3907 = vmatmul.mubr.bf16.gmra.mrb[0].mxu0 %v3092
        %v3908 = vpop.f32.mrb[0].mxu0
        %v3909 = vadd.f32 %v3296, %v3908
        %v3910 = vpop.f32.mrb[0].mxu0
        %v3911 = vpop.f32.mrb[0].mxu0
        %v3912 = vpop.f32.mrb[0].mxu0
        %3913 = vdwg.mxu0
        %3914 = vmatprep.subr.bf16.mxu0 0
        %3915 = vmatpush1.bf16.msra.mxu0 %v3698
        %3916 = vmatprep.subr.bf16.mxu0 0
        %3917 = vmatpush1.bf16.msra.mxu0 %v3699
        %3918 = vmatprep.subr.bf16.mxu0 0
        %3919 = vmatpush1.bf16.msra.mxu0 %v3700
        %3920 = vmatprep.subr.bf16.mxu0 0
        %3921 = vmatpush1.bf16.msra.mxu0 %v3701
        %3922 = vmatprep.subr.bf16.mxu0 0
        %3923 = vmatpush1.bf16.msra.mxu0 %v3702
        %3924 = vmatprep.subr.bf16.mxu0 0
        %3925 = vmatpush1.bf16.msra.mxu0 %v3703
        %3926 = vmatprep.subr.bf16.mxu0 0
        %3927 = vmatpush1.bf16.msra.mxu0 %v3704
        %3928 = vmatprep.subr.bf16.mxu0 0
        %3929 = vmatpush1.bf16.msra.mxu0 %v3705
        %3930 = vmatprep.subr.bf16.mxu0 0
        %3931 = vmatpush1.bf16.msra.mxu0 %v3706
        %3932 = vmatprep.subr.bf16.mxu0 0
        %3933 = vmatpush1.bf16.msra.mxu0 %v3707
        %3934 = vmatprep.subr.bf16.mxu0 0
        %3935 = vmatpush1.bf16.msra.mxu0 %v3708
        %3936 = vmatprep.subr.bf16.mxu0 0
        %3937 = vmatpush1.bf16.msra.mxu0 %v3709
        %3938 = vmatprep.subr.bf16.mxu0 0
        %3939 = vmatpush1.bf16.msra.mxu0 %v3710
        %3940 = vmatprep.subr.bf16.mxu0 0
        %3941 = vmatpush1.bf16.msra.mxu0 %v3711
        %3942 = vmatprep.subr.bf16.mxu0 0
        %3943 = vmatpush1.bf16.msra.mxu0 %v3712
        %3944 = vmatprep.subr.bf16.mxu0 0
        %3945 = vmatpush1.bf16.msra.mxu0 %v3713
        %3946 = vmatprep.mubr.bf16.mxu0 %v3093
        %3947 = vmatmul.mubr.bf16.gmra.mrb[0].mxu0 %v3092
        %v3948 = vpop.f32.mrb[0].mxu0
        %v3949 = vadd.f32 %v3909, %v3948
        %v3950 = vpop.f32.mrb[0].mxu0
        %v3951 = vpop.f32.mrb[0].mxu0
        %v3952 = vpop.f32.mrb[0].mxu0
        %3953 = vdwg.mxu0
        %3954 = vmatprep.subr.bf16.mxu0 0
        %3955 = vmatpush1.bf16.msra.mxu0 %v3714
        %3956 = vmatprep.subr.bf16.mxu0 0
        %3957 = vmatpush1.bf16.msra.mxu0 %v3715
        %3958 = vmatprep.subr.bf16.mxu0 0
        %3959 = vmatpush1.bf16.msra.mxu0 %v3716
        %3960 = vmatprep.subr.bf16.mxu0 0
        %3961 = vmatpush1.bf16.msra.mxu0 %v3717
        %3962 = vmatprep.subr.bf16.mxu0 0
        %3963 = vmatpush1.bf16.msra.mxu0 %v3718
        %3964 = vmatprep.subr.bf16.mxu0 0
        %3965 = vmatpush1.bf16.msra.mxu0 %v3719
        %3966 = vmatprep.subr.bf16.mxu0 0
        %3967 = vmatpush1.bf16.msra.mxu0 %v3720
        %3968 = vmatprep.subr.bf16.mxu0 0
        %3969 = vmatpush1.bf16.msra.mxu0 %v3721
        %3970 = vmatprep.subr.bf16.mxu0 0
        %3971 = vmatpush1.bf16.msra.mxu0 %v3722
        %3972 = vmatprep.subr.bf16.mxu0 0
        %3973 = vmatpush1.bf16.msra.mxu0 %v3723
        %3974 = vmatprep.subr.bf16.mxu0 0
        %3975 = vmatpush1.bf16.msra.mxu0 %v3724
        %3976 = vmatprep.subr.bf16.mxu0 0
        %3977 = vmatpush1.bf16.msra.mxu0 %v3725
        %3978 = vmatprep.subr.bf16.mxu0 0
        %3979 = vmatpush1.bf16.msra.mxu0 %v3726
        %3980 = vmatprep.subr.bf16.mxu0 0
        %3981 = vmatpush1.bf16.msra.mxu0 %v3727
        %3982 = vmatprep.subr.bf16.mxu0 0
        %3983 = vmatpush1.bf16.msra.mxu0 %v3728
        %3984 = vmatprep.subr.bf16.mxu0 0
        %3985 = vmatpush1.bf16.msra.mxu0 %v3729
        %3986 = vmatprep.mubr.bf16.mxu0 %v3095
        %3987 = vmatmul.mubr.bf16.gmra.mrb[0].mxu0 %v3094
        %v3988 = vpop.f32.mrb[0].mxu0
        %v3989 = vadd.f32 %v3949, %v3988
        %v3990 = vpop.f32.mrb[0].mxu0
        %v3991 = vpop.f32.mrb[0].mxu0
        %v3992 = vpop.f32.mrb[0].mxu0
        %3993 = vdwg.mxu0
        %3994 = vmatprep.subr.bf16.mxu0 0
        %3995 = vmatpush1.bf16.msra.mxu0 %v3730
        %3996 = vmatprep.subr.bf16.mxu0 0
        %3997 = vmatpush1.bf16.msra.mxu0 %v3731
        %3998 = vmatprep.subr.bf16.mxu0 0
        %3999 = vmatpush1.bf16.msra.mxu0 %v3732
        %4000 = vmatprep.subr.bf16.mxu0 0
        %4001 = vmatpush1.bf16.msra.mxu0 %v3733
        %4002 = vmatprep.subr.bf16.mxu0 0
        %4003 = vmatpush1.bf16.msra.mxu0 %v3734
        %4004 = vmatprep.subr.bf16.mxu0 0
        %4005 = vmatpush1.bf16.msra.mxu0 %v3735
        %4006 = vmatprep.subr.bf16.mxu0 0
        %4007 = vmatpush1.bf16.msra.mxu0 %v3736
        %4008 = vmatprep.subr.bf16.mxu0 0
        %4009 = vmatpush1.bf16.msra.mxu0 %v3737
        %4010 = vmatprep.subr.bf16.mxu0 0
        %4011 = vmatpush1.bf16.msra.mxu0 %v3738
        %4012 = vmatprep.subr.bf16.mxu0 0
        %4013 = vmatpush1.bf16.msra.mxu0 %v3739
        %4014 = vmatprep.subr.bf16.mxu0 0
        %4015 = vmatpush1.bf16.msra.mxu0 %v3740
        %4016 = vmatprep.subr.bf16.mxu0 0
        %4017 = vmatpush1.bf16.msra.mxu0 %v3741
        %4018 = vmatprep.subr.bf16.mxu0 0
        %4019 = vmatpush1.bf16.msra.mxu0 %v3742
        %4020 = vmatprep.subr.bf16.mxu0 0
        %4021 = vmatpush1.bf16.msra.mxu0 %v3743
        %4022 = vmatprep.subr.bf16.mxu0 0
        %4023 = vmatpush1.bf16.msra.mxu0 %v3744
        %4024 = vmatprep.subr.bf16.mxu0 0
        %4025 = vmatpush1.bf16.msra.mxu0 %v3745
        %4026 = vmatprep.mubr.bf16.mxu0 %v3097
        %4027 = vmatmul.mubr.bf16.gmra.mrb[0].mxu0 %v3096
        %v4028 = vpop.f32.mrb[0].mxu0
        %v4029 = vadd.f32 %v3989, %v4028
        %v4030 = vpop.f32.mrb[0].mxu0
        %v4031 = vpop.f32.mrb[0].mxu0
        %v4032 = vpop.f32.mrb[0].mxu0
        %4033 = vdwg.mxu0
        %4034 = vmatprep.subr.bf16.mxu0 0
        %4035 = vmatpush1.bf16.msra.mxu0 %v3746
        %4036 = vmatprep.subr.bf16.mxu0 0
        %4037 = vmatpush1.bf16.msra.mxu0 %v3747
        %4038 = vmatprep.subr.bf16.mxu0 0
        %4039 = vmatpush1.bf16.msra.mxu0 %v3748
        %4040 = vmatprep.subr.bf16.mxu0 0
        %4041 = vmatpush1.bf16.msra.mxu0 %v3749
        %4042 = vmatprep.subr.bf16.mxu0 0
        %4043 = vmatpush1.bf16.msra.mxu0 %v3750
        %4044 = vmatprep.subr.bf16.mxu0 0
        %4045 = vmatpush1.bf16.msra.mxu0 %v3751
        %4046 = vmatprep.subr.bf16.mxu0 0
        %4047 = vmatpush1.bf16.msra.mxu0 %v3752
        %4048 = vmatprep.subr.bf16.mxu0 0
        %4049 = vmatpush1.bf16.msra.mxu0 %v3753
        %4050 = vmatprep.subr.bf16.mxu0 0
        %4051 = vmatpush1.bf16.msra.mxu0 %v3754
        %4052 = vmatprep.subr.bf16.mxu0 0
        %4053 = vmatpush1.bf16.msra.mxu0 %v3755
        %4054 = vmatprep.subr.bf16.mxu0 0
        %4055 = vmatpush1.bf16.msra.mxu0 %v3756
        %4056 = vmatprep.subr.bf16.mxu0 0
        %4057 = vmatpush1.bf16.msra.mxu0 %v3757
        %4058 = vmatprep.subr.bf16.mxu0 0
        %4059 = vmatpush1.bf16.msra.mxu0 %v3758
        %4060 = vmatprep.subr.bf16.mxu0 0
        %4061 = vmatpush1.bf16.msra.mxu0 %v3759
        %4062 = vmatprep.subr.bf16.mxu0 0
        %4063 = vmatpush1.bf16.msra.mxu0 %v3760
        %4064 = vmatprep.subr.bf16.mxu0 0
        %4065 = vmatpush1.bf16.msra.mxu0 %v3761
        %4066 = vmatprep.mubr.bf16.mxu0 %v3092
        %4067 = vmatmul.mubr.bf16.gmra.mrb[0].mxu0 %v3098
        %v4068 = vpop.f32.mrb[0].mxu0
        %v4069 = vadd.f32 %v4029, %v4068
        %v4070 = vpop.f32.mrb[0].mxu0
        %v4071 = vpop.f32.mrb[0].mxu0
        %v4072 = vpop.f32.mrb[0].mxu0
        %4073 = vdwg.mxu0
        %4074 = vmatprep.subr.bf16.mxu0 0
        %4075 = vmatpush1.bf16.msra.mxu0 %v3762
        %4076 = vmatprep.subr.bf16.mxu0 0
        %4077 = vmatpush1.bf16.msra.mxu0 %v3763
        %4078 = vmatprep.subr.bf16.mxu0 0
        %4079 = vmatpush1.bf16.msra.mxu0 %v3764
        %4080 = vmatprep.subr.bf16.mxu0 0
        %4081 = vmatpush1.bf16.msra.mxu0 %v3765
        %4082 = vmatprep.subr.bf16.mxu0 0
        %4083 = vmatpush1.bf16.msra.mxu0 %v3766
        %4084 = vmatprep.subr.bf16.mxu0 0
        %4085 = vmatpush1.bf16.msra.mxu0 %v3767
        %4086 = vmatprep.subr.bf16.mxu0 0
        %4087 = vmatpush1.bf16.msra.mxu0 %v3768
        %4088 = vmatprep.subr.bf16.mxu0 0
        %4089 = vmatpush1.bf16.msra.mxu0 %v3769
        %4090 = vmatprep.subr.bf16.mxu0 0
        %4091 = vmatpush1.bf16.msra.mxu0 %v3770
        %4092 = vmatprep.subr.bf16.mxu0 0
        %4093 = vmatpush1.bf16.msra.mxu0 %v3771
        %4094 = vmatprep.subr.bf16.mxu0 0
        %4095 = vmatpush1.bf16.msra.mxu0 %v3772
        %4096 = vmatprep.subr.bf16.mxu0 0
        %4097 = vmatpush1.bf16.msra.mxu0 %v3773
        %4098 = vmatprep.subr.bf16.mxu0 0
        %4099 = vmatpush1.bf16.msra.mxu0 %v3774
        %4100 = vmatprep.subr.bf16.mxu0 0
        %4101 = vmatpush1.bf16.msra.mxu0 %v3775
        %4102 = vmatprep.subr.bf16.mxu0 0
        %4103 = vmatpush1.bf16.msra.mxu0 %v3776
        %4104 = vmatprep.subr.bf16.mxu0 0
        %4105 = vmatpush1.bf16.msra.mxu0 %v3777
        %4106 = vmatprep.mubr.bf16.mxu0 %v3092
        %4107 = vmatmul.mubr.bf16.gmra.mrb[0].mxu0 %v3092
        %v4108 = vpop.f32.mrb[0].mxu0
        %v4109 = vadd.f32 %v4069, %v4108
        %v4110 = vpop.f32.mrb[0].mxu0
        %v4111 = vpop.f32.mrb[0].mxu0
        %v4112 = vpop.f32.mrb[0].mxu0
        %4113 = vdwg.mxu0
        %4114 = vst.msk [vmem:[%s542] sm:$0xff] %vm1374, %v4109
        %s4115 = sand.u32 %s269, 1
        %s4116 = scalar_lea.sflag [#allocation4], %s4115
        %s4117 = sand.u32 %s269, 1
        %s4118 = smul.addr %s4117, 8
        %s4119 = scalar_lea.vmem [#allocation3], %s4118
        // Predicated region
        $region103: #{conv1d_baseline_forward.1} parent=97 // pred_check
          %p4120 = pneg %p279
        $region104: #{conv1d_baseline_forward.1} parent=97 // pred_check_branch
          %4122 = sbr.rel (%p4120) target = $region106
        $region105: #{conv1d_baseline_forward.1} parent=97 // pred_region
          %s4124 = ssub.s32 128, 128
          %4125 = vsyncadd %s4116, %s4124
          %s4126 = smul.addr %s25, 128
          %s4127 = scalar_lea.hbm %s11, %s4126
          %s4129 = sshll.u32 %s4119, 4
          %s4130 = int_to_ptr.vmem [resolvable:$true] %s4129
          %4132 = dma.vmem_to_hbm [thread:$0]  %s4130, 128, %s4127, %s4116
        $region106: #{conv1d_baseline_forward.1} parent=97 // pred_fallthru
          _
      $region98: #{conv1d_baseline_forward.1} parent=5 // pred_fallthru
        _
      %p4133 = scmp.le.s32.totalorder 2, %s20
      // Predicated region
      $region107: #{conv1d_baseline_forward.1} parent=5 // pred_check
        %p4134 = pneg %p4133
      $region108: #{conv1d_baseline_forward.1} parent=5 // pred_check_branch
        %4136 = sbr.rel (%p4134) target = $region110
      $region109: #{conv1d_baseline_forward.1} parent=5 // pred_region
        %s4137 = ssub.s32 %s20, 2
        // Predicated region
        $region111: #{conv1d_baseline_forward.1} parent=109 // pred_check
          %p4138 = pneg %p285
        $region112: #{conv1d_baseline_forward.1} parent=109 // pred_check_branch
          %4140 = sbr.rel (%p4138) target = $region114
        $region113: #{conv1d_baseline_forward.1} parent=109 // pred_region
          %s4141 = sand.u32 %s270, 1
          %s4142 = scalar_lea.sflag [#allocation4], %s4141
          %s4143 = sand.u32 %s270, 1
          %s4144 = smul.addr %s4143, 8
          %s4145 = scalar_lea.vmem [#allocation3], %s4144
          %4146 = dma.done %s4142, 128
        $region114: #{conv1d_baseline_forward.1} parent=109 // pred_fallthru
          _
      $region110: #{conv1d_baseline_forward.1} parent=5 // pred_fallthru
        _
    $region6: #{conv1d_baseline_forward.1} parent=1 // loop_footer
      %s24 = sadd.s32 1, %s20
    $region7: #{conv1d_baseline_forward.1} parent=1 // loop_footer_branch
      %19 = sbr.rel target = $region3
    $region8: #{conv1d_baseline_forward.1} parent=1 // loop_exit
      _
    %4147 = vsyncpa [#allocation4], 1
    %s4148 = scalar_lea.sflag [#allocation4], 1
    %4149 = vsyncpa %s4148, 1

</llo_original>
